<compile_context>
chip_gen: v7x
topology: tpu7x:2x2x1
jax: 0.10.0
libtpu: 0.0.40
codegen_flags: <defaults>
</compile_context>

<pallas_src>
import numpy as np
import jax
import jax.numpy as jnp
from jax import lax
from jax.experimental import pallas as pl
from jax.experimental.pallas import tpu as pltpu

EPS = 1e-5


def _round_up(n, m):
    return ((n + m - 1) // m) * m


def _sigmoid_fast(v):
    # logistic(v) == 0.5 * tanh(0.5 * v) + 0.5  -> one EUP tanh, no divide.
    return 0.5 * jnp.tanh(0.5 * v) + 0.5


# ----------------------------------------------------------------------------
# Pallas kernel: full StrategicGRU forward for one batch block.
# ----------------------------------------------------------------------------
def _strategic_gru_kernel(x_ref, h0_ref,
                          wh0_ref, bh0_ref,
                          wir_ref, wiz_ref, win_ref,
                          br_ref, bz_ref, bn_ref,
                          whr_ref, whz_ref, whn_ref, bhn_ref,
                          wfc_ref, bfc_ref,
                          wsd_ref, wsx_ref, bs_ref,
                          out_ref):
    T, bb, D = x_ref.shape
    H = whr_ref.shape[0]

    x = x_ref[...]                                               # [T, bb, D]

    # ---- Normalizer.normalize: per-(batch, feature) stats over the time axis ----
    mean = jnp.mean(x, axis=0, keepdims=True)                    # [1, bb, D]
    var = jnp.mean((x - mean) ** 2, axis=0, keepdims=True)       # [1, bb, D]
    inv_std = lax.rsqrt(var + EPS)                               # EUP rsqrt
    xn = (x - mean) * inv_std                                    # [T, bb, D]
    std = (var[0] + EPS) * inv_std[0]                            # == sqrt(var+eps), [bb, D]
    mean0 = mean[0]                                              # [bb, D]

    # ---- h0_fc ----
    h = jnp.dot(h0_ref[...], wh0_ref[...],
                preferred_element_type=jnp.float32) + bh0_ref[...]          # [bb, H]

    # ---- Hoisted input-gate projections (one big matmul per gate, biases folded) ----
    xn2 = xn.reshape(T * bb, D)                                  # tile-aligned flatten
    gxr = jnp.dot(xn2, wir_ref[...], preferred_element_type=jnp.float32) + br_ref[...]
    gxz = jnp.dot(xn2, wiz_ref[...], preferred_element_type=jnp.float32) + bz_ref[...]
    gxn = jnp.dot(xn2, win_ref[...], preferred_element_type=jnp.float32) + bn_ref[...]

    whr = whr_ref[...]
    whz = whz_ref[...]
    whn = whn_ref[...]
    bhn = jnp.broadcast_to(bhn_ref[...], (bb, H))   # hoist bias broadcast out of the loop

    # ---- GRU recurrence: only the h-dependent matmuls remain on the serial path ----
    for t in range(T):
        s = t * bb
        gh_r = jnp.dot(h, whr, preferred_element_type=jnp.float32)
        gh_z = jnp.dot(h, whz, preferred_element_type=jnp.float32)
        gh_n = jnp.dot(h, whn, preferred_element_type=jnp.float32)
        r = _sigmoid_fast(gxr[s:s + bb] + gh_r)
        z = _sigmoid_fast(gxz[s:s + bb] + gh_z)
        n = jnp.tanh(gxn[s:s + bb] + r * (gh_n + bhn))
        h = n + z * (h - n)                                      # == (1-z)*n + z*h

    # ---- fc head on the last hidden state, then denormalize ----
    pred = jnp.dot(h, wfc_ref[...],
                   preferred_element_type=jnp.float32) + bfc_ref[...]       # [bb, D]
    demand = pred * std + mean0                                             # [bb, D]

    # ---- strategy_fc(concat(demand, x_last)) with the weight pre-split ----
    x_last = x_ref[T - 1]                                                   # [bb, D]
    replenish = (jnp.dot(demand, wsd_ref[...], preferred_element_type=jnp.float32)
                 + jnp.dot(x_last, wsx_ref[...], preferred_element_type=jnp.float32)
                 + bs_ref[...])                                             # [bb, D]

    out_ref[...] = jnp.maximum(x_last + replenish - demand, 0.0)            # ReLU


# ----------------------------------------------------------------------------
# Wrapper
# ----------------------------------------------------------------------------
def strategic_gru_forward(time_series, h0, params, batch_block=None):
    if time_series.ndim == 2:
        time_series = time_series[None]           # match the PyTorch unsqueeze(0)
    B, T, D = time_series.shape
    H = params["w_hh"].shape[1]
    G = 3 * H

    if h0.ndim == 3:                              # [num_layers=1, B, H] -> [B, H]
        h0 = h0[0]

    # Sublane-align the batch: pad B up to a multiple of the block (itself a
    # multiple of 8) so every block and in-kernel reshape is (8,128)-aligned.
    if batch_block is None:
        bb = _round_up(B, 8)
    else:
        bb = batch_block
        assert bb % 8 == 0, "batch_block must be a multiple of 8 (sublane tile)"
    B_pad = _round_up(B, bb)

    x = time_series.astype(jnp.float32)
    h0f = h0.astype(jnp.float32)
    if B_pad != B:
        x = jnp.pad(x, ((0, B_pad - B), (0, 0), (0, 0)))
        h0f = jnp.pad(h0f, ((0, B_pad - B), (0, 0)))

    # Time-major layout: time -> leading axis, batch -> sublanes, features -> lanes.
    x_tm = jnp.transpose(x, (1, 0, 2))            # [T, B_pad, D]

    full = lambda shape: pl.BlockSpec(shape, lambda i: (0,) * len(shape))

    # ---- Explicit VMEM budget (lane/sublane padded, double-buffered inputs) ----
    def padded(r, c):
        return _round_up(r, 8) * _round_up(c, 128) * 4

    block_bytes = (2 * T * padded(bb, D)                              # x block
                   + 2 * padded(bb, H)                                # h0 block
                   + 2 * padded(bb, D)                                # out block
                   + 2 * (padded(H, H) + padded(1, H)                 # h0_fc
                          + 3 * padded(D, H) + 4 * padded(1, H)       # input gates + biases
                          + 3 * padded(H, H)                          # recurrent gates
                          + padded(H, D) + padded(1, D)               # fc
                          + 2 * padded(D, D) + padded(1, D))          # strategy_fc
                   + 4 * T * padded(bb, D)                            # x / xn temporaries
                   + 3 * T * padded(bb, H))                           # hoisted gate projections
    vmem_limit = int(min(max(2 * block_bytes, 32 << 20), 64 << 20))   # cap for v7x (64 MiB)

    # Advisory cost estimate so XLA schedules/overlaps this small kernel sensibly.
    weight_elems = (H * H + H + D * G + G + H * G + G + H * D + D + 2 * D * D + D)
    flops = int(2 * B_pad * H * H                      # h0_fc
                + 2 * T * B_pad * D * G                # hoisted input projections
                + T * 2 * B_pad * H * G                # recurrent matmuls
                + 2 * B_pad * H * D                    # fc
                + 2 * B_pad * 2 * D * D)               # strategy_fc
    cost = pl.CostEstimate(
        flops=flops,
        transcendentals=int(T * 3 * B_pad * H),
        bytes_accessed=int(4 * (B_pad * T * D + B_pad * H + B_pad * D + weight_elems)))

    out = pl.pallas_call(
        _strategic_gru_kernel,
        out_shape=jax.ShapeDtypeStruct((B_pad, D), jnp.float32),
        grid_spec=pltpu.PrefetchScalarGridSpec(
            num_scalar_prefetch=0,
            grid=(B_pad // bb,),
            in_specs=[
                pl.BlockSpec((T, bb, D), lambda i: (0, i, 0)),   # x (time-major)
                pl.BlockSpec((bb, H), lambda i: (i, 0)),         # h0
                full((H, H)), full((1, H)),                      # h0_fc  W^T, b
                full((D, H)), full((D, H)), full((D, H)),        # W_ir^T, W_iz^T, W_in^T
                full((1, H)), full((1, H)), full((1, H)),        # b_r(ih+hh), b_z(ih+hh), b_in
                full((H, H)), full((H, H)), full((H, H)),        # W_hr^T, W_hz^T, W_hn^T
                full((1, H)),                                    # b_hn
                full((H, D)), full((1, D)),                      # fc     W^T, b
                full((D, D)), full((D, D)), full((1, D)),        # strategy_fc split W^T, b
            ],
            out_specs=pl.BlockSpec((bb, D), lambda i: (i, 0)),
        ),
        compiler_params=pltpu.CompilerParams(
            dimension_semantics=("parallel",),
            vmem_limit_bytes=vmem_limit),
        cost_estimate=cost,
    )(x_tm, h0f,
      params["wh0T"], params["bh0"],
      params["wirT"], params["wizT"], params["winT"],
      params["b_r"], params["b_z"], params["b_in"],
      params["whrT"], params["whzT"], params["whnT"], params["b_hn"],
      params["wfcT"], params["bfc2"],
      params["wsdT"], params["wsxT"], params["bs2"])
    return out[:B]


# ----------------------------------------------------------------------------
# Parameter construction (deterministic, synthetic; PyTorch layouts + kernel layouts)
# ----------------------------------------------------------------------------
def init_params(key, input_dim, hidden_dim):
    D, H = input_dim, hidden_dim
    ks = jax.random.split(key, 10)

    def u(k, shape, fan_in):
        s = 1.0 / np.sqrt(fan_in)
        return jax.random.uniform(k, shape, jnp.float32, -s, s)

    w_ih = u(ks[0], (3 * H, D), H)       # GRU weight_ih_l0 (gate order r, z, n)
    w_hh = u(ks[1], (3 * H, H), H)       # GRU weight_hh_l0
    b_ih = u(ks[2], (3 * H,), H)
    b_hh = u(ks[3], (3 * H,), H)
    w_h0 = u(ks[4], (H, H), H)           # h0_fc
    b_h0 = u(ks[5], (H,), H)
    w_fc = u(ks[6], (D, H), H)           # fc: Linear(hidden, output_dim == input_dim)
    b_fc = u(ks[7], (D,), H)
    w_s = u(ks[8], (D, 2 * D), 2 * D)    # strategy_fc: Linear(2D, D)
    b_s = u(ks[9], (D,), 2 * D)

    params = dict(w_ih=w_ih, w_hh=w_hh, b_ih=b_ih, b_hh=b_hh,
                  w_h0=w_h0, b_h0=b_h0, w_fc=w_fc, b_fc=b_fc,
                  w_s=w_s, b_s=b_s)

    # Kernel layouts: transposed + per-gate-split weights, folded r/z biases,
    # row-vector biases, strategy weight split (removes the lane concat).
    params.update(
        wh0T=w_h0.T, bh0=b_h0.reshape(1, H),
        wirT=w_ih[:H].T, wizT=w_ih[H:2 * H].T, winT=w_ih[2 * H:].T,
        whrT=w_hh[:H].T, whzT=w_hh[H:2 * H].T, whnT=w_hh[2 * H:].T,
        b_r=(b_ih[:H] + b_hh[:H]).reshape(1, H),
        b_z=(b_ih[H:2 * H] + b_hh[H:2 * H]).reshape(1, H),
        b_in=b_ih[2 * H:].reshape(1, H),
        b_hn=b_hh[2 * H:].reshape(1, H),
        wfcT=w_fc.T, bfc2=b_fc.reshape(1, D),
        wsdT=w_s[:, :D].T, wsxT=w_s[:, D:].T, bs2=b_s.reshape(1, D))
    return params


# ----------------------------------------------------------------------------
# Pure-JAX reference (same semantics), for a correctness check.
# ----------------------------------------------------------------------------
def reference_forward(time_series, h0, p):
    if time_series.ndim == 2:
        time_series = time_series[None]
    B, T, D = time_series.shape
    H = p["w_hh"].shape[1]

    mean = jnp.mean(time_series, axis=1, keepdims=True)
    var = jnp.mean((time_series - mean) ** 2, axis=1, keepdims=True)
    std = jnp.sqrt(var + EPS)
    xn = (time_series - mean) / std

    h = h0[0] @ p["w_h0"].T + p["b_h0"]                   # h0_fc
    for t in range(T):
        x_t = xn[:, t, :]
        gx = x_t @ p["w_ih"].T + p["b_ih"]
        gh = h @ p["w_hh"].T + p["b_hh"]
        r = 1.0 / (1.0 + jnp.exp(-(gx[:, :H] + gh[:, :H])))
        z = 1.0 / (1.0 + jnp.exp(-(gx[:, H:2 * H] + gh[:, H:2 * H])))
        n = jnp.tanh(gx[:, 2 * H:] + r * gh[:, 2 * H:])
        h = (1.0 - z) * n + z * h

    pred = h @ p["w_fc"].T + p["b_fc"]                    # fc on last hidden state
    demand = pred * std[:, 0, :] + mean[:, 0, :]          # denormalize + squeeze(1)
    x_last = time_series[:, -1, :]
    replenish = jnp.concatenate([demand, x_last], axis=-1) @ p["w_s"].T + p["b_s"]
    return jax.nn.relu(x_last + replenish - demand)


# ----------------------------------------------------------------------------
if __name__ == "__main__":
    B, T, D, H = 2, 8, 4, 32      # batch, seq len, input_dim (= output_dim), hidden_dim

    key = jax.random.PRNGKey(0)
    k_x, k_h, k_p = jax.random.split(key, 3)

    time_series = jax.random.normal(k_x, (B, T, D), jnp.float32)
    h0 = jax.random.normal(k_h, (1, B, H), jnp.float32)   # (num_layers=1, B, H)
    params = init_params(k_p, D, H)

    out = strategic_gru_forward(time_series, h0, params)
    out = jax.block_until_ready(out)

    ref = reference_forward(time_series, h0, params)
    np_out = np.asarray(out)
    np_ref = np.asarray(ref)
    assert np_out.shape == (B, D), np_out.shape
    np.testing.assert_allclose(np_out, np_ref, rtol=2e-3, atol=2e-3)

    print("KERNEL_OK")
</pallas_src>

<mosaic_0001>
module attributes {stable_mosaic.version = 11 : i64} {
  func.func @_strategic_gru_kernel(%arg0: i32, %arg1: memref<8x8x4xf32, #tpu.memory_space<vmem>>, %arg2: memref<8x32xf32, #tpu.memory_space<vmem>>, %arg3: memref<32x32xf32, #tpu.memory_space<vmem>>, %arg4: memref<1x32xf32, #tpu.memory_space<vmem>>, %arg5: memref<4x32xf32, #tpu.memory_space<vmem>>, %arg6: memref<4x32xf32, #tpu.memory_space<vmem>>, %arg7: memref<4x32xf32, #tpu.memory_space<vmem>>, %arg8: memref<1x32xf32, #tpu.memory_space<vmem>>, %arg9: memref<1x32xf32, #tpu.memory_space<vmem>>, %arg10: memref<1x32xf32, #tpu.memory_space<vmem>>, %arg11: memref<32x32xf32, #tpu.memory_space<vmem>>, %arg12: memref<32x32xf32, #tpu.memory_space<vmem>>, %arg13: memref<32x32xf32, #tpu.memory_space<vmem>>, %arg14: memref<1x32xf32, #tpu.memory_space<vmem>>, %arg15: memref<32x4xf32, #tpu.memory_space<vmem>>, %arg16: memref<1x4xf32, #tpu.memory_space<vmem>>, %arg17: memref<4x4xf32, #tpu.memory_space<vmem>>, %arg18: memref<4x4xf32, #tpu.memory_space<vmem>>, %arg19: memref<1x4xf32, #tpu.memory_space<vmem>>, %arg20: memref<8x4xf32, #tpu.memory_space<vmem>>) attributes {dimension_semantics = [#tpu.dimension_semantics<parallel>], iteration_bounds = array<i64: 1>, scalar_prefetch = 0 : i64, scratch_operands = 0 : i64, tpu.core_type = #tpu.core_type<tc>, window_params = [{transform_indices = @transform_0, window_bounds = array<i64: 8, 8, 4>}, {transform_indices = @transform_1, window_bounds = array<i64: 8, 32>}, {pipeline_mode = #tpu.pipeline_mode<synchronous>, transform_indices = @transform_2, window_bounds = array<i64: 32, 32>}, {pipeline_mode = #tpu.pipeline_mode<synchronous>, transform_indices = @transform_3, window_bounds = array<i64: 1, 32>}, {pipeline_mode = #tpu.pipeline_mode<synchronous>, transform_indices = @transform_4, window_bounds = array<i64: 4, 32>}, {pipeline_mode = #tpu.pipeline_mode<synchronous>, transform_indices = @transform_5, window_bounds = array<i64: 4, 32>}, {pipeline_mode = #tpu.pipeline_mode<synchronous>, transform_indices = @transform_6, window_bounds = array<i64: 4, 32>}, {pipeline_mode = #tpu.pipeline_mode<synchronous>, transform_indices = @transform_7, window_bounds = array<i64: 1, 32>}, {pipeline_mode = #tpu.pipeline_mode<synchronous>, transform_indices = @transform_8, window_bounds = array<i64: 1, 32>}, {pipeline_mode = #tpu.pipeline_mode<synchronous>, transform_indices = @transform_9, window_bounds = array<i64: 1, 32>}, {pipeline_mode = #tpu.pipeline_mode<synchronous>, transform_indices = @transform_10, window_bounds = array<i64: 32, 32>}, {pipeline_mode = #tpu.pipeline_mode<synchronous>, transform_indices = @transform_11, window_bounds = array<i64: 32, 32>}, {pipeline_mode = #tpu.pipeline_mode<synchronous>, transform_indices = @transform_12, window_bounds = array<i64: 32, 32>}, {pipeline_mode = #tpu.pipeline_mode<synchronous>, transform_indices = @transform_13, window_bounds = array<i64: 1, 32>}, {pipeline_mode = #tpu.pipeline_mode<synchronous>, transform_indices = @transform_14, window_bounds = array<i64: 32, 4>}, {pipeline_mode = #tpu.pipeline_mode<synchronous>, transform_indices = @transform_15, window_bounds = array<i64: 1, 4>}, {pipeline_mode = #tpu.pipeline_mode<synchronous>, transform_indices = @transform_16, window_bounds = array<i64: 4, 4>}, {pipeline_mode = #tpu.pipeline_mode<synchronous>, transform_indices = @transform_17, window_bounds = array<i64: 4, 4>}, {pipeline_mode = #tpu.pipeline_mode<synchronous>, transform_indices = @transform_18, window_bounds = array<i64: 1, 4>}, {transform_indices = @transform_19, window_bounds = array<i64: 8, 4>}]} {
    %c0 = arith.constant 0 : index
    %c0_0 = arith.constant 0 : index
    %c0_1 = arith.constant 0 : index
    %0 = vector.load %arg1[%c0, %c0_0, %c0_1] : memref<8x8x4xf32, #tpu.memory_space<vmem>>, vector<8x8x4xf32>
    %cst = arith.constant dense<0.000000e+00> : vector<8x4xf32>
    %1 = vector.multi_reduction <add>, %0, %cst [0] : vector<8x8x4xf32> to vector<8x4xf32>
    %2 = vector.shape_cast %1 : vector<8x4xf32> to vector<1x8x4xf32>
    %cst_2 = arith.constant 8.000000e+00 : f32
    %3 = vector.broadcast %cst_2 : f32 to vector<1x8x4xf32>
    %4 = arith.divf %2, %3 : vector<1x8x4xf32>
    %5 = vector.broadcast %4 : vector<1x8x4xf32> to vector<8x8x4xf32>
    %6 = arith.subf %0, %5 : vector<8x8x4xf32>
    %7 = arith.mulf %6, %6 : vector<8x8x4xf32>
    %cst_3 = arith.constant dense<0.000000e+00> : vector<8x4xf32>
    %8 = vector.multi_reduction <add>, %7, %cst_3 [0] : vector<8x8x4xf32> to vector<8x4xf32>
    %9 = vector.shape_cast %8 : vector<8x4xf32> to vector<1x8x4xf32>
    %cst_4 = arith.constant 8.000000e+00 : f32
    %10 = vector.broadcast %cst_4 : f32 to vector<1x8x4xf32>
    %11 = arith.divf %9, %10 : vector<1x8x4xf32>
    %cst_5 = arith.constant 9.99999974E-6 : f32
    %12 = vector.broadcast %cst_5 : f32 to vector<1x8x4xf32>
    %13 = arith.addf %11, %12 : vector<1x8x4xf32>
    %14 = math.rsqrt %13 : vector<1x8x4xf32>
    %15 = vector.broadcast %4 : vector<1x8x4xf32> to vector<8x8x4xf32>
    %16 = arith.subf %0, %15 : vector<8x8x4xf32>
    %17 = vector.broadcast %14 : vector<1x8x4xf32> to vector<8x8x4xf32>
    %18 = arith.mulf %16, %17 : vector<8x8x4xf32>
    %19 = vector.shape_cast %11 : vector<1x8x4xf32> to vector<8x4xf32>
    %cst_6 = arith.constant 9.99999974E-6 : f32
    %20 = vector.broadcast %cst_6 : f32 to vector<8x4xf32>
    %21 = arith.addf %19, %20 : vector<8x4xf32>
    %22 = vector.shape_cast %14 : vector<1x8x4xf32> to vector<8x4xf32>
    %23 = arith.mulf %21, %22 : vector<8x4xf32>
    %24 = vector.shape_cast %4 : vector<1x8x4xf32> to vector<8x4xf32>
    %c0_7 = arith.constant 0 : index
    %c0_8 = arith.constant 0 : index
    %25 = vector.load %arg2[%c0_7, %c0_8] : memref<8x32xf32, #tpu.memory_space<vmem>>, vector<8x32xf32>
    %c0_9 = arith.constant 0 : index
    %c0_10 = arith.constant 0 : index
    %26 = vector.load %arg3[%c0_9, %c0_10] : memref<32x32xf32, #tpu.memory_space<vmem>>, vector<32x32xf32>
    %cst_11 = arith.constant dense<0.000000e+00> : vector<8x32xf32>
    %27 = tpu.matmul %25, %26, %cst_11 {dimension_numbers = #tpu.dot_dimension_numbers<[1], [0], [0], [1], [0, 0, 1, 1], [], []>} : vector<8x32xf32>, vector<32x32xf32>, vector<8x32xf32> -> vector<8x32xf32>
    %c0_12 = arith.constant 0 : index
    %c0_13 = arith.constant 0 : index
    %28 = vector.load %arg4[%c0_12, %c0_13] : memref<1x32xf32, #tpu.memory_space<vmem>>, vector<1x32xf32>
    %29 = vector.broadcast %28 : vector<1x32xf32> to vector<8x32xf32>
    %30 = arith.addf %27, %29 : vector<8x32xf32>
    %31 = vector.shape_cast %18 : vector<8x8x4xf32> to vector<64x4xf32>
    %c0_14 = arith.constant 0 : index
    %c0_15 = arith.constant 0 : index
    %32 = vector.load %arg5[%c0_14, %c0_15] : memref<4x32xf32, #tpu.memory_space<vmem>>, vector<4x32xf32>
    %cst_16 = arith.constant dense<0.000000e+00> : vector<64x32xf32>
    %33 = tpu.matmul %31, %32, %cst_16 {dimension_numbers = #tpu.dot_dimension_numbers<[1], [0], [0], [1], [0, 0, 1, 1], [], []>} : vector<64x4xf32>, vector<4x32xf32>, vector<64x32xf32> -> vector<64x32xf32>
    %c0_17 = arith.constant 0 : index
    %c0_18 = arith.constant 0 : index
    %34 = vector.load %arg8[%c0_17, %c0_18] : memref<1x32xf32, #tpu.memory_space<vmem>>, vector<1x32xf32>
    %35 = vector.broadcast %34 : vector<1x32xf32> to vector<64x32xf32>
    %36 = arith.addf %33, %35 : vector<64x32xf32>
    %c0_19 = arith.constant 0 : index
    %c0_20 = arith.constant 0 : index
    %37 = vector.load %arg6[%c0_19, %c0_20] : memref<4x32xf32, #tpu.memory_space<vmem>>, vector<4x32xf32>
    %cst_21 = arith.constant dense<0.000000e+00> : vector<64x32xf32>
    %38 = tpu.matmul %31, %37, %cst_21 {dimension_numbers = #tpu.dot_dimension_numbers<[1], [0], [0], [1], [0, 0, 1, 1], [], []>} : vector<64x4xf32>, vector<4x32xf32>, vector<64x32xf32> -> vector<64x32xf32>
    %c0_22 = arith.constant 0 : index
    %c0_23 = arith.constant 0 : index
    %39 = vector.load %arg9[%c0_22, %c0_23] : memref<1x32xf32, #tpu.memory_space<vmem>>, vector<1x32xf32>
    %40 = vector.broadcast %39 : vector<1x32xf32> to vector<64x32xf32>
    %41 = arith.addf %38, %40 : vector<64x32xf32>
    %c0_24 = arith.constant 0 : index
    %c0_25 = arith.constant 0 : index
    %42 = vector.load %arg7[%c0_24, %c0_25] : memref<4x32xf32, #tpu.memory_space<vmem>>, vector<4x32xf32>
    %cst_26 = arith.constant dense<0.000000e+00> : vector<64x32xf32>
    %43 = tpu.matmul %31, %42, %cst_26 {dimension_numbers = #tpu.dot_dimension_numbers<[1], [0], [0], [1], [0, 0, 1, 1], [], []>} : vector<64x4xf32>, vector<4x32xf32>, vector<64x32xf32> -> vector<64x32xf32>
    %c0_27 = arith.constant 0 : index
    %c0_28 = arith.constant 0 : index
    %44 = vector.load %arg10[%c0_27, %c0_28] : memref<1x32xf32, #tpu.memory_space<vmem>>, vector<1x32xf32>
    %45 = vector.broadcast %44 : vector<1x32xf32> to vector<64x32xf32>
    %46 = arith.addf %43, %45 : vector<64x32xf32>
    %c0_29 = arith.constant 0 : index
    %c0_30 = arith.constant 0 : index
    %47 = vector.load %arg11[%c0_29, %c0_30] : memref<32x32xf32, #tpu.memory_space<vmem>>, vector<32x32xf32>
    %c0_31 = arith.constant 0 : index
    %c0_32 = arith.constant 0 : index
    %48 = vector.load %arg12[%c0_31, %c0_32] : memref<32x32xf32, #tpu.memory_space<vmem>>, vector<32x32xf32>
    %c0_33 = arith.constant 0 : index
    %c0_34 = arith.constant 0 : index
    %49 = vector.load %arg13[%c0_33, %c0_34] : memref<32x32xf32, #tpu.memory_space<vmem>>, vector<32x32xf32>
    %c0_35 = arith.constant 0 : index
    %c0_36 = arith.constant 0 : index
    %50 = vector.load %arg14[%c0_35, %c0_36] : memref<1x32xf32, #tpu.memory_space<vmem>>, vector<1x32xf32>
    %51 = vector.shape_cast %50 : vector<1x32xf32> to vector<1x32xf32>
    %52 = vector.broadcast %51 : vector<1x32xf32> to vector<8x32xf32>
    %cst_37 = arith.constant dense<0.000000e+00> : vector<8x32xf32>
    %53 = tpu.matmul %30, %47, %cst_37 {dimension_numbers = #tpu.dot_dimension_numbers<[1], [0], [0], [1], [0, 0, 1, 1], [], []>} : vector<8x32xf32>, vector<32x32xf32>, vector<8x32xf32> -> vector<8x32xf32>
    %cst_38 = arith.constant dense<0.000000e+00> : vector<8x32xf32>
    %54 = tpu.matmul %30, %48, %cst_38 {dimension_numbers = #tpu.dot_dimension_numbers<[1], [0], [0], [1], [0, 0, 1, 1], [], []>} : vector<8x32xf32>, vector<32x32xf32>, vector<8x32xf32> -> vector<8x32xf32>
    %cst_39 = arith.constant dense<0.000000e+00> : vector<8x32xf32>
    %55 = tpu.matmul %30, %49, %cst_39 {dimension_numbers = #tpu.dot_dimension_numbers<[1], [0], [0], [1], [0, 0, 1, 1], [], []>} : vector<8x32xf32>, vector<32x32xf32>, vector<8x32xf32> -> vector<8x32xf32>
    %56 = vector.extract_strided_slice %36 {offsets = [0, 0], sizes = [8, 32], strides = [1, 1]} : vector<64x32xf32> to vector<8x32xf32>
    %57 = arith.addf %56, %53 : vector<8x32xf32>
    %cst_40 = arith.constant 5.000000e-01 : f32
    %58 = vector.broadcast %cst_40 : f32 to vector<8x32xf32>
    %59 = arith.mulf %58, %57 : vector<8x32xf32>
    %60 = math.tanh %59 : vector<8x32xf32>
    %cst_41 = arith.constant 5.000000e-01 : f32
    %61 = vector.broadcast %cst_41 : f32 to vector<8x32xf32>
    %62 = arith.mulf %61, %60 : vector<8x32xf32>
    %cst_42 = arith.constant 5.000000e-01 : f32
    %63 = vector.broadcast %cst_42 : f32 to vector<8x32xf32>
    %64 = arith.addf %62, %63 : vector<8x32xf32>
    %65 = vector.extract_strided_slice %41 {offsets = [0, 0], sizes = [8, 32], strides = [1, 1]} : vector<64x32xf32> to vector<8x32xf32>
    %66 = arith.addf %65, %54 : vector<8x32xf32>
    %cst_43 = arith.constant 5.000000e-01 : f32
    %67 = vector.broadcast %cst_43 : f32 to vector<8x32xf32>
    %68 = arith.mulf %67, %66 : vector<8x32xf32>
    %69 = math.tanh %68 : vector<8x32xf32>
    %cst_44 = arith.constant 5.000000e-01 : f32
    %70 = vector.broadcast %cst_44 : f32 to vector<8x32xf32>
    %71 = arith.mulf %70, %69 : vector<8x32xf32>
    %cst_45 = arith.constant 5.000000e-01 : f32
    %72 = vector.broadcast %cst_45 : f32 to vector<8x32xf32>
    %73 = arith.addf %71, %72 : vector<8x32xf32>
    %74 = vector.extract_strided_slice %46 {offsets = [0, 0], sizes = [8, 32], strides = [1, 1]} : vector<64x32xf32> to vector<8x32xf32>
    %75 = arith.addf %55, %52 : vector<8x32xf32>
    %76 = arith.mulf %64, %75 : vector<8x32xf32>
    %77 = arith.addf %74, %76 : vector<8x32xf32>
    %78 = math.tanh %77 : vector<8x32xf32>
    %79 = arith.subf %30, %78 : vector<8x32xf32>
    %80 = arith.mulf %73, %79 : vector<8x32xf32>
    %81 = arith.addf %78, %80 : vector<8x32xf32>
    %cst_46 = arith.constant dense<0.000000e+00> : vector<8x32xf32>
    %82 = tpu.matmul %81, %47, %cst_46 {dimension_numbers = #tpu.dot_dimension_numbers<[1], [0], [0], [1], [0, 0, 1, 1], [], []>} : vector<8x32xf32>, vector<32x32xf32>, vector<8x32xf32> -> vector<8x32xf32>
    %cst_47 = arith.constant dense<0.000000e+00> : vector<8x32xf32>
    %83 = tpu.matmul %81, %48, %cst_47 {dimension_numbers = #tpu.dot_dimension_numbers<[1], [0], [0], [1], [0, 0, 1, 1], [], []>} : vector<8x32xf32>, vector<32x32xf32>, vector<8x32xf32> -> vector<8x32xf32>
    %cst_48 = arith.constant dense<0.000000e+00> : vector<8x32xf32>
    %84 = tpu.matmul %81, %49, %cst_48 {dimension_numbers = #tpu.dot_dimension_numbers<[1], [0], [0], [1], [0, 0, 1, 1], [], []>} : vector<8x32xf32>, vector<32x32xf32>, vector<8x32xf32> -> vector<8x32xf32>
    %85 = vector.extract_strided_slice %36 {offsets = [8, 0], sizes = [8, 32], strides = [1, 1]} : vector<64x32xf32> to vector<8x32xf32>
    %86 = arith.addf %85, %82 : vector<8x32xf32>
    %cst_49 = arith.constant 5.000000e-01 : f32
    %87 = vector.broadcast %cst_49 : f32 to vector<8x32xf32>
    %88 = arith.mulf %87, %86 : vector<8x32xf32>
    %89 = math.tanh %88 : vector<8x32xf32>
    %cst_50 = arith.constant 5.000000e-01 : f32
    %90 = vector.broadcast %cst_50 : f32 to vector<8x32xf32>
    %91 = arith.mulf %90, %89 : vector<8x32xf32>
    %cst_51 = arith.constant 5.000000e-01 : f32
    %92 = vector.broadcast %cst_51 : f32 to vector<8x32xf32>
    %93 = arith.addf %91, %92 : vector<8x32xf32>
    %94 = vector.extract_strided_slice %41 {offsets = [8, 0], sizes = [8, 32], strides = [1, 1]} : vector<64x32xf32> to vector<8x32xf32>
    %95 = arith.addf %94, %83 : vector<8x32xf32>
    %cst_52 = arith.constant 5.000000e-01 : f32
    %96 = vector.broadcast %cst_52 : f32 to vector<8x32xf32>
    %97 = arith.mulf %96, %95 : vector<8x32xf32>
    %98 = math.tanh %97 : vector<8x32xf32>
    %cst_53 = arith.constant 5.000000e-01 : f32
    %99 = vector.broadcast %cst_53 : f32 to vector<8x32xf32>
    %100 = arith.mulf %99, %98 : vector<8x32xf32>
    %cst_54 = arith.constant 5.000000e-01 : f32
    %101 = vector.broadcast %cst_54 : f32 to vector<8x32xf32>
    %102 = arith.addf %100, %101 : vector<8x32xf32>
    %103 = vector.extract_strided_slice %46 {offsets = [8, 0], sizes = [8, 32], strides = [1, 1]} : vector<64x32xf32> to vector<8x32xf32>
    %104 = arith.addf %84, %52 : vector<8x32xf32>
    %105 = arith.mulf %93, %104 : vector<8x32xf32>
    %106 = arith.addf %103, %105 : vector<8x32xf32>
    %107 = math.tanh %106 : vector<8x32xf32>
    %108 = arith.subf %81, %107 : vector<8x32xf32>
    %109 = arith.mulf %102, %108 : vector<8x32xf32>
    %110 = arith.addf %107, %109 : vector<8x32xf32>
    %cst_55 = arith.constant dense<0.000000e+00> : vector<8x32xf32>
    %111 = tpu.matmul %110, %47, %cst_55 {dimension_numbers = #tpu.dot_dimension_numbers<[1], [0], [0], [1], [0, 0, 1, 1], [], []>} : vector<8x32xf32>, vector<32x32xf32>, vector<8x32xf32> -> vector<8x32xf32>
    %cst_56 = arith.constant dense<0.000000e+00> : vector<8x32xf32>
    %112 = tpu.matmul %110, %48, %cst_56 {dimension_numbers = #tpu.dot_dimension_numbers<[1], [0], [0], [1], [0, 0, 1, 1], [], []>} : vector<8x32xf32>, vector<32x32xf32>, vector<8x32xf32> -> vector<8x32xf32>
    %cst_57 = arith.constant dense<0.000000e+00> : vector<8x32xf32>
    %113 = tpu.matmul %110, %49, %cst_57 {dimension_numbers = #tpu.dot_dimension_numbers<[1], [0], [0], [1], [0, 0, 1, 1], [], []>} : vector<8x32xf32>, vector<32x32xf32>, vector<8x32xf32> -> vector<8x32xf32>
    %114 = vector.extract_strided_slice %36 {offsets = [16, 0], sizes = [8, 32], strides = [1, 1]} : vector<64x32xf32> to vector<8x32xf32>
    %115 = arith.addf %114, %111 : vector<8x32xf32>
    %cst_58 = arith.constant 5.000000e-01 : f32
    %116 = vector.broadcast %cst_58 : f32 to vector<8x32xf32>
    %117 = arith.mulf %116, %115 : vector<8x32xf32>
    %118 = math.tanh %117 : vector<8x32xf32>
    %cst_59 = arith.constant 5.000000e-01 : f32
    %119 = vector.broadcast %cst_59 : f32 to vector<8x32xf32>
    %120 = arith.mulf %119, %118 : vector<8x32xf32>
    %cst_60 = arith.constant 5.000000e-01 : f32
    %121 = vector.broadcast %cst_60 : f32 to vector<8x32xf32>
    %122 = arith.addf %120, %121 : vector<8x32xf32>
    %123 = vector.extract_strided_slice %41 {offsets = [16, 0], sizes = [8, 32], strides = [1, 1]} : vector<64x32xf32> to vector<8x32xf32>
    %124 = arith.addf %123, %112 : vector<8x32xf32>
    %cst_61 = arith.constant 5.000000e-01 : f32
    %125 = vector.broadcast %cst_61 : f32 to vector<8x32xf32>
    %126 = arith.mulf %125, %124 : vector<8x32xf32>
    %127 = math.tanh %126 : vector<8x32xf32>
    %cst_62 = arith.constant 5.000000e-01 : f32
    %128 = vector.broadcast %cst_62 : f32 to vector<8x32xf32>
    %129 = arith.mulf %128, %127 : vector<8x32xf32>
    %cst_63 = arith.constant 5.000000e-01 : f32
    %130 = vector.broadcast %cst_63 : f32 to vector<8x32xf32>
    %131 = arith.addf %129, %130 : vector<8x32xf32>
    %132 = vector.extract_strided_slice %46 {offsets = [16, 0], sizes = [8, 32], strides = [1, 1]} : vector<64x32xf32> to vector<8x32xf32>
    %133 = arith.addf %113, %52 : vector<8x32xf32>
    %134 = arith.mulf %122, %133 : vector<8x32xf32>
    %135 = arith.addf %132, %134 : vector<8x32xf32>
    %136 = math.tanh %135 : vector<8x32xf32>
    %137 = arith.subf %110, %136 : vector<8x32xf32>
    %138 = arith.mulf %131, %137 : vector<8x32xf32>
    %139 = arith.addf %136, %138 : vector<8x32xf32>
    %cst_64 = arith.constant dense<0.000000e+00> : vector<8x32xf32>
    %140 = tpu.matmul %139, %47, %cst_64 {dimension_numbers = #tpu.dot_dimension_numbers<[1], [0], [0], [1], [0, 0, 1, 1], [], []>} : vector<8x32xf32>, vector<32x32xf32>, vector<8x32xf32> -> vector<8x32xf32>
    %cst_65 = arith.constant dense<0.000000e+00> : vector<8x32xf32>
    %141 = tpu.matmul %139, %48, %cst_65 {dimension_numbers = #tpu.dot_dimension_numbers<[1], [0], [0], [1], [0, 0, 1, 1], [], []>} : vector<8x32xf32>, vector<32x32xf32>, vector<8x32xf32> -> vector<8x32xf32>
    %cst_66 = arith.constant dense<0.000000e+00> : vector<8x32xf32>
    %142 = tpu.matmul %139, %49, %cst_66 {dimension_numbers = #tpu.dot_dimension_numbers<[1], [0], [0], [1], [0, 0, 1, 1], [], []>} : vector<8x32xf32>, vector<32x32xf32>, vector<8x32xf32> -> vector<8x32xf32>
    %143 = vector.extract_strided_slice %36 {offsets = [24, 0], sizes = [8, 32], strides = [1, 1]} : vector<64x32xf32> to vector<8x32xf32>
    %144 = arith.addf %143, %140 : vector<8x32xf32>
    %cst_67 = arith.constant 5.000000e-01 : f32
    %145 = vector.broadcast %cst_67 : f32 to vector<8x32xf32>
    %146 = arith.mulf %145, %144 : vector<8x32xf32>
    %147 = math.tanh %146 : vector<8x32xf32>
    %cst_68 = arith.constant 5.000000e-01 : f32
    %148 = vector.broadcast %cst_68 : f32 to vector<8x32xf32>
    %149 = arith.mulf %148, %147 : vector<8x32xf32>
    %cst_69 = arith.constant 5.000000e-01 : f32
    %150 = vector.broadcast %cst_69 : f32 to vector<8x32xf32>
    %151 = arith.addf %149, %150 : vector<8x32xf32>
    %152 = vector.extract_strided_slice %41 {offsets = [24, 0], sizes = [8, 32], strides = [1, 1]} : vector<64x32xf32> to vector<8x32xf32>
    %153 = arith.addf %152, %141 : vector<8x32xf32>
    %cst_70 = arith.constant 5.000000e-01 : f32
    %154 = vector.broadcast %cst_70 : f32 to vector<8x32xf32>
    %155 = arith.mulf %154, %153 : vector<8x32xf32>
    %156 = math.tanh %155 : vector<8x32xf32>
    %cst_71 = arith.constant 5.000000e-01 : f32
    %157 = vector.broadcast %cst_71 : f32 to vector<8x32xf32>
    %158 = arith.mulf %157, %156 : vector<8x32xf32>
    %cst_72 = arith.constant 5.000000e-01 : f32
    %159 = vector.broadcast %cst_72 : f32 to vector<8x32xf32>
    %160 = arith.addf %158, %159 : vector<8x32xf32>
    %161 = vector.extract_strided_slice %46 {offsets = [24, 0], sizes = [8, 32], strides = [1, 1]} : vector<64x32xf32> to vector<8x32xf32>
    %162 = arith.addf %142, %52 : vector<8x32xf32>
    %163 = arith.mulf %151, %162 : vector<8x32xf32>
    %164 = arith.addf %161, %163 : vector<8x32xf32>
    %165 = math.tanh %164 : vector<8x32xf32>
    %166 = arith.subf %139, %165 : vector<8x32xf32>
    %167 = arith.mulf %160, %166 : vector<8x32xf32>
    %168 = arith.addf %165, %167 : vector<8x32xf32>
    %cst_73 = arith.constant dense<0.000000e+00> : vector<8x32xf32>
    %169 = tpu.matmul %168, %47, %cst_73 {dimension_numbers = #tpu.dot_dimension_numbers<[1], [0], [0], [1], [0, 0, 1, 1], [], []>} : vector<8x32xf32>, vector<32x32xf32>, vector<8x32xf32> -> vector<8x32xf32>
    %cst_74 = arith.constant dense<0.000000e+00> : vector<8x32xf32>
    %170 = tpu.matmul %168, %48, %cst_74 {dimension_numbers = #tpu.dot_dimension_numbers<[1], [0], [0], [1], [0, 0, 1, 1], [], []>} : vector<8x32xf32>, vector<32x32xf32>, vector<8x32xf32> -> vector<8x32xf32>
    %cst_75 = arith.constant dense<0.000000e+00> : vector<8x32xf32>
    %171 = tpu.matmul %168, %49, %cst_75 {dimension_numbers = #tpu.dot_dimension_numbers<[1], [0], [0], [1], [0, 0, 1, 1], [], []>} : vector<8x32xf32>, vector<32x32xf32>, vector<8x32xf32> -> vector<8x32xf32>
    %172 = vector.extract_strided_slice %36 {offsets = [32, 0], sizes = [8, 32], strides = [1, 1]} : vector<64x32xf32> to vector<8x32xf32>
    %173 = arith.addf %172, %169 : vector<8x32xf32>
    %cst_76 = arith.constant 5.000000e-01 : f32
    %174 = vector.broadcast %cst_76 : f32 to vector<8x32xf32>
    %175 = arith.mulf %174, %173 : vector<8x32xf32>
    %176 = math.tanh %175 : vector<8x32xf32>
    %cst_77 = arith.constant 5.000000e-01 : f32
    %177 = vector.broadcast %cst_77 : f32 to vector<8x32xf32>
    %178 = arith.mulf %177, %176 : vector<8x32xf32>
    %cst_78 = arith.constant 5.000000e-01 : f32
    %179 = vector.broadcast %cst_78 : f32 to vector<8x32xf32>
    %180 = arith.addf %178, %179 : vector<8x32xf32>
    %181 = vector.extract_strided_slice %41 {offsets = [32, 0], sizes = [8, 32], strides = [1, 1]} : vector<64x32xf32> to vector<8x32xf32>
    %182 = arith.addf %181, %170 : vector<8x32xf32>
    %cst_79 = arith.constant 5.000000e-01 : f32
    %183 = vector.broadcast %cst_79 : f32 to vector<8x32xf32>
    %184 = arith.mulf %183, %182 : vector<8x32xf32>
    %185 = math.tanh %184 : vector<8x32xf32>
    %cst_80 = arith.constant 5.000000e-01 : f32
    %186 = vector.broadcast %cst_80 : f32 to vector<8x32xf32>
    %187 = arith.mulf %186, %185 : vector<8x32xf32>
    %cst_81 = arith.constant 5.000000e-01 : f32
    %188 = vector.broadcast %cst_81 : f32 to vector<8x32xf32>
    %189 = arith.addf %187, %188 : vector<8x32xf32>
    %190 = vector.extract_strided_slice %46 {offsets = [32, 0], sizes = [8, 32], strides = [1, 1]} : vector<64x32xf32> to vector<8x32xf32>
    %191 = arith.addf %171, %52 : vector<8x32xf32>
    %192 = arith.mulf %180, %191 : vector<8x32xf32>
    %193 = arith.addf %190, %192 : vector<8x32xf32>
    %194 = math.tanh %193 : vector<8x32xf32>
    %195 = arith.subf %168, %194 : vector<8x32xf32>
    %196 = arith.mulf %189, %195 : vector<8x32xf32>
    %197 = arith.addf %194, %196 : vector<8x32xf32>
    %cst_82 = arith.constant dense<0.000000e+00> : vector<8x32xf32>
    %198 = tpu.matmul %197, %47, %cst_82 {dimension_numbers = #tpu.dot_dimension_numbers<[1], [0], [0], [1], [0, 0, 1, 1], [], []>} : vector<8x32xf32>, vector<32x32xf32>, vector<8x32xf32> -> vector<8x32xf32>
    %cst_83 = arith.constant dense<0.000000e+00> : vector<8x32xf32>
    %199 = tpu.matmul %197, %48, %cst_83 {dimension_numbers = #tpu.dot_dimension_numbers<[1], [0], [0], [1], [0, 0, 1, 1], [], []>} : vector<8x32xf32>, vector<32x32xf32>, vector<8x32xf32> -> vector<8x32xf32>
    %cst_84 = arith.constant dense<0.000000e+00> : vector<8x32xf32>
    %200 = tpu.matmul %197, %49, %cst_84 {dimension_numbers = #tpu.dot_dimension_numbers<[1], [0], [0], [1], [0, 0, 1, 1], [], []>} : vector<8x32xf32>, vector<32x32xf32>, vector<8x32xf32> -> vector<8x32xf32>
    %201 = vector.extract_strided_slice %36 {offsets = [40, 0], sizes = [8, 32], strides = [1, 1]} : vector<64x32xf32> to vector<8x32xf32>
    %202 = arith.addf %201, %198 : vector<8x32xf32>
    %cst_85 = arith.constant 5.000000e-01 : f32
    %203 = vector.broadcast %cst_85 : f32 to vector<8x32xf32>
    %204 = arith.mulf %203, %202 : vector<8x32xf32>
    %205 = math.tanh %204 : vector<8x32xf32>
    %cst_86 = arith.constant 5.000000e-01 : f32
    %206 = vector.broadcast %cst_86 : f32 to vector<8x32xf32>
    %207 = arith.mulf %206, %205 : vector<8x32xf32>
    %cst_87 = arith.constant 5.000000e-01 : f32
    %208 = vector.broadcast %cst_87 : f32 to vector<8x32xf32>
    %209 = arith.addf %207, %208 : vector<8x32xf32>
    %210 = vector.extract_strided_slice %41 {offsets = [40, 0], sizes = [8, 32], strides = [1, 1]} : vector<64x32xf32> to vector<8x32xf32>
    %211 = arith.addf %210, %199 : vector<8x32xf32>
    %cst_88 = arith.constant 5.000000e-01 : f32
    %212 = vector.broadcast %cst_88 : f32 to vector<8x32xf32>
    %213 = arith.mulf %212, %211 : vector<8x32xf32>
    %214 = math.tanh %213 : vector<8x32xf32>
    %cst_89 = arith.constant 5.000000e-01 : f32
    %215 = vector.broadcast %cst_89 : f32 to vector<8x32xf32>
    %216 = arith.mulf %215, %214 : vector<8x32xf32>
    %cst_90 = arith.constant 5.000000e-01 : f32
    %217 = vector.broadcast %cst_90 : f32 to vector<8x32xf32>
    %218 = arith.addf %216, %217 : vector<8x32xf32>
    %219 = vector.extract_strided_slice %46 {offsets = [40, 0], sizes = [8, 32], strides = [1, 1]} : vector<64x32xf32> to vector<8x32xf32>
    %220 = arith.addf %200, %52 : vector<8x32xf32>
    %221 = arith.mulf %209, %220 : vector<8x32xf32>
    %222 = arith.addf %219, %221 : vector<8x32xf32>
    %223 = math.tanh %222 : vector<8x32xf32>
    %224 = arith.subf %197, %223 : vector<8x32xf32>
    %225 = arith.mulf %218, %224 : vector<8x32xf32>
    %226 = arith.addf %223, %225 : vector<8x32xf32>
    %cst_91 = arith.constant dense<0.000000e+00> : vector<8x32xf32>
    %227 = tpu.matmul %226, %47, %cst_91 {dimension_numbers = #tpu.dot_dimension_numbers<[1], [0], [0], [1], [0, 0, 1, 1], [], []>} : vector<8x32xf32>, vector<32x32xf32>, vector<8x32xf32> -> vector<8x32xf32>
    %cst_92 = arith.constant dense<0.000000e+00> : vector<8x32xf32>
    %228 = tpu.matmul %226, %48, %cst_92 {dimension_numbers = #tpu.dot_dimension_numbers<[1], [0], [0], [1], [0, 0, 1, 1], [], []>} : vector<8x32xf32>, vector<32x32xf32>, vector<8x32xf32> -> vector<8x32xf32>
    %cst_93 = arith.constant dense<0.000000e+00> : vector<8x32xf32>
    %229 = tpu.matmul %226, %49, %cst_93 {dimension_numbers = #tpu.dot_dimension_numbers<[1], [0], [0], [1], [0, 0, 1, 1], [], []>} : vector<8x32xf32>, vector<32x32xf32>, vector<8x32xf32> -> vector<8x32xf32>
    %230 = vector.extract_strided_slice %36 {offsets = [48, 0], sizes = [8, 32], strides = [1, 1]} : vector<64x32xf32> to vector<8x32xf32>
    %231 = arith.addf %230, %227 : vector<8x32xf32>
    %cst_94 = arith.constant 5.000000e-01 : f32
    %232 = vector.broadcast %cst_94 : f32 to vector<8x32xf32>
    %233 = arith.mulf %232, %231 : vector<8x32xf32>
    %234 = math.tanh %233 : vector<8x32xf32>
    %cst_95 = arith.constant 5.000000e-01 : f32
    %235 = vector.broadcast %cst_95 : f32 to vector<8x32xf32>
    %236 = arith.mulf %235, %234 : vector<8x32xf32>
    %cst_96 = arith.constant 5.000000e-01 : f32
    %237 = vector.broadcast %cst_96 : f32 to vector<8x32xf32>
    %238 = arith.addf %236, %237 : vector<8x32xf32>
    %239 = vector.extract_strided_slice %41 {offsets = [48, 0], sizes = [8, 32], strides = [1, 1]} : vector<64x32xf32> to vector<8x32xf32>
    %240 = arith.addf %239, %228 : vector<8x32xf32>
    %cst_97 = arith.constant 5.000000e-01 : f32
    %241 = vector.broadcast %cst_97 : f32 to vector<8x32xf32>
    %242 = arith.mulf %241, %240 : vector<8x32xf32>
    %243 = math.tanh %242 : vector<8x32xf32>
    %cst_98 = arith.constant 5.000000e-01 : f32
    %244 = vector.broadcast %cst_98 : f32 to vector<8x32xf32>
    %245 = arith.mulf %244, %243 : vector<8x32xf32>
    %cst_99 = arith.constant 5.000000e-01 : f32
    %246 = vector.broadcast %cst_99 : f32 to vector<8x32xf32>
    %247 = arith.addf %245, %246 : vector<8x32xf32>
    %248 = vector.extract_strided_slice %46 {offsets = [48, 0], sizes = [8, 32], strides = [1, 1]} : vector<64x32xf32> to vector<8x32xf32>
    %249 = arith.addf %229, %52 : vector<8x32xf32>
    %250 = arith.mulf %238, %249 : vector<8x32xf32>
    %251 = arith.addf %248, %250 : vector<8x32xf32>
    %252 = math.tanh %251 : vector<8x32xf32>
    %253 = arith.subf %226, %252 : vector<8x32xf32>
    %254 = arith.mulf %247, %253 : vector<8x32xf32>
    %255 = arith.addf %252, %254 : vector<8x32xf32>
    %cst_100 = arith.constant dense<0.000000e+00> : vector<8x32xf32>
    %256 = tpu.matmul %255, %47, %cst_100 {dimension_numbers = #tpu.dot_dimension_numbers<[1], [0], [0], [1], [0, 0, 1, 1], [], []>} : vector<8x32xf32>, vector<32x32xf32>, vector<8x32xf32> -> vector<8x32xf32>
    %cst_101 = arith.constant dense<0.000000e+00> : vector<8x32xf32>
    %257 = tpu.matmul %255, %48, %cst_101 {dimension_numbers = #tpu.dot_dimension_numbers<[1], [0], [0], [1], [0, 0, 1, 1], [], []>} : vector<8x32xf32>, vector<32x32xf32>, vector<8x32xf32> -> vector<8x32xf32>
    %cst_102 = arith.constant dense<0.000000e+00> : vector<8x32xf32>
    %258 = tpu.matmul %255, %49, %cst_102 {dimension_numbers = #tpu.dot_dimension_numbers<[1], [0], [0], [1], [0, 0, 1, 1], [], []>} : vector<8x32xf32>, vector<32x32xf32>, vector<8x32xf32> -> vector<8x32xf32>
    %259 = vector.extract_strided_slice %36 {offsets = [56, 0], sizes = [8, 32], strides = [1, 1]} : vector<64x32xf32> to vector<8x32xf32>
    %260 = arith.addf %259, %256 : vector<8x32xf32>
    %cst_103 = arith.constant 5.000000e-01 : f32
    %261 = vector.broadcast %cst_103 : f32 to vector<8x32xf32>
    %262 = arith.mulf %261, %260 : vector<8x32xf32>
    %263 = math.tanh %262 : vector<8x32xf32>
    %cst_104 = arith.constant 5.000000e-01 : f32
    %264 = vector.broadcast %cst_104 : f32 to vector<8x32xf32>
    %265 = arith.mulf %264, %263 : vector<8x32xf32>
    %cst_105 = arith.constant 5.000000e-01 : f32
    %266 = vector.broadcast %cst_105 : f32 to vector<8x32xf32>
    %267 = arith.addf %265, %266 : vector<8x32xf32>
    %268 = vector.extract_strided_slice %41 {offsets = [56, 0], sizes = [8, 32], strides = [1, 1]} : vector<64x32xf32> to vector<8x32xf32>
    %269 = arith.addf %268, %257 : vector<8x32xf32>
    %cst_106 = arith.constant 5.000000e-01 : f32
    %270 = vector.broadcast %cst_106 : f32 to vector<8x32xf32>
    %271 = arith.mulf %270, %269 : vector<8x32xf32>
    %272 = math.tanh %271 : vector<8x32xf32>
    %cst_107 = arith.constant 5.000000e-01 : f32
    %273 = vector.broadcast %cst_107 : f32 to vector<8x32xf32>
    %274 = arith.mulf %273, %272 : vector<8x32xf32>
    %cst_108 = arith.constant 5.000000e-01 : f32
    %275 = vector.broadcast %cst_108 : f32 to vector<8x32xf32>
    %276 = arith.addf %274, %275 : vector<8x32xf32>
    %277 = vector.extract_strided_slice %46 {offsets = [56, 0], sizes = [8, 32], strides = [1, 1]} : vector<64x32xf32> to vector<8x32xf32>
    %278 = arith.addf %258, %52 : vector<8x32xf32>
    %279 = arith.mulf %267, %278 : vector<8x32xf32>
    %280 = arith.addf %277, %279 : vector<8x32xf32>
    %281 = math.tanh %280 : vector<8x32xf32>
    %282 = arith.subf %255, %281 : vector<8x32xf32>
    %283 = arith.mulf %276, %282 : vector<8x32xf32>
    %284 = arith.addf %281, %283 : vector<8x32xf32>
    %c0_109 = arith.constant 0 : index
    %c0_110 = arith.constant 0 : index
    %285 = vector.load %arg15[%c0_109, %c0_110] : memref<32x4xf32, #tpu.memory_space<vmem>>, vector<32x4xf32>
    %cst_111 = arith.constant dense<0.000000e+00> : vector<8x4xf32>
    %286 = tpu.matmul %284, %285, %cst_111 {dimension_numbers = #tpu.dot_dimension_numbers<[1], [0], [0], [1], [0, 0, 1, 1], [], []>} : vector<8x32xf32>, vector<32x4xf32>, vector<8x4xf32> -> vector<8x4xf32>
    %c0_112 = arith.constant 0 : index
    %c0_113 = arith.constant 0 : index
    %287 = vector.load %arg16[%c0_112, %c0_113] : memref<1x4xf32, #tpu.memory_space<vmem>>, vector<1x4xf32>
    %288 = vector.broadcast %287 : vector<1x4xf32> to vector<8x4xf32>
    %289 = arith.addf %286, %288 : vector<8x4xf32>
    %290 = arith.mulf %289, %23 : vector<8x4xf32>
    %291 = arith.addf %290, %24 : vector<8x4xf32>
    %c7 = arith.constant 7 : index
    %c0_114 = arith.constant 0 : index
    %c0_115 = arith.constant 0 : index
    %292 = vector.load %arg1[%c7, %c0_114, %c0_115] : memref<8x8x4xf32, #tpu.memory_space<vmem>>, vector<1x8x4xf32>
    %293 = vector.shape_cast %292 : vector<1x8x4xf32> to vector<8x4xf32>
    %c0_116 = arith.constant 0 : index
    %c0_117 = arith.constant 0 : index
    %294 = vector.load %arg17[%c0_116, %c0_117] : memref<4x4xf32, #tpu.memory_space<vmem>>, vector<4x4xf32>
    %cst_118 = arith.constant dense<0.000000e+00> : vector<8x4xf32>
    %295 = tpu.matmul %291, %294, %cst_118 {dimension_numbers = #tpu.dot_dimension_numbers<[1], [0], [0], [1], [0, 0, 1, 1], [], []>} : vector<8x4xf32>, vector<4x4xf32>, vector<8x4xf32> -> vector<8x4xf32>
    %c0_119 = arith.constant 0 : index
    %c0_120 = arith.constant 0 : index
    %296 = vector.load %arg18[%c0_119, %c0_120] : memref<4x4xf32, #tpu.memory_space<vmem>>, vector<4x4xf32>
    %cst_121 = arith.constant dense<0.000000e+00> : vector<8x4xf32>
    %297 = tpu.matmul %293, %296, %cst_121 {dimension_numbers = #tpu.dot_dimension_numbers<[1], [0], [0], [1], [0, 0, 1, 1], [], []>} : vector<8x4xf32>, vector<4x4xf32>, vector<8x4xf32> -> vector<8x4xf32>
    %298 = arith.addf %295, %297 : vector<8x4xf32>
    %c0_122 = arith.constant 0 : index
    %c0_123 = arith.constant 0 : index
    %299 = vector.load %arg19[%c0_122, %c0_123] : memref<1x4xf32, #tpu.memory_space<vmem>>, vector<1x4xf32>
    %300 = vector.broadcast %299 : vector<1x4xf32> to vector<8x4xf32>
    %301 = arith.addf %298, %300 : vector<8x4xf32>
    %302 = arith.addf %293, %301 : vector<8x4xf32>
    %303 = arith.subf %302, %291 : vector<8x4xf32>
    %cst_124 = arith.constant 0.000000e+00 : f32
    %304 = vector.broadcast %cst_124 : f32 to vector<8x4xf32>
    %305 = arith.maximumf %303, %304 : vector<8x4xf32>
    %c0_125 = arith.constant 0 : index
    %c0_126 = arith.constant 0 : index
    %306 = vector.load %arg20[%c0_125, %c0_126] : memref<8x4xf32, #tpu.memory_space<vmem>>, vector<8x4xf32>
    tpu.vector_store %arg20[%c0_125, %c0_126], %305 {strides = array<i32>} : memref<8x4xf32, #tpu.memory_space<vmem>>, vector<8x4xf32>,
    return
  }
  func.func @transform_0(%arg0: i32) -> (i32, i32, i32) {
    %c0_i32 = arith.constant 0 : i32
    %c0_i32_0 = arith.constant 0 : i32
    %c0_i32_1 = arith.constant 0 : i32
    return %c0_i32, %arg0, %c0_i32_0 : i32, i32, i32
  }
  func.func @transform_1(%arg0: i32) -> (i32, i32) {
    %c0_i32 = arith.constant 0 : i32
    %c0_i32_0 = arith.constant 0 : i32
    return %arg0, %c0_i32 : i32, i32
  }
  func.func @transform_2(%arg0: i32) -> (i32, i32) {
    %c0_i32 = arith.constant 0 : i32
    %c0_i32_0 = arith.constant 0 : i32
    %c0_i32_1 = arith.constant 0 : i32
    return %c0_i32, %c0_i32_0 : i32, i32
  }
  func.func @transform_3(%arg0: i32) -> (i32, i32) {
    %c0_i32 = arith.constant 0 : i32
    %c0_i32_0 = arith.constant 0 : i32
    %c0_i32_1 = arith.constant 0 : i32
    return %c0_i32, %c0_i32_0 : i32, i32
  }
  func.func @transform_4(%arg0: i32) -> (i32, i32) {
    %c0_i32 = arith.constant 0 : i32
    %c0_i32_0 = arith.constant 0 : i32
    %c0_i32_1 = arith.constant 0 : i32
    return %c0_i32, %c0_i32_0 : i32, i32
  }
  func.func @transform_5(%arg0: i32) -> (i32, i32) {
    %c0_i32 = arith.constant 0 : i32
    %c0_i32_0 = arith.constant 0 : i32
    %c0_i32_1 = arith.constant 0 : i32
    return %c0_i32, %c0_i32_0 : i32, i32
  }
  func.func @transform_6(%arg0: i32) -> (i32, i32) {
    %c0_i32 = arith.constant 0 : i32
    %c0_i32_0 = arith.constant 0 : i32
    %c0_i32_1 = arith.constant 0 : i32
    return %c0_i32, %c0_i32_0 : i32, i32
  }
  func.func @transform_7(%arg0: i32) -> (i32, i32) {
    %c0_i32 = arith.constant 0 : i32
    %c0_i32_0 = arith.constant 0 : i32
    %c0_i32_1 = arith.constant 0 : i32
    return %c0_i32, %c0_i32_0 : i32, i32
  }
  func.func @transform_8(%arg0: i32) -> (i32, i32) {
    %c0_i32 = arith.constant 0 : i32
    %c0_i32_0 = arith.constant 0 : i32
    %c0_i32_1 = arith.constant 0 : i32
    return %c0_i32, %c0_i32_0 : i32, i32
  }
  func.func @transform_9(%arg0: i32) -> (i32, i32) {
    %c0_i32 = arith.constant 0 : i32
    %c0_i32_0 = arith.constant 0 : i32
    %c0_i32_1 = arith.constant 0 : i32
    return %c0_i32, %c0_i32_0 : i32, i32
  }
  func.func @transform_10(%arg0: i32) -> (i32, i32) {
    %c0_i32 = arith.constant 0 : i32
    %c0_i32_0 = arith.constant 0 : i32
    %c0_i32_1 = arith.constant 0 : i32
    return %c0_i32, %c0_i32_0 : i32, i32
  }
  func.func @transform_11(%arg0: i32) -> (i32, i32) {
    %c0_i32 = arith.constant 0 : i32
    %c0_i32_0 = arith.constant 0 : i32
    %c0_i32_1 = arith.constant 0 : i32
    return %c0_i32, %c0_i32_0 : i32, i32
  }
  func.func @transform_12(%arg0: i32) -> (i32, i32) {
    %c0_i32 = arith.constant 0 : i32
    %c0_i32_0 = arith.constant 0 : i32
    %c0_i32_1 = arith.constant 0 : i32
    return %c0_i32, %c0_i32_0 : i32, i32
  }
  func.func @transform_13(%arg0: i32) -> (i32, i32) {
    %c0_i32 = arith.constant 0 : i32
    %c0_i32_0 = arith.constant 0 : i32
    %c0_i32_1 = arith.constant 0 : i32
    return %c0_i32, %c0_i32_0 : i32, i32
  }
  func.func @transform_14(%arg0: i32) -> (i32, i32) {
    %c0_i32 = arith.constant 0 : i32
    %c0_i32_0 = arith.constant 0 : i32
    %c0_i32_1 = arith.constant 0 : i32
    return %c0_i32, %c0_i32_0 : i32, i32
  }
  func.func @transform_15(%arg0: i32) -> (i32, i32) {
    %c0_i32 = arith.constant 0 : i32
    %c0_i32_0 = arith.constant 0 : i32
    %c0_i32_1 = arith.constant 0 : i32
    return %c0_i32, %c0_i32_0 : i32, i32
  }
  func.func @transform_16(%arg0: i32) -> (i32, i32) {
    %c0_i32 = arith.constant 0 : i32
    %c0_i32_0 = arith.constant 0 : i32
    %c0_i32_1 = arith.constant 0 : i32
    return %c0_i32, %c0_i32_0 : i32, i32
  }
  func.func @transform_17(%arg0: i32) -> (i32, i32) {
    %c0_i32 = arith.constant 0 : i32
    %c0_i32_0 = arith.constant 0 : i32
    %c0_i32_1 = arith.constant 0 : i32
    return %c0_i32, %c0_i32_0 : i32, i32
  }
  func.func @transform_18(%arg0: i32) -> (i32, i32) {
    %c0_i32 = arith.constant 0 : i32
    %c0_i32_0 = arith.constant 0 : i32
    %c0_i32_1 = arith.constant 0 : i32
    return %c0_i32, %c0_i32_0 : i32, i32
  }
  func.func @transform_19(%arg0: i32) -> (i32, i32) {
    %c0_i32 = arith.constant 0 : i32
    %c0_i32_0 = arith.constant 0 : i32
    return %arg0, %c0_i32 : i32, i32
  }
}

</mosaic_0001>

<llo_original>
// kernel: tpu_custom_call.1
$region0: #{tpu_custom_call.1}
  #allocation0 [shape = 'u32[]', space=smem, size = 0x4, offset = 0x4, fixed_abs, tag = 'smem constant byte address 0x4 - core index']
  #allocation1 [shape = 'u32[144,128]{1,0:T(1,128)}', space=vmem, size = 0x12000, scoped, tag = 'internal scratch']
  %s0 = inlined_call_operand.vmem [shape: f32[8,8,4], index: 0, kind: input, shape index: {}]
  %s1 = inlined_call_operand.hbm [shape: f32[8,32], index: 1, kind: input, shape index: {}]
  %s2 = inlined_call_operand.vmem [shape: f32[32,32], index: 2, kind: input, shape index: {}]
  %s3 = inlined_call_operand.vmem [shape: f32[1,32], index: 3, kind: input, shape index: {}]
  %s4 = inlined_call_operand.hbm [shape: f32[4,32], index: 4, kind: input, shape index: {}]
  %s5 = inlined_call_operand.hbm [shape: f32[4,32], index: 5, kind: input, shape index: {}]
  %s6 = inlined_call_operand.hbm [shape: f32[4,32], index: 6, kind: input, shape index: {}]
  %s7 = inlined_call_operand.hbm [shape: f32[1,32], index: 7, kind: input, shape index: {}]
  %s8 = inlined_call_operand.hbm [shape: f32[1,32], index: 8, kind: input, shape index: {}]
  %s9 = inlined_call_operand.hbm [shape: f32[1,32], index: 9, kind: input, shape index: {}]
  %s10 = inlined_call_operand.vmem [shape: f32[32,32], index: 10, kind: input, shape index: {}]
  %s11 = inlined_call_operand.vmem [shape: f32[32,32], index: 11, kind: input, shape index: {}]
  %s12 = inlined_call_operand.vmem [shape: f32[32,32], index: 12, kind: input, shape index: {}]
  %s13 = inlined_call_operand.vmem [shape: f32[1,32], index: 13, kind: input, shape index: {}]
  %s14 = inlined_call_operand.vmem [shape: f32[32,4], index: 14, kind: input, shape index: {}]
  %s15 = inlined_call_operand.vmem [shape: f32[1,4], index: 15, kind: input, shape index: {}]
  %s16 = inlined_call_operand.vmem [shape: f32[4,4], index: 16, kind: input, shape index: {}]
  %s17 = inlined_call_operand.vmem [shape: f32[4,4], index: 17, kind: input, shape index: {}]
  %s18 = inlined_call_operand.vmem [shape: f32[1,4], index: 18, kind: input, shape index: {}]
  %s19 = inlined_call_operand.vmem [shape: f32[8,4], index: 19, kind: output, shape index: {}]
  %s20 = sld [smem:[#allocation0]]
  $region114: #{tpu_custom_call.1} parent=0
    _
  %s22 = ssub.s32 1, %s20
  %s23 = scalar_select 0, %s22, %s20
  $region1: #{tpu_custom_call.1} parent=0
    #allocation2 [shape = 'u8[4096]{0}', space=vmem, size = 0x1000, scoped, tag = 'input window, operand 1, single buffered']
    #allocation3 [shape = 's32[1]{0}', space=sflag, size = 0x4, scoped, tag = 'scoped memory for tpu_custom_call.1']
    #allocation4 [shape = 'u8[2048]{0}', space=vmem, size = 0x800, scoped, tag = 'input window, operand 4, single buffered']
    #allocation5 [shape = 's32[1]{0}', space=sflag, size = 0x4, scoped, tag = 'scoped memory for tpu_custom_call.1']
    #allocation6 [shape = 'u8[2048]{0}', space=vmem, size = 0x800, scoped, tag = 'input window, operand 5, single buffered']
    #allocation7 [shape = 'u8[2048]{0}', space=vmem, size = 0x800, scoped, tag = 'input window, operand 6, single buffered']
    #allocation8 [shape = 's32[1]{0}', space=sflag, size = 0x4, scoped, tag = 'scoped memory for tpu_custom_call.1']
    #allocation9 [shape = 'u8[512]{0}', space=vmem, size = 0x400, scoped, tag = 'input window, operand 7, single buffered']
    #allocation10 [shape = 'u8[512]{0}', space=vmem, size = 0x400, scoped, tag = 'input window, operand 8, single buffered']
    #allocation11 [shape = 's32[1]{0}', space=sflag, size = 0x4, scoped, tag = 'scoped memory for tpu_custom_call.1']
    #allocation12 [shape = 'u8[512]{0}', space=vmem, size = 0x400, scoped, tag = 'input window, operand 9, single buffered']
    %24 = vsyncpa [#allocation3], 0
    %25 = vsyncpa [#allocation5], 0
    %26 = vsyncpa [#allocation8], 0
    %27 = vsyncpa [#allocation11], 0
    // Predicated region
    $region2: #{tpu_custom_call.1} parent=1 // pred_check
      _
    $region3: #{tpu_custom_call.1} parent=1 // pred_check_branch
      %29 = sbr.rel (0) target = $region5
    $region4: #{tpu_custom_call.1} parent=1 // pred_region
      _
    $region5: #{tpu_custom_call.1} parent=1 // pred_fallthru
      _
    // Predicated region
    $region6: #{tpu_custom_call.1} parent=1 // pred_check
      _
    $region7: #{tpu_custom_call.1} parent=1 // pred_check_branch
      %31 = sbr.rel (0) target = $region9
    $region8: #{tpu_custom_call.1} parent=1 // pred_region
      %s33 = ssub.s32 128, 128
      %34 = vsyncadd [#allocation3], %s33
      %s36 = sshll.u32 [#allocation2], 4
      %s37 = int_to_ptr.vmem [resolvable:$true] %s36
      %39 = dma.hbm_to_vmem [thread:$0]  %s1, 128, %s37, [#allocation3]
    $region9: #{tpu_custom_call.1} parent=1 // pred_fallthru
      _
    // Predicated region
    $region10: #{tpu_custom_call.1} parent=1 // pred_check
      _
    $region11: #{tpu_custom_call.1} parent=1 // pred_check_branch
      %41 = sbr.rel (0) target = $region13
    $region12: #{tpu_custom_call.1} parent=1 // pred_region
      _
    $region13: #{tpu_custom_call.1} parent=1 // pred_fallthru
      _
    // Predicated region
    $region14: #{tpu_custom_call.1} parent=1 // pred_check
      _
    $region15: #{tpu_custom_call.1} parent=1 // pred_check_branch
      %43 = sbr.rel (0) target = $region17
    $region16: #{tpu_custom_call.1} parent=1 // pred_region
      _
    $region17: #{tpu_custom_call.1} parent=1 // pred_fallthru
      _
    // Predicated region
    $region18: #{tpu_custom_call.1} parent=1 // pred_check
      _
    $region19: #{tpu_custom_call.1} parent=1 // pred_check_branch
      %45 = sbr.rel (0) target = $region21
    $region20: #{tpu_custom_call.1} parent=1 // pred_region
      %s47 = ssub.s32 64, 64
      %48 = vsyncadd [#allocation5], %s47
      %s50 = sshll.u32 [#allocation4], 4
      %s51 = int_to_ptr.vmem [resolvable:$true] %s50
      %53 = dma.hbm_to_vmem [thread:$0]  %s4, 64, %s51, [#allocation5]
    $region21: #{tpu_custom_call.1} parent=1 // pred_fallthru
      _
    // Predicated region
    $region22: #{tpu_custom_call.1} parent=1 // pred_check
      _
    $region23: #{tpu_custom_call.1} parent=1 // pred_check_branch
      %55 = sbr.rel (0) target = $region25
    $region24: #{tpu_custom_call.1} parent=1 // pred_region
      %s57 = ssub.s32 64, 64
      %58 = vsyncadd [#allocation5], %s57
      %s60 = sshll.u32 [#allocation6], 4
      %s61 = int_to_ptr.vmem [resolvable:$true] %s60
      %63 = dma.hbm_to_vmem [thread:$0]  %s5, 64, %s61, [#allocation5]
    $region25: #{tpu_custom_call.1} parent=1 // pred_fallthru
      _
    // Predicated region
    $region26: #{tpu_custom_call.1} parent=1 // pred_check
      _
    $region27: #{tpu_custom_call.1} parent=1 // pred_check_branch
      %65 = sbr.rel (0) target = $region29
    $region28: #{tpu_custom_call.1} parent=1 // pred_region
      %s67 = ssub.s32 64, 64
      %68 = vsyncadd [#allocation8], %s67
      %s70 = sshll.u32 [#allocation7], 4
      %s71 = int_to_ptr.vmem [resolvable:$true] %s70
      %73 = dma.hbm_to_vmem [thread:$0]  %s6, 64, %s71, [#allocation8]
    $region29: #{tpu_custom_call.1} parent=1 // pred_fallthru
      _
    // Predicated region
    $region30: #{tpu_custom_call.1} parent=1 // pred_check
      _
    $region31: #{tpu_custom_call.1} parent=1 // pred_check_branch
      %75 = sbr.rel (0) target = $region33
    $region32: #{tpu_custom_call.1} parent=1 // pred_region
      %s77 = ssub.s32 16, 16
      %78 = vsyncadd [#allocation8], %s77
      %s80 = sshll.u32 [#allocation9], 4
      %s81 = int_to_ptr.vmem [resolvable:$true] %s80
      %83 = dma.hbm_to_vmem [thread:$0]  %s7, 16, %s81, [#allocation8]
    $region33: #{tpu_custom_call.1} parent=1 // pred_fallthru
      _
    // Predicated region
    $region34: #{tpu_custom_call.1} parent=1 // pred_check
      _
    $region35: #{tpu_custom_call.1} parent=1 // pred_check_branch
      %85 = sbr.rel (0) target = $region37
    $region36: #{tpu_custom_call.1} parent=1 // pred_region
      %s87 = ssub.s32 16, 16
      %88 = vsyncadd [#allocation11], %s87
      %s90 = sshll.u32 [#allocation10], 4
      %s91 = int_to_ptr.vmem [resolvable:$true] %s90
      %93 = dma.hbm_to_vmem [thread:$0]  %s8, 16, %s91, [#allocation11]
    $region37: #{tpu_custom_call.1} parent=1 // pred_fallthru
      _
    // Predicated region
    $region38: #{tpu_custom_call.1} parent=1 // pred_check
      _
    $region39: #{tpu_custom_call.1} parent=1 // pred_check_branch
      %95 = sbr.rel (0) target = $region41
    $region40: #{tpu_custom_call.1} parent=1 // pred_region
      %s97 = ssub.s32 16, 16
      %98 = vsyncadd [#allocation11], %s97
      %s100 = sshll.u32 [#allocation12], 4
      %s101 = int_to_ptr.vmem [resolvable:$true] %s100
      %103 = dma.hbm_to_vmem [thread:$0]  %s9, 16, %s101, [#allocation11]
    $region41: #{tpu_custom_call.1} parent=1 // pred_fallthru
      _
    // Predicated region
    $region42: #{tpu_custom_call.1} parent=1 // pred_check
      _
    $region43: #{tpu_custom_call.1} parent=1 // pred_check_branch
      %105 = sbr.rel (0) target = $region45
    $region44: #{tpu_custom_call.1} parent=1 // pred_region
      _
    $region45: #{tpu_custom_call.1} parent=1 // pred_fallthru
      _
    // Predicated region
    $region46: #{tpu_custom_call.1} parent=1 // pred_check
      _
    $region47: #{tpu_custom_call.1} parent=1 // pred_check_branch
      %107 = sbr.rel (0) target = $region49
    $region48: #{tpu_custom_call.1} parent=1 // pred_region
      _
    $region49: #{tpu_custom_call.1} parent=1 // pred_fallthru
      _
    // Predicated region
    $region50: #{tpu_custom_call.1} parent=1 // pred_check
      _
    $region51: #{tpu_custom_call.1} parent=1 // pred_check_branch
      %109 = sbr.rel (0) target = $region53
    $region52: #{tpu_custom_call.1} parent=1 // pred_region
      _
    $region53: #{tpu_custom_call.1} parent=1 // pred_fallthru
      _
    // Predicated region
    $region54: #{tpu_custom_call.1} parent=1 // pred_check
      _
    $region55: #{tpu_custom_call.1} parent=1 // pred_check_branch
      %111 = sbr.rel (0) target = $region57
    $region56: #{tpu_custom_call.1} parent=1 // pred_region
      _
    $region57: #{tpu_custom_call.1} parent=1 // pred_fallthru
      _
    // Predicated region
    $region58: #{tpu_custom_call.1} parent=1 // pred_check
      _
    $region59: #{tpu_custom_call.1} parent=1 // pred_check_branch
      %113 = sbr.rel (0) target = $region61
    $region60: #{tpu_custom_call.1} parent=1 // pred_region
      _
    $region61: #{tpu_custom_call.1} parent=1 // pred_fallthru
      _
    // Predicated region
    $region62: #{tpu_custom_call.1} parent=1 // pred_check
      _
    $region63: #{tpu_custom_call.1} parent=1 // pred_check_branch
      %115 = sbr.rel (0) target = $region65
    $region64: #{tpu_custom_call.1} parent=1 // pred_region
      _
    $region65: #{tpu_custom_call.1} parent=1 // pred_fallthru
      _
    // Predicated region
    $region66: #{tpu_custom_call.1} parent=1 // pred_check
      _
    $region67: #{tpu_custom_call.1} parent=1 // pred_check_branch
      %117 = sbr.rel (0) target = $region69
    $region68: #{tpu_custom_call.1} parent=1 // pred_region
      _
    $region69: #{tpu_custom_call.1} parent=1 // pred_fallthru
      _
    // Predicated region
    $region70: #{tpu_custom_call.1} parent=1 // pred_check
      _
    $region71: #{tpu_custom_call.1} parent=1 // pred_check_branch
      %119 = sbr.rel (0) target = $region73
    $region72: #{tpu_custom_call.1} parent=1 // pred_region
      _
    $region73: #{tpu_custom_call.1} parent=1 // pred_fallthru
      _
    // Predicated region
    $region74: #{tpu_custom_call.1} parent=1 // pred_check
      _
    $region75: #{tpu_custom_call.1} parent=1 // pred_check_branch
      %121 = sbr.rel (0) target = $region77
    $region76: #{tpu_custom_call.1} parent=1 // pred_region
      _
    $region77: #{tpu_custom_call.1} parent=1 // pred_fallthru
      _
    // Predicated region
    $region78: #{tpu_custom_call.1} parent=1 // pred_check
      _
    $region79: #{tpu_custom_call.1} parent=1 // pred_check_branch
      %123 = sbr.rel (0) target = $region81
    $region80: #{tpu_custom_call.1} parent=1 // pred_region
      %124 = dma.done [#allocation3], 128
    $region81: #{tpu_custom_call.1} parent=1 // pred_fallthru
      _
    // Predicated region
    $region82: #{tpu_custom_call.1} parent=1 // pred_check
      _
    $region83: #{tpu_custom_call.1} parent=1 // pred_check_branch
      %126 = sbr.rel (0) target = $region85
    $region84: #{tpu_custom_call.1} parent=1 // pred_region
      %127 = dma.done [#allocation5], 64
    $region85: #{tpu_custom_call.1} parent=1 // pred_fallthru
      _
    // Predicated region
    $region86: #{tpu_custom_call.1} parent=1 // pred_check
      _
    $region87: #{tpu_custom_call.1} parent=1 // pred_check_branch
      %129 = sbr.rel (0) target = $region89
    $region88: #{tpu_custom_call.1} parent=1 // pred_region
      %130 = dma.done [#allocation5], 64
    $region89: #{tpu_custom_call.1} parent=1 // pred_fallthru
      _
    // Predicated region
    $region90: #{tpu_custom_call.1} parent=1 // pred_check
      _
    $region91: #{tpu_custom_call.1} parent=1 // pred_check_branch
      %132 = sbr.rel (0) target = $region93
    $region92: #{tpu_custom_call.1} parent=1 // pred_region
      %133 = dma.done [#allocation8], 64
    $region93: #{tpu_custom_call.1} parent=1 // pred_fallthru
      _
    // Predicated region
    $region94: #{tpu_custom_call.1} parent=1 // pred_check
      _
    $region95: #{tpu_custom_call.1} parent=1 // pred_check_branch
      %135 = sbr.rel (0) target = $region97
    $region96: #{tpu_custom_call.1} parent=1 // pred_region
      %136 = dma.done [#allocation8], 16
    $region97: #{tpu_custom_call.1} parent=1 // pred_fallthru
      _
    // Predicated region
    $region98: #{tpu_custom_call.1} parent=1 // pred_check
      _
    $region99: #{tpu_custom_call.1} parent=1 // pred_check_branch
      %138 = sbr.rel (0) target = $region101
    $region100: #{tpu_custom_call.1} parent=1 // pred_region
      %139 = dma.done [#allocation11], 16
    $region101: #{tpu_custom_call.1} parent=1 // pred_fallthru
      _
    // Predicated region
    $region102: #{tpu_custom_call.1} parent=1 // pred_check
      _
    $region103: #{tpu_custom_call.1} parent=1 // pred_check_branch
      %141 = sbr.rel (0) target = $region105
    $region104: #{tpu_custom_call.1} parent=1 // pred_region
      %142 = dma.done [#allocation11], 16
    $region105: #{tpu_custom_call.1} parent=1 // pred_fallthru
      _
    %v143 = vld [vmem:[%s0] sm:$0xff]
    %v144 = vld [vmem:[%s0 + $0x8] sm:$0xff]
    %v145 = vld [vmem:[%s0 + $0x10] sm:$0xff]
    %v146 = vld [vmem:[%s0 + $0x18] sm:$0xff]
    %v147 = vld [vmem:[%s0 + $0x20] sm:$0xff]
    %v148 = vld [vmem:[%s0 + $0x28] sm:$0xff]
    %v149 = vld [vmem:[%s0 + $0x30] sm:$0xff]
    %v150 = vld [vmem:[%s0 + $0x38] sm:$0xff]
    %vm151 = vcmask 31744
    %v152 = vsel %vm151, %v143, 0.0
    %v153 = vsel %vm151, %v144, 0.0
    %v154 = vadd.f32 %v152, %v153
    %v155 = vsel %vm151, %v145, 0.0
    %v156 = vadd.f32 %v154, %v155
    %v157 = vsel %vm151, %v146, 0.0
    %v158 = vadd.f32 %v156, %v157
    %v159 = vsel %vm151, %v147, 0.0
    %v160 = vadd.f32 %v158, %v159
    %v161 = vsel %vm151, %v148, 0.0
    %v162 = vadd.f32 %v160, %v161
    %v163 = vsel %vm151, %v149, 0.0
    %v164 = vadd.f32 %v162, %v163
    %v165 = vsel %vm151, %v150, 0.0
    %v166 = vadd.f32 %v164, %v165
    %v167 = vrcp.pop 8.0
    %v168 = vmul.f32 %v166, %v167
    %v169 = vsub.f32 %v143, %v168
    %v170 = vsub.f32 %v144, %v168
    %v171 = vsub.f32 %v145, %v168
    %v172 = vsub.f32 %v146, %v168
    %v173 = vsub.f32 %v147, %v168
    %v174 = vsub.f32 %v148, %v168
    %v175 = vsub.f32 %v149, %v168
    %v176 = vsub.f32 %v150, %v168
    %v177 = vmul.f32 %v169, %v169
    %v178 = vmul.f32 %v170, %v170
    %v179 = vmul.f32 %v171, %v171
    %v180 = vmul.f32 %v172, %v172
    %v181 = vmul.f32 %v173, %v173
    %v182 = vmul.f32 %v174, %v174
    %v183 = vmul.f32 %v175, %v175
    %v184 = vmul.f32 %v176, %v176
    %v185 = vsel %vm151, %v177, 0.0
    %v186 = vsel %vm151, %v178, 0.0
    %v187 = vadd.f32 %v185, %v186
    %v188 = vsel %vm151, %v179, 0.0
    %v189 = vadd.f32 %v187, %v188
    %v190 = vsel %vm151, %v180, 0.0
    %v191 = vadd.f32 %v189, %v190
    %v192 = vsel %vm151, %v181, 0.0
    %v193 = vadd.f32 %v191, %v192
    %v194 = vsel %vm151, %v182, 0.0
    %v195 = vadd.f32 %v193, %v194
    %v196 = vsel %vm151, %v183, 0.0
    %v197 = vadd.f32 %v195, %v196
    %v198 = vsel %vm151, %v184, 0.0
    %v199 = vadd.f32 %v197, %v198
    %v200 = vmul.f32 %v199, %v167
    %v201 = vadd.f32 %v200, 1e-05
    %v202 = vrsqrt.pop %v201
    %v203 = vmul.f32 %v169, %v202
    %v204 = vmul.f32 %v170, %v202
    %v205 = vmul.f32 %v171, %v202
    %v206 = vmul.f32 %v172, %v202
    %v207 = vmul.f32 %v173, %v202
    %v208 = vmul.f32 %v174, %v202
    %v209 = vmul.f32 %v175, %v202
    %v210 = vmul.f32 %v176, %v202
    %v211 = vmul.f32 %v201, %v202
    %v212 = vld [vmem:[#allocation2] sm:$0xff]
    %v213 = vld [vmem:[%s2] sm:$0xff]
    %v214 = vld [vmem:[%s2 + $0x8] sm:$0xff]
    %v215 = vld [vmem:[%s2 + $0x10] sm:$0xff]
    %v216 = vld [vmem:[%s2 + $0x18] sm:$0xff]
    %v217 = vld [vmem:[%s3] sm:$0x1]
    %v219 = vlaneseq
    %v220 = vshrl.u32 %v219, 7
    %v221 = vsub.s32 0, %v220
    %v222 = vrot.slane %v217, %v221
    %vm224 = vcmask 261120
    %v226 = vsel %vm224, %v212, 0
    %228 = vmatprep.subr.mxu0 0.0
    %229 = vmatpush1.msra.mxu0 %v213
    %230 = vmatprep.subr.mxu0 0.0
    %231 = vmatpush1.msra.mxu0 %v214
    %232 = vmatprep.subr.mxu0 0.0
    %233 = vmatpush1.msra.mxu0 %v215
    %234 = vmatprep.subr.mxu0 0.0
    %235 = vmatpush1.msra.mxu0 %v216
    %236 = vmatprep.subr.mxu0 0.0
    %237 = vmatpush1.msra.mxu0 0.0
    %238 = vmatprep.subr.mxu0 0.0
    %239 = vmatpush1.msra.mxu0 0.0
    %240 = vmatprep.subr.mxu0 0.0
    %241 = vmatpush1.msra.mxu0 0.0
    %242 = vmatprep.subr.mxu0 0.0
    %243 = vmatpush1.msra.mxu0 0.0
    %244 = vmatprep.subr.mxu0 0.0
    %245 = vmatpush1.msra.mxu0 0.0
    %246 = vmatprep.subr.mxu0 0.0
    %247 = vmatpush1.msra.mxu0 0.0
    %248 = vmatprep.subr.mxu0 0.0
    %249 = vmatpush1.msra.mxu0 0.0
    %250 = vmatprep.subr.mxu0 0.0
    %251 = vmatpush1.msra.mxu0 0.0
    %252 = vmatprep.subr.mxu0 0.0
    %253 = vmatpush1.msra.mxu0 0.0
    %254 = vmatprep.subr.mxu0 0.0
    %255 = vmatpush1.msra.mxu0 0.0
    %256 = vmatprep.subr.mxu0 0.0
    %257 = vmatpush1.msra.mxu0 0.0
    %258 = vmatprep.subr.mxu0 0.0
    %259 = vmatpush1.msra.mxu0 0.0
    %260 = vmatprep.subr.mxu0 0.0
    %261 = vmatpush1.msra.mxu0 0.0
    %262 = vmatprep.subr.mxu0 0.0
    %263 = vmatpush1.msra.mxu0 0.0
    %264 = vmatprep.subr.mxu0 0.0
    %265 = vmatpush1.msra.mxu0 0.0
    %266 = vmatprep.subr.mxu0 0.0
    %267 = vmatpush1.msra.mxu0 0.0
    %268 = vmatprep.subr.mxu0 0.0
    %269 = vmatpush1.msra.mxu0 0.0
    %270 = vmatprep.subr.mxu0 0.0
    %271 = vmatpush1.msra.mxu0 0.0
    %272 = vmatprep.subr.mxu0 0.0
    %273 = vmatpush1.msra.mxu0 0.0
    %274 = vmatprep.subr.mxu0 0.0
    %275 = vmatpush1.msra.mxu0 0.0
    %276 = vmatprep.subr.mxu0 0.0
    %277 = vmatpush1.msra.mxu0 0.0
    %278 = vmatprep.subr.mxu0 0.0
    %279 = vmatpush1.msra.mxu0 0.0
    %280 = vmatprep.subr.mxu0 0.0
    %281 = vmatpush1.msra.mxu0 0.0
    %282 = vmatprep.subr.mxu0 0.0
    %283 = vmatpush1.msra.mxu0 0.0
    %284 = vmatprep.subr.mxu0 0.0
    %285 = vmatpush1.msra.mxu0 0.0
    %286 = vmatprep.subr.mxu0 0.0
    %287 = vmatpush1.msra.mxu0 0.0
    %288 = vmatprep.subr.mxu0 0.0
    %289 = vmatpush1.msra.mxu0 0.0
    %290 = vmatprep.subr.mxu0 0.0
    %291 = vmatpush1.msra.mxu0 0.0
    %292 = vmatprep.mubr.f32.mxu0 0.0
    %293 = vmatmul.mubr.f32.gmra.mrb[0].mxu0 %v226
    %v294 = vpop.f32.mrb[0].mxu0
    %v295 = vadd.f32 %v222, %v294
    %v296 = vpop.f32.mrb[0].mxu0
    %297 = vdwg.mxu0
    %v298 = vld [vmem:[#allocation4] sm:$0xf]
    %v299 = vld [vmem:[#allocation9] sm:$0x1]
    %v301 = vlaneseq
    %v302 = vshrl.u32 %v301, 7
    %v303 = vsub.s32 0, %v302
    %v304 = vrot.slane %v299, %v303
    %v307 = vsel %vm151, %v203, 0
    %v310 = vsel %vm151, %v204, 0
    %v313 = vsel %vm151, %v205, 0
    %v316 = vsel %vm151, %v206, 0
    %v319 = vsel %vm151, %v207, 0
    %v322 = vsel %vm151, %v208, 0
    %v325 = vsel %vm151, %v209, 0
    %v328 = vsel %vm151, %v210, 0
    %vm330 = vcmask 1043456
    %v332 = vsel %vm330, %v298, 0
    %334 = vmatprep.subr.mxu0 0.0
    %335 = vmatpush1.msra.mxu0 %v332
    %336 = vmatprep.subr.mxu0 0.0
    %337 = vmatpush1.msra.mxu0 0.0
    %338 = vmatprep.subr.mxu0 0.0
    %339 = vmatpush1.msra.mxu0 0.0
    %340 = vmatprep.subr.mxu0 0.0
    %341 = vmatpush1.msra.mxu0 0.0
    %342 = vmatprep.subr.mxu0 0.0
    %343 = vmatpush1.msra.mxu0 0.0
    %344 = vmatprep.subr.mxu0 0.0
    %345 = vmatpush1.msra.mxu0 0.0
    %346 = vmatprep.subr.mxu0 0.0
    %347 = vmatpush1.msra.mxu0 0.0
    %348 = vmatprep.subr.mxu0 0.0
    %349 = vmatpush1.msra.mxu0 0.0
    %350 = vmatprep.subr.mxu0 0.0
    %351 = vmatpush1.msra.mxu0 0.0
    %352 = vmatprep.subr.mxu0 0.0
    %353 = vmatpush1.msra.mxu0 0.0
    %354 = vmatprep.subr.mxu0 0.0
    %355 = vmatpush1.msra.mxu0 0.0
    %356 = vmatprep.subr.mxu0 0.0
    %357 = vmatpush1.msra.mxu0 0.0
    %358 = vmatprep.subr.mxu0 0.0
    %359 = vmatpush1.msra.mxu0 0.0
    %360 = vmatprep.subr.mxu0 0.0
    %361 = vmatpush1.msra.mxu0 0.0
    %362 = vmatprep.subr.mxu0 0.0
    %363 = vmatpush1.msra.mxu0 0.0
    %364 = vmatprep.subr.mxu0 0.0
    %365 = vmatpush1.msra.mxu0 0.0
    %366 = vmatprep.subr.mxu0 0.0
    %367 = vmatpush1.msra.mxu0 0.0
    %368 = vmatprep.subr.mxu0 0.0
    %369 = vmatpush1.msra.mxu0 0.0
    %370 = vmatprep.subr.mxu0 0.0
    %371 = vmatpush1.msra.mxu0 0.0
    %372 = vmatprep.subr.mxu0 0.0
    %373 = vmatpush1.msra.mxu0 0.0
    %374 = vmatprep.subr.mxu0 0.0
    %375 = vmatpush1.msra.mxu0 0.0
    %376 = vmatprep.subr.mxu0 0.0
    %377 = vmatpush1.msra.mxu0 0.0
    %378 = vmatprep.subr.mxu0 0.0
    %379 = vmatpush1.msra.mxu0 0.0
    %380 = vmatprep.subr.mxu0 0.0
    %381 = vmatpush1.msra.mxu0 0.0
    %382 = vmatprep.subr.mxu0 0.0
    %383 = vmatpush1.msra.mxu0 0.0
    %384 = vmatprep.subr.mxu0 0.0
    %385 = vmatpush1.msra.mxu0 0.0
    %386 = vmatprep.subr.mxu0 0.0
    %387 = vmatpush1.msra.mxu0 0.0
    %388 = vmatprep.subr.mxu0 0.0
    %389 = vmatpush1.msra.mxu0 0.0
    %390 = vmatprep.subr.mxu0 0.0
    %391 = vmatpush1.msra.mxu0 0.0
    %392 = vmatprep.subr.mxu0 0.0
    %393 = vmatpush1.msra.mxu0 0.0
    %394 = vmatprep.subr.mxu0 0.0
    %395 = vmatpush1.msra.mxu0 0.0
    %396 = vmatprep.subr.mxu0 0.0
    %397 = vmatpush1.msra.mxu0 0.0
    %398 = vmatprep.mubr.f32.mxu0 0.0
    %399 = vmatmul.mubr.f32.gmra.mrb[0].mxu0 %v307
    %v400 = vpop.f32.mrb[0].mxu0
    %v401 = vadd.f32 %v304, %v400
    %v402 = vpop.f32.mrb[0].mxu0
    %403 = vmatprep.mubr.f32.mxu0 0.0
    %404 = vmatmul.mubr.f32.gmra.mrb[0].mxu0 %v310
    %v405 = vpop.f32.mrb[0].mxu0
    %v406 = vadd.f32 %v304, %v405
    %v407 = vpop.f32.mrb[0].mxu0
    %408 = vmatprep.mubr.f32.mxu0 0.0
    %409 = vmatmul.mubr.f32.gmra.mrb[0].mxu0 %v313
    %v410 = vpop.f32.mrb[0].mxu0
    %v411 = vadd.f32 %v304, %v410
    %v412 = vpop.f32.mrb[0].mxu0
    %413 = vmatprep.mubr.f32.mxu0 0.0
    %414 = vmatmul.mubr.f32.gmra.mrb[0].mxu0 %v316
    %v415 = vpop.f32.mrb[0].mxu0
    %v416 = vadd.f32 %v304, %v415
    %v417 = vpop.f32.mrb[0].mxu0
    %418 = vmatprep.mubr.f32.mxu0 0.0
    %419 = vmatmul.mubr.f32.gmra.mrb[0].mxu0 %v319
    %v420 = vpop.f32.mrb[0].mxu0
    %v421 = vadd.f32 %v304, %v420
    %v422 = vpop.f32.mrb[0].mxu0
    %423 = vmatprep.mubr.f32.mxu0 0.0
    %424 = vmatmul.mubr.f32.gmra.mrb[0].mxu0 %v322
    %v425 = vpop.f32.mrb[0].mxu0
    %v426 = vadd.f32 %v304, %v425
    %v427 = vpop.f32.mrb[0].mxu0
    %428 = vmatprep.mubr.f32.mxu0 0.0
    %429 = vmatmul.mubr.f32.gmra.mrb[0].mxu0 %v325
    %v430 = vpop.f32.mrb[0].mxu0
    %v431 = vadd.f32 %v304, %v430
    %v432 = vpop.f32.mrb[0].mxu0
    %433 = vmatprep.mubr.f32.mxu0 0.0
    %434 = vmatmul.mubr.f32.gmra.mrb[0].mxu0 %v328
    %v435 = vpop.f32.mrb[0].mxu0
    %v436 = vadd.f32 %v304, %v435
    %v437 = vpop.f32.mrb[0].mxu0
    %438 = vdwg.mxu0
    %v439 = vld [vmem:[#allocation6] sm:$0xf]
    %v440 = vld [vmem:[#allocation10] sm:$0x1]
    %v442 = vlaneseq
    %v443 = vshrl.u32 %v442, 7
    %v444 = vsub.s32 0, %v443
    %v445 = vrot.slane %v440, %v444
    %v448 = vsel %vm330, %v439, 0
    %450 = vmatprep.subr.mxu0 0.0
    %451 = vmatpush1.msra.mxu0 %v448
    %452 = vmatprep.subr.mxu0 0.0
    %453 = vmatpush1.msra.mxu0 0.0
    %454 = vmatprep.subr.mxu0 0.0
    %455 = vmatpush1.msra.mxu0 0.0
    %456 = vmatprep.subr.mxu0 0.0
    %457 = vmatpush1.msra.mxu0 0.0
    %458 = vmatprep.subr.mxu0 0.0
    %459 = vmatpush1.msra.mxu0 0.0
    %460 = vmatprep.subr.mxu0 0.0
    %461 = vmatpush1.msra.mxu0 0.0
    %462 = vmatprep.subr.mxu0 0.0
    %463 = vmatpush1.msra.mxu0 0.0
    %464 = vmatprep.subr.mxu0 0.0
    %465 = vmatpush1.msra.mxu0 0.0
    %466 = vmatprep.subr.mxu0 0.0
    %467 = vmatpush1.msra.mxu0 0.0
    %468 = vmatprep.subr.mxu0 0.0
    %469 = vmatpush1.msra.mxu0 0.0
    %470 = vmatprep.subr.mxu0 0.0
    %471 = vmatpush1.msra.mxu0 0.0
    %472 = vmatprep.subr.mxu0 0.0
    %473 = vmatpush1.msra.mxu0 0.0
    %474 = vmatprep.subr.mxu0 0.0
    %475 = vmatpush1.msra.mxu0 0.0
    %476 = vmatprep.subr.mxu0 0.0
    %477 = vmatpush1.msra.mxu0 0.0
    %478 = vmatprep.subr.mxu0 0.0
    %479 = vmatpush1.msra.mxu0 0.0
    %480 = vmatprep.subr.mxu0 0.0
    %481 = vmatpush1.msra.mxu0 0.0
    %482 = vmatprep.subr.mxu0 0.0
    %483 = vmatpush1.msra.mxu0 0.0
    %484 = vmatprep.subr.mxu0 0.0
    %485 = vmatpush1.msra.mxu0 0.0
    %486 = vmatprep.subr.mxu0 0.0
    %487 = vmatpush1.msra.mxu0 0.0
    %488 = vmatprep.subr.mxu0 0.0
    %489 = vmatpush1.msra.mxu0 0.0
    %490 = vmatprep.subr.mxu0 0.0
    %491 = vmatpush1.msra.mxu0 0.0
    %492 = vmatprep.subr.mxu0 0.0
    %493 = vmatpush1.msra.mxu0 0.0
    %494 = vmatprep.subr.mxu0 0.0
    %495 = vmatpush1.msra.mxu0 0.0
    %496 = vmatprep.subr.mxu0 0.0
    %497 = vmatpush1.msra.mxu0 0.0
    %498 = vmatprep.subr.mxu0 0.0
    %499 = vmatpush1.msra.mxu0 0.0
    %500 = vmatprep.subr.mxu0 0.0
    %501 = vmatpush1.msra.mxu0 0.0
    %502 = vmatprep.subr.mxu0 0.0
    %503 = vmatpush1.msra.mxu0 0.0
    %504 = vmatprep.subr.mxu0 0.0
    %505 = vmatpush1.msra.mxu0 0.0
    %506 = vmatprep.subr.mxu0 0.0
    %507 = vmatpush1.msra.mxu0 0.0
    %508 = vmatprep.subr.mxu0 0.0
    %509 = vmatpush1.msra.mxu0 0.0
    %510 = vmatprep.subr.mxu0 0.0
    %511 = vmatpush1.msra.mxu0 0.0
    %512 = vmatprep.subr.mxu0 0.0
    %513 = vmatpush1.msra.mxu0 0.0
    %514 = vmatprep.mubr.f32.mxu0 0.0
    %515 = vmatmul.mubr.f32.gmra.mrb[0].mxu0 %v307
    %v516 = vpop.f32.mrb[0].mxu0
    %v517 = vadd.f32 %v445, %v516
    %v518 = vpop.f32.mrb[0].mxu0
    %519 = vmatprep.mubr.f32.mxu0 0.0
    %520 = vmatmul.mubr.f32.gmra.mrb[0].mxu0 %v310
    %v521 = vpop.f32.mrb[0].mxu0
    %v522 = vadd.f32 %v445, %v521
    %v523 = vpop.f32.mrb[0].mxu0
    %524 = vmatprep.mubr.f32.mxu0 0.0
    %525 = vmatmul.mubr.f32.gmra.mrb[0].mxu0 %v313
    %v526 = vpop.f32.mrb[0].mxu0
    %v527 = vadd.f32 %v445, %v526
    %v528 = vpop.f32.mrb[0].mxu0
    %529 = vmatprep.mubr.f32.mxu0 0.0
    %530 = vmatmul.mubr.f32.gmra.mrb[0].mxu0 %v316
    %v531 = vpop.f32.mrb[0].mxu0
    %v532 = vadd.f32 %v445, %v531
    %v533 = vpop.f32.mrb[0].mxu0
    %534 = vmatprep.mubr.f32.mxu0 0.0
    %535 = vmatmul.mubr.f32.gmra.mrb[0].mxu0 %v319
    %v536 = vpop.f32.mrb[0].mxu0
    %v537 = vadd.f32 %v445, %v536
    %v538 = vpop.f32.mrb[0].mxu0
    %539 = vmatprep.mubr.f32.mxu0 0.0
    %540 = vmatmul.mubr.f32.gmra.mrb[0].mxu0 %v322
    %v541 = vpop.f32.mrb[0].mxu0
    %v542 = vadd.f32 %v445, %v541
    %v543 = vpop.f32.mrb[0].mxu0
    %544 = vmatprep.mubr.f32.mxu0 0.0
    %545 = vmatmul.mubr.f32.gmra.mrb[0].mxu0 %v325
    %v546 = vpop.f32.mrb[0].mxu0
    %v547 = vadd.f32 %v445, %v546
    %v548 = vpop.f32.mrb[0].mxu0
    %549 = vmatprep.mubr.f32.mxu0 0.0
    %550 = vmatmul.mubr.f32.gmra.mrb[0].mxu0 %v328
    %v551 = vpop.f32.mrb[0].mxu0
    %v552 = vadd.f32 %v445, %v551
    %v553 = vpop.f32.mrb[0].mxu0
    %554 = vdwg.mxu0
    %v555 = vld [vmem:[#allocation7] sm:$0xf]
    %v556 = vld [vmem:[#allocation12] sm:$0x1]
    %v558 = vlaneseq
    %v559 = vshrl.u32 %v558, 7
    %v560 = vsub.s32 0, %v559
    %v561 = vrot.slane %v556, %v560
    %v564 = vsel %vm330, %v555, 0
    %566 = vmatprep.subr.mxu0 0.0
    %567 = vmatpush1.msra.mxu0 %v564
    %568 = vmatprep.subr.mxu0 0.0
    %569 = vmatpush1.msra.mxu0 0.0
    %570 = vmatprep.subr.mxu0 0.0
    %571 = vmatpush1.msra.mxu0 0.0
    %572 = vmatprep.subr.mxu0 0.0
    %573 = vmatpush1.msra.mxu0 0.0
    %574 = vmatprep.subr.mxu0 0.0
    %575 = vmatpush1.msra.mxu0 0.0
    %576 = vmatprep.subr.mxu0 0.0
    %577 = vmatpush1.msra.mxu0 0.0
    %578 = vmatprep.subr.mxu0 0.0
    %579 = vmatpush1.msra.mxu0 0.0
    %580 = vmatprep.subr.mxu0 0.0
    %581 = vmatpush1.msra.mxu0 0.0
    %582 = vmatprep.subr.mxu0 0.0
    %583 = vmatpush1.msra.mxu0 0.0
    %584 = vmatprep.subr.mxu0 0.0
    %585 = vmatpush1.msra.mxu0 0.0
    %586 = vmatprep.subr.mxu0 0.0
    %587 = vmatpush1.msra.mxu0 0.0
    %588 = vmatprep.subr.mxu0 0.0
    %589 = vmatpush1.msra.mxu0 0.0
    %590 = vmatprep.subr.mxu0 0.0
    %591 = vmatpush1.msra.mxu0 0.0
    %592 = vmatprep.subr.mxu0 0.0
    %593 = vmatpush1.msra.mxu0 0.0
    %594 = vmatprep.subr.mxu0 0.0
    %595 = vmatpush1.msra.mxu0 0.0
    %596 = vmatprep.subr.mxu0 0.0
    %597 = vmatpush1.msra.mxu0 0.0
    %598 = vmatprep.subr.mxu0 0.0
    %599 = vmatpush1.msra.mxu0 0.0
    %600 = vmatprep.subr.mxu0 0.0
    %601 = vmatpush1.msra.mxu0 0.0
    %602 = vmatprep.subr.mxu0 0.0
    %603 = vmatpush1.msra.mxu0 0.0
    %604 = vmatprep.subr.mxu0 0.0
    %605 = vmatpush1.msra.mxu0 0.0
    %606 = vmatprep.subr.mxu0 0.0
    %607 = vmatpush1.msra.mxu0 0.0
    %608 = vmatprep.subr.mxu0 0.0
    %609 = vmatpush1.msra.mxu0 0.0
    %610 = vmatprep.subr.mxu0 0.0
    %611 = vmatpush1.msra.mxu0 0.0
    %612 = vmatprep.subr.mxu0 0.0
    %613 = vmatpush1.msra.mxu0 0.0
    %614 = vmatprep.subr.mxu0 0.0
    %615 = vmatpush1.msra.mxu0 0.0
    %616 = vmatprep.subr.mxu0 0.0
    %617 = vmatpush1.msra.mxu0 0.0
    %618 = vmatprep.subr.mxu0 0.0
    %619 = vmatpush1.msra.mxu0 0.0
    %620 = vmatprep.subr.mxu0 0.0
    %621 = vmatpush1.msra.mxu0 0.0
    %622 = vmatprep.subr.mxu0 0.0
    %623 = vmatpush1.msra.mxu0 0.0
    %624 = vmatprep.subr.mxu0 0.0
    %625 = vmatpush1.msra.mxu0 0.0
    %626 = vmatprep.subr.mxu0 0.0
    %627 = vmatpush1.msra.mxu0 0.0
    %628 = vmatprep.subr.mxu0 0.0
    %629 = vmatpush1.msra.mxu0 0.0
    %630 = vmatprep.mubr.f32.mxu0 0.0
    %631 = vmatmul.mubr.f32.gmra.mrb[0].mxu0 %v307
    %v632 = vpop.f32.mrb[0].mxu0
    %v633 = vadd.f32 %v561, %v632
    %v634 = vpop.f32.mrb[0].mxu0
    %635 = vmatprep.mubr.f32.mxu0 0.0
    %636 = vmatmul.mubr.f32.gmra.mrb[0].mxu0 %v310
    %v637 = vpop.f32.mrb[0].mxu0
    %v638 = vadd.f32 %v561, %v637
    %v639 = vpop.f32.mrb[0].mxu0
    %640 = vmatprep.mubr.f32.mxu0 0.0
    %641 = vmatmul.mubr.f32.gmra.mrb[0].mxu0 %v313
    %v642 = vpop.f32.mrb[0].mxu0
    %v643 = vadd.f32 %v561, %v642
    %v644 = vpop.f32.mrb[0].mxu0
    %645 = vmatprep.mubr.f32.mxu0 0.0
    %646 = vmatmul.mubr.f32.gmra.mrb[0].mxu0 %v316
    %v647 = vpop.f32.mrb[0].mxu0
    %v648 = vadd.f32 %v561, %v647
    %v649 = vpop.f32.mrb[0].mxu0
    %650 = vmatprep.mubr.f32.mxu0 0.0
    %651 = vmatmul.mubr.f32.gmra.mrb[0].mxu0 %v319
    %v652 = vpop.f32.mrb[0].mxu0
    %v653 = vadd.f32 %v561, %v652
    %v654 = vpop.f32.mrb[0].mxu0
    %655 = vmatprep.mubr.f32.mxu0 0.0
    %656 = vmatmul.mubr.f32.gmra.mrb[0].mxu0 %v322
    %v657 = vpop.f32.mrb[0].mxu0
    %v658 = vadd.f32 %v561, %v657
    %v659 = vpop.f32.mrb[0].mxu0
    %660 = vmatprep.mubr.f32.mxu0 0.0
    %661 = vmatmul.mubr.f32.gmra.mrb[0].mxu0 %v325
    %v662 = vpop.f32.mrb[0].mxu0
    %v663 = vadd.f32 %v561, %v662
    %v664 = vpop.f32.mrb[0].mxu0
    %665 = vmatprep.mubr.f32.mxu0 0.0
    %666 = vmatmul.mubr.f32.gmra.mrb[0].mxu0 %v328
    %v667 = vpop.f32.mrb[0].mxu0
    %v668 = vadd.f32 %v561, %v667
    %v669 = vpop.f32.mrb[0].mxu0
    %670 = vdwg.mxu0
    %v671 = vld [vmem:[%s10] sm:$0xff]
    %v672 = vld [vmem:[%s10 + $0x8] sm:$0xff]
    %v673 = vld [vmem:[%s10 + $0x10] sm:$0xff]
    %v674 = vld [vmem:[%s10 + $0x18] sm:$0xff]
    %v675 = vld [vmem:[%s11] sm:$0xff]
    %v676 = vld [vmem:[%s11 + $0x8] sm:$0xff]
    %v677 = vld [vmem:[%s11 + $0x10] sm:$0xff]
    %v678 = vld [vmem:[%s11 + $0x18] sm:$0xff]
    %v679 = vld [vmem:[%s12] sm:$0xff]
    %v680 = vld [vmem:[%s12 + $0x8] sm:$0xff]
    %v681 = vld [vmem:[%s12 + $0x10] sm:$0xff]
    %v682 = vld [vmem:[%s12 + $0x18] sm:$0xff]
    %v683 = vld [vmem:[%s13] sm:$0x1]
    %v685 = vlaneseq
    %v686 = vshrl.u32 %v685, 7
    %v687 = vsub.s32 0, %v686
    %v688 = vrot.slane %v683, %v687
    %v691 = vsel %vm224, %v295, 0
    %693 = vmatprep.subr.mxu0 0.0
    %694 = vmatpush1.msra.mxu0 %v671
    %695 = vmatprep.subr.mxu0 0.0
    %696 = vmatpush1.msra.mxu0 %v672
    %697 = vmatprep.subr.mxu0 0.0
    %698 = vmatpush1.msra.mxu0 %v673
    %699 = vmatprep.subr.mxu0 0.0
    %700 = vmatpush1.msra.mxu0 %v674
    %701 = vmatprep.subr.mxu0 0.0
    %702 = vmatpush1.msra.mxu0 0.0
    %703 = vmatprep.subr.mxu0 0.0
    %704 = vmatpush1.msra.mxu0 0.0
    %705 = vmatprep.subr.mxu0 0.0
    %706 = vmatpush1.msra.mxu0 0.0
    %707 = vmatprep.subr.mxu0 0.0
    %708 = vmatpush1.msra.mxu0 0.0
    %709 = vmatprep.subr.mxu0 0.0
    %710 = vmatpush1.msra.mxu0 0.0
    %711 = vmatprep.subr.mxu0 0.0
    %712 = vmatpush1.msra.mxu0 0.0
    %713 = vmatprep.subr.mxu0 0.0
    %714 = vmatpush1.msra.mxu0 0.0
    %715 = vmatprep.subr.mxu0 0.0
    %716 = vmatpush1.msra.mxu0 0.0
    %717 = vmatprep.subr.mxu0 0.0
    %718 = vmatpush1.msra.mxu0 0.0
    %719 = vmatprep.subr.mxu0 0.0
    %720 = vmatpush1.msra.mxu0 0.0
    %721 = vmatprep.subr.mxu0 0.0
    %722 = vmatpush1.msra.mxu0 0.0
    %723 = vmatprep.subr.mxu0 0.0
    %724 = vmatpush1.msra.mxu0 0.0
    %725 = vmatprep.subr.mxu0 0.0
    %726 = vmatpush1.msra.mxu0 0.0
    %727 = vmatprep.subr.mxu0 0.0
    %728 = vmatpush1.msra.mxu0 0.0
    %729 = vmatprep.subr.mxu0 0.0
    %730 = vmatpush1.msra.mxu0 0.0
    %731 = vmatprep.subr.mxu0 0.0
    %732 = vmatpush1.msra.mxu0 0.0
    %733 = vmatprep.subr.mxu0 0.0
    %734 = vmatpush1.msra.mxu0 0.0
    %735 = vmatprep.subr.mxu0 0.0
    %736 = vmatpush1.msra.mxu0 0.0
    %737 = vmatprep.subr.mxu0 0.0
    %738 = vmatpush1.msra.mxu0 0.0
    %739 = vmatprep.subr.mxu0 0.0
    %740 = vmatpush1.msra.mxu0 0.0
    %741 = vmatprep.subr.mxu0 0.0
    %742 = vmatpush1.msra.mxu0 0.0
    %743 = vmatprep.subr.mxu0 0.0
    %744 = vmatpush1.msra.mxu0 0.0
    %745 = vmatprep.subr.mxu0 0.0
    %746 = vmatpush1.msra.mxu0 0.0
    %747 = vmatprep.subr.mxu0 0.0
    %748 = vmatpush1.msra.mxu0 0.0
    %749 = vmatprep.subr.mxu0 0.0
    %750 = vmatpush1.msra.mxu0 0.0
    %751 = vmatprep.subr.mxu0 0.0
    %752 = vmatpush1.msra.mxu0 0.0
    %753 = vmatprep.subr.mxu0 0.0
    %754 = vmatpush1.msra.mxu0 0.0
    %755 = vmatprep.subr.mxu0 0.0
    %756 = vmatpush1.msra.mxu0 0.0
    %757 = vmatprep.mubr.f32.mxu0 0.0
    %758 = vmatmul.mubr.f32.gmra.mrb[0].mxu0 %v691
    %v759 = vpop.f32.mrb[0].mxu0
    %v760 = vadd.f32 0.0, %v759
    %v761 = vpop.f32.mrb[0].mxu0
    %762 = vdwg.mxu0
    %763 = vmatprep.subr.mxu0 0.0
    %764 = vmatpush1.msra.mxu0 %v675
    %765 = vmatprep.subr.mxu0 0.0
    %766 = vmatpush1.msra.mxu0 %v676
    %767 = vmatprep.subr.mxu0 0.0
    %768 = vmatpush1.msra.mxu0 %v677
    %769 = vmatprep.subr.mxu0 0.0
    %770 = vmatpush1.msra.mxu0 %v678
    %771 = vmatprep.subr.mxu0 0.0
    %772 = vmatpush1.msra.mxu0 0.0
    %773 = vmatprep.subr.mxu0 0.0
    %774 = vmatpush1.msra.mxu0 0.0
    %775 = vmatprep.subr.mxu0 0.0
    %776 = vmatpush1.msra.mxu0 0.0
    %777 = vmatprep.subr.mxu0 0.0
    %778 = vmatpush1.msra.mxu0 0.0
    %779 = vmatprep.subr.mxu0 0.0
    %780 = vmatpush1.msra.mxu0 0.0
    %781 = vmatprep.subr.mxu0 0.0
    %782 = vmatpush1.msra.mxu0 0.0
    %783 = vmatprep.subr.mxu0 0.0
    %784 = vmatpush1.msra.mxu0 0.0
    %785 = vmatprep.subr.mxu0 0.0
    %786 = vmatpush1.msra.mxu0 0.0
    %787 = vmatprep.subr.mxu0 0.0
    %788 = vmatpush1.msra.mxu0 0.0
    %789 = vmatprep.subr.mxu0 0.0
    %790 = vmatpush1.msra.mxu0 0.0
    %791 = vmatprep.subr.mxu0 0.0
    %792 = vmatpush1.msra.mxu0 0.0
    %793 = vmatprep.subr.mxu0 0.0
    %794 = vmatpush1.msra.mxu0 0.0
    %795 = vmatprep.subr.mxu0 0.0
    %796 = vmatpush1.msra.mxu0 0.0
    %797 = vmatprep.subr.mxu0 0.0
    %798 = vmatpush1.msra.mxu0 0.0
    %799 = vmatprep.subr.mxu0 0.0
    %800 = vmatpush1.msra.mxu0 0.0
    %801 = vmatprep.subr.mxu0 0.0
    %802 = vmatpush1.msra.mxu0 0.0
    %803 = vmatprep.subr.mxu0 0.0
    %804 = vmatpush1.msra.mxu0 0.0
    %805 = vmatprep.subr.mxu0 0.0
    %806 = vmatpush1.msra.mxu0 0.0
    %807 = vmatprep.subr.mxu0 0.0
    %808 = vmatpush1.msra.mxu0 0.0
    %809 = vmatprep.subr.mxu0 0.0
    %810 = vmatpush1.msra.mxu0 0.0
    %811 = vmatprep.subr.mxu0 0.0
    %812 = vmatpush1.msra.mxu0 0.0
    %813 = vmatprep.subr.mxu0 0.0
    %814 = vmatpush1.msra.mxu0 0.0
    %815 = vmatprep.subr.mxu0 0.0
    %816 = vmatpush1.msra.mxu0 0.0
    %817 = vmatprep.subr.mxu0 0.0
    %818 = vmatpush1.msra.mxu0 0.0
    %819 = vmatprep.subr.mxu0 0.0
    %820 = vmatpush1.msra.mxu0 0.0
    %821 = vmatprep.subr.mxu0 0.0
    %822 = vmatpush1.msra.mxu0 0.0
    %823 = vmatprep.subr.mxu0 0.0
    %824 = vmatpush1.msra.mxu0 0.0
    %825 = vmatprep.subr.mxu0 0.0
    %826 = vmatpush1.msra.mxu0 0.0
    %827 = vmatprep.mubr.f32.mxu0 0.0
    %828 = vmatmul.mubr.f32.gmra.mrb[0].mxu0 %v691
    %v829 = vpop.f32.mrb[0].mxu0
    %v830 = vadd.f32 0.0, %v829
    %v831 = vpop.f32.mrb[0].mxu0
    %832 = vdwg.mxu0
    %v833 = vadd.f32 %v401, %v760
    %v834 = vmul.f32 %v833, 0.5
    %v835 = vtanh.pop %v834
    %v836 = vmul.f32 %v835, 0.5
    %v837 = vadd.f32 %v836, 0.5
    %v838 = vadd.f32 %v517, %v830
    %v839 = vmul.f32 %v838, 0.5
    %v840 = vtanh.pop %v839
    %v841 = vmul.f32 %v840, 0.5
    %v842 = vadd.f32 %v841, 0.5
    %843 = vmatprep.subr.mxu0 0.0
    %844 = vmatpush1.msra.mxu0 %v679
    %845 = vmatprep.subr.mxu0 0.0
    %846 = vmatpush1.msra.mxu0 %v680
    %847 = vmatprep.subr.mxu0 0.0
    %848 = vmatpush1.msra.mxu0 %v681
    %849 = vmatprep.subr.mxu0 0.0
    %850 = vmatpush1.msra.mxu0 %v682
    %851 = vmatprep.subr.mxu0 0.0
    %852 = vmatpush1.msra.mxu0 0.0
    %853 = vmatprep.subr.mxu0 0.0
    %854 = vmatpush1.msra.mxu0 0.0
    %855 = vmatprep.subr.mxu0 0.0
    %856 = vmatpush1.msra.mxu0 0.0
    %857 = vmatprep.subr.mxu0 0.0
    %858 = vmatpush1.msra.mxu0 0.0
    %859 = vmatprep.subr.mxu0 0.0
    %860 = vmatpush1.msra.mxu0 0.0
    %861 = vmatprep.subr.mxu0 0.0
    %862 = vmatpush1.msra.mxu0 0.0
    %863 = vmatprep.subr.mxu0 0.0
    %864 = vmatpush1.msra.mxu0 0.0
    %865 = vmatprep.subr.mxu0 0.0
    %866 = vmatpush1.msra.mxu0 0.0
    %867 = vmatprep.subr.mxu0 0.0
    %868 = vmatpush1.msra.mxu0 0.0
    %869 = vmatprep.subr.mxu0 0.0
    %870 = vmatpush1.msra.mxu0 0.0
    %871 = vmatprep.subr.mxu0 0.0
    %872 = vmatpush1.msra.mxu0 0.0
    %873 = vmatprep.subr.mxu0 0.0
    %874 = vmatpush1.msra.mxu0 0.0
    %875 = vmatprep.subr.mxu0 0.0
    %876 = vmatpush1.msra.mxu0 0.0
    %877 = vmatprep.subr.mxu0 0.0
    %878 = vmatpush1.msra.mxu0 0.0
    %879 = vmatprep.subr.mxu0 0.0
    %880 = vmatpush1.msra.mxu0 0.0
    %881 = vmatprep.subr.mxu0 0.0
    %882 = vmatpush1.msra.mxu0 0.0
    %883 = vmatprep.subr.mxu0 0.0
    %884 = vmatpush1.msra.mxu0 0.0
    %885 = vmatprep.subr.mxu0 0.0
    %886 = vmatpush1.msra.mxu0 0.0
    %887 = vmatprep.subr.mxu0 0.0
    %888 = vmatpush1.msra.mxu0 0.0
    %889 = vmatprep.subr.mxu0 0.0
    %890 = vmatpush1.msra.mxu0 0.0
    %891 = vmatprep.subr.mxu0 0.0
    %892 = vmatpush1.msra.mxu0 0.0
    %893 = vmatprep.subr.mxu0 0.0
    %894 = vmatpush1.msra.mxu0 0.0
    %895 = vmatprep.subr.mxu0 0.0
    %896 = vmatpush1.msra.mxu0 0.0
    %897 = vmatprep.subr.mxu0 0.0
    %898 = vmatpush1.msra.mxu0 0.0
    %899 = vmatprep.subr.mxu0 0.0
    %900 = vmatpush1.msra.mxu0 0.0
    %901 = vmatprep.subr.mxu0 0.0
    %902 = vmatpush1.msra.mxu0 0.0
    %903 = vmatprep.subr.mxu0 0.0
    %904 = vmatpush1.msra.mxu0 0.0
    %905 = vmatprep.subr.mxu0 0.0
    %906 = vmatpush1.msra.mxu0 0.0
    %907 = vmatprep.mubr.f32.mxu0 0.0
    %908 = vmatmul.mubr.f32.gmra.mrb[0].mxu0 %v691
    %v909 = vpop.f32.mrb[0].mxu0
    %v910 = vadd.f32 %v688, %v909
    %v911 = vpop.f32.mrb[0].mxu0
    %912 = vdwg.mxu0
    %v913 = vmul.f32 %v837, %v910
    %v914 = vadd.f32 %v633, %v913
    %v915 = vtanh.pop %v914
    %v916 = vsub.f32 %v295, %v915
    %v917 = vmul.f32 %v842, %v916
    %v918 = vadd.f32 %v915, %v917
    %v920 = vsel %vm224, %v918, 0
    %922 = vmatprep.subr.mxu0 0.0
    %923 = vmatpush1.msra.mxu0 %v671
    %924 = vmatprep.subr.mxu0 0.0
    %925 = vmatpush1.msra.mxu0 %v672
    %926 = vmatprep.subr.mxu0 0.0
    %927 = vmatpush1.msra.mxu0 %v673
    %928 = vmatprep.subr.mxu0 0.0
    %929 = vmatpush1.msra.mxu0 %v674
    %930 = vmatprep.subr.mxu0 0.0
    %931 = vmatpush1.msra.mxu0 0.0
    %932 = vmatprep.subr.mxu0 0.0
    %933 = vmatpush1.msra.mxu0 0.0
    %934 = vmatprep.subr.mxu0 0.0
    %935 = vmatpush1.msra.mxu0 0.0
    %936 = vmatprep.subr.mxu0 0.0
    %937 = vmatpush1.msra.mxu0 0.0
    %938 = vmatprep.subr.mxu0 0.0
    %939 = vmatpush1.msra.mxu0 0.0
    %940 = vmatprep.subr.mxu0 0.0
    %941 = vmatpush1.msra.mxu0 0.0
    %942 = vmatprep.subr.mxu0 0.0
    %943 = vmatpush1.msra.mxu0 0.0
    %944 = vmatprep.subr.mxu0 0.0
    %945 = vmatpush1.msra.mxu0 0.0
    %946 = vmatprep.subr.mxu0 0.0
    %947 = vmatpush1.msra.mxu0 0.0
    %948 = vmatprep.subr.mxu0 0.0
    %949 = vmatpush1.msra.mxu0 0.0
    %950 = vmatprep.subr.mxu0 0.0
    %951 = vmatpush1.msra.mxu0 0.0
    %952 = vmatprep.subr.mxu0 0.0
    %953 = vmatpush1.msra.mxu0 0.0
    %954 = vmatprep.subr.mxu0 0.0
    %955 = vmatpush1.msra.mxu0 0.0
    %956 = vmatprep.subr.mxu0 0.0
    %957 = vmatpush1.msra.mxu0 0.0
    %958 = vmatprep.subr.mxu0 0.0
    %959 = vmatpush1.msra.mxu0 0.0
    %960 = vmatprep.subr.mxu0 0.0
    %961 = vmatpush1.msra.mxu0 0.0
    %962 = vmatprep.subr.mxu0 0.0
    %963 = vmatpush1.msra.mxu0 0.0
    %964 = vmatprep.subr.mxu0 0.0
    %965 = vmatpush1.msra.mxu0 0.0
    %966 = vmatprep.subr.mxu0 0.0
    %967 = vmatpush1.msra.mxu0 0.0
    %968 = vmatprep.subr.mxu0 0.0
    %969 = vmatpush1.msra.mxu0 0.0
    %970 = vmatprep.subr.mxu0 0.0
    %971 = vmatpush1.msra.mxu0 0.0
    %972 = vmatprep.subr.mxu0 0.0
    %973 = vmatpush1.msra.mxu0 0.0
    %974 = vmatprep.subr.mxu0 0.0
    %975 = vmatpush1.msra.mxu0 0.0
    %976 = vmatprep.subr.mxu0 0.0
    %977 = vmatpush1.msra.mxu0 0.0
    %978 = vmatprep.subr.mxu0 0.0
    %979 = vmatpush1.msra.mxu0 0.0
    %980 = vmatprep.subr.mxu0 0.0
    %981 = vmatpush1.msra.mxu0 0.0
    %982 = vmatprep.subr.mxu0 0.0
    %983 = vmatpush1.msra.mxu0 0.0
    %984 = vmatprep.subr.mxu0 0.0
    %985 = vmatpush1.msra.mxu0 0.0
    %986 = vmatprep.mubr.f32.mxu0 0.0
    %987 = vmatmul.mubr.f32.gmra.mrb[0].mxu0 %v920
    %v988 = vpop.f32.mrb[0].mxu0
    %v989 = vadd.f32 0.0, %v988
    %v990 = vpop.f32.mrb[0].mxu0
    %991 = vdwg.mxu0
    %992 = vmatprep.subr.mxu0 0.0
    %993 = vmatpush1.msra.mxu0 %v675
    %994 = vmatprep.subr.mxu0 0.0
    %995 = vmatpush1.msra.mxu0 %v676
    %996 = vmatprep.subr.mxu0 0.0
    %997 = vmatpush1.msra.mxu0 %v677
    %998 = vmatprep.subr.mxu0 0.0
    %999 = vmatpush1.msra.mxu0 %v678
    %1000 = vmatprep.subr.mxu0 0.0
    %1001 = vmatpush1.msra.mxu0 0.0
    %1002 = vmatprep.subr.mxu0 0.0
    %1003 = vmatpush1.msra.mxu0 0.0
    %1004 = vmatprep.subr.mxu0 0.0
    %1005 = vmatpush1.msra.mxu0 0.0
    %1006 = vmatprep.subr.mxu0 0.0
    %1007 = vmatpush1.msra.mxu0 0.0
    %1008 = vmatprep.subr.mxu0 0.0
    %1009 = vmatpush1.msra.mxu0 0.0
    %1010 = vmatprep.subr.mxu0 0.0
    %1011 = vmatpush1.msra.mxu0 0.0
    %1012 = vmatprep.subr.mxu0 0.0
    %1013 = vmatpush1.msra.mxu0 0.0
    %1014 = vmatprep.subr.mxu0 0.0
    %1015 = vmatpush1.msra.mxu0 0.0
    %1016 = vmatprep.subr.mxu0 0.0
    %1017 = vmatpush1.msra.mxu0 0.0
    %1018 = vmatprep.subr.mxu0 0.0
    %1019 = vmatpush1.msra.mxu0 0.0
    %1020 = vmatprep.subr.mxu0 0.0
    %1021 = vmatpush1.msra.mxu0 0.0
    %1022 = vmatprep.subr.mxu0 0.0
    %1023 = vmatpush1.msra.mxu0 0.0
    %1024 = vmatprep.subr.mxu0 0.0
    %1025 = vmatpush1.msra.mxu0 0.0
    %1026 = vmatprep.subr.mxu0 0.0
    %1027 = vmatpush1.msra.mxu0 0.0
    %1028 = vmatprep.subr.mxu0 0.0
    %1029 = vmatpush1.msra.mxu0 0.0
    %1030 = vmatprep.subr.mxu0 0.0
    %1031 = vmatpush1.msra.mxu0 0.0
    %1032 = vmatprep.subr.mxu0 0.0
    %1033 = vmatpush1.msra.mxu0 0.0
    %1034 = vmatprep.subr.mxu0 0.0
    %1035 = vmatpush1.msra.mxu0 0.0
    %1036 = vmatprep.subr.mxu0 0.0
    %1037 = vmatpush1.msra.mxu0 0.0
    %1038 = vmatprep.subr.mxu0 0.0
    %1039 = vmatpush1.msra.mxu0 0.0
    %1040 = vmatprep.subr.mxu0 0.0
    %1041 = vmatpush1.msra.mxu0 0.0
    %1042 = vmatprep.subr.mxu0 0.0
    %1043 = vmatpush1.msra.mxu0 0.0
    %1044 = vmatprep.subr.mxu0 0.0
    %1045 = vmatpush1.msra.mxu0 0.0
    %1046 = vmatprep.subr.mxu0 0.0
    %1047 = vmatpush1.msra.mxu0 0.0
    %1048 = vmatprep.subr.mxu0 0.0
    %1049 = vmatpush1.msra.mxu0 0.0
    %1050 = vmatprep.subr.mxu0 0.0
    %1051 = vmatpush1.msra.mxu0 0.0
    %1052 = vmatprep.subr.mxu0 0.0
    %1053 = vmatpush1.msra.mxu0 0.0
    %1054 = vmatprep.subr.mxu0 0.0
    %1055 = vmatpush1.msra.mxu0 0.0
    %1056 = vmatprep.mubr.f32.mxu0 0.0
    %1057 = vmatmul.mubr.f32.gmra.mrb[0].mxu0 %v920
    %v1058 = vpop.f32.mrb[0].mxu0
    %v1059 = vadd.f32 0.0, %v1058
    %v1060 = vpop.f32.mrb[0].mxu0
    %1061 = vdwg.mxu0
    %v1062 = vadd.f32 %v406, %v989
    %v1063 = vmul.f32 %v1062, 0.5
    %v1064 = vtanh.pop %v1063
    %v1065 = vmul.f32 %v1064, 0.5
    %v1066 = vadd.f32 %v1065, 0.5
    %v1067 = vadd.f32 %v522, %v1059
    %v1068 = vmul.f32 %v1067, 0.5
    %v1069 = vtanh.pop %v1068
    %v1070 = vmul.f32 %v1069, 0.5
    %v1071 = vadd.f32 %v1070, 0.5
    %1072 = vmatprep.subr.mxu0 0.0
    %1073 = vmatpush1.msra.mxu0 %v679
    %1074 = vmatprep.subr.mxu0 0.0
    %1075 = vmatpush1.msra.mxu0 %v680
    %1076 = vmatprep.subr.mxu0 0.0
    %1077 = vmatpush1.msra.mxu0 %v681
    %1078 = vmatprep.subr.mxu0 0.0
    %1079 = vmatpush1.msra.mxu0 %v682
    %1080 = vmatprep.subr.mxu0 0.0
    %1081 = vmatpush1.msra.mxu0 0.0
    %1082 = vmatprep.subr.mxu0 0.0
    %1083 = vmatpush1.msra.mxu0 0.0
    %1084 = vmatprep.subr.mxu0 0.0
    %1085 = vmatpush1.msra.mxu0 0.0
    %1086 = vmatprep.subr.mxu0 0.0
    %1087 = vmatpush1.msra.mxu0 0.0
    %1088 = vmatprep.subr.mxu0 0.0
    %1089 = vmatpush1.msra.mxu0 0.0
    %1090 = vmatprep.subr.mxu0 0.0
    %1091 = vmatpush1.msra.mxu0 0.0
    %1092 = vmatprep.subr.mxu0 0.0
    %1093 = vmatpush1.msra.mxu0 0.0
    %1094 = vmatprep.subr.mxu0 0.0
    %1095 = vmatpush1.msra.mxu0 0.0
    %1096 = vmatprep.subr.mxu0 0.0
    %1097 = vmatpush1.msra.mxu0 0.0
    %1098 = vmatprep.subr.mxu0 0.0
    %1099 = vmatpush1.msra.mxu0 0.0
    %1100 = vmatprep.subr.mxu0 0.0
    %1101 = vmatpush1.msra.mxu0 0.0
    %1102 = vmatprep.subr.mxu0 0.0
    %1103 = vmatpush1.msra.mxu0 0.0
    %1104 = vmatprep.subr.mxu0 0.0
    %1105 = vmatpush1.msra.mxu0 0.0
    %1106 = vmatprep.subr.mxu0 0.0
    %1107 = vmatpush1.msra.mxu0 0.0
    %1108 = vmatprep.subr.mxu0 0.0
    %1109 = vmatpush1.msra.mxu0 0.0
    %1110 = vmatprep.subr.mxu0 0.0
    %1111 = vmatpush1.msra.mxu0 0.0
    %1112 = vmatprep.subr.mxu0 0.0
    %1113 = vmatpush1.msra.mxu0 0.0
    %1114 = vmatprep.subr.mxu0 0.0
    %1115 = vmatpush1.msra.mxu0 0.0
    %1116 = vmatprep.subr.mxu0 0.0
    %1117 = vmatpush1.msra.mxu0 0.0
    %1118 = vmatprep.subr.mxu0 0.0
    %1119 = vmatpush1.msra.mxu0 0.0
    %1120 = vmatprep.subr.mxu0 0.0
    %1121 = vmatpush1.msra.mxu0 0.0
    %1122 = vmatprep.subr.mxu0 0.0
    %1123 = vmatpush1.msra.mxu0 0.0
    %1124 = vmatprep.subr.mxu0 0.0
    %1125 = vmatpush1.msra.mxu0 0.0
    %1126 = vmatprep.subr.mxu0 0.0
    %1127 = vmatpush1.msra.mxu0 0.0
    %1128 = vmatprep.subr.mxu0 0.0
    %1129 = vmatpush1.msra.mxu0 0.0
    %1130 = vmatprep.subr.mxu0 0.0
    %1131 = vmatpush1.msra.mxu0 0.0
    %1132 = vmatprep.subr.mxu0 0.0
    %1133 = vmatpush1.msra.mxu0 0.0
    %1134 = vmatprep.subr.mxu0 0.0
    %1135 = vmatpush1.msra.mxu0 0.0
    %1136 = vmatprep.mubr.f32.mxu0 0.0
    %1137 = vmatmul.mubr.f32.gmra.mrb[0].mxu0 %v920
    %v1138 = vpop.f32.mrb[0].mxu0
    %v1139 = vadd.f32 %v688, %v1138
    %v1140 = vpop.f32.mrb[0].mxu0
    %1141 = vdwg.mxu0
    %v1142 = vmul.f32 %v1066, %v1139
    %v1143 = vadd.f32 %v638, %v1142
    %v1144 = vtanh.pop %v1143
    %v1145 = vsub.f32 %v918, %v1144
    %v1146 = vmul.f32 %v1071, %v1145
    %v1147 = vadd.f32 %v1144, %v1146
    %v1149 = vsel %vm224, %v1147, 0
    %1151 = vmatprep.subr.mxu0 0.0
    %1152 = vmatpush1.msra.mxu0 %v671
    %1153 = vmatprep.subr.mxu0 0.0
    %1154 = vmatpush1.msra.mxu0 %v672
    %1155 = vmatprep.subr.mxu0 0.0
    %1156 = vmatpush1.msra.mxu0 %v673
    %1157 = vmatprep.subr.mxu0 0.0
    %1158 = vmatpush1.msra.mxu0 %v674
    %1159 = vmatprep.subr.mxu0 0.0
    %1160 = vmatpush1.msra.mxu0 0.0
    %1161 = vmatprep.subr.mxu0 0.0
    %1162 = vmatpush1.msra.mxu0 0.0
    %1163 = vmatprep.subr.mxu0 0.0
    %1164 = vmatpush1.msra.mxu0 0.0
    %1165 = vmatprep.subr.mxu0 0.0
    %1166 = vmatpush1.msra.mxu0 0.0
    %1167 = vmatprep.subr.mxu0 0.0
    %1168 = vmatpush1.msra.mxu0 0.0
    %1169 = vmatprep.subr.mxu0 0.0
    %1170 = vmatpush1.msra.mxu0 0.0
    %1171 = vmatprep.subr.mxu0 0.0
    %1172 = vmatpush1.msra.mxu0 0.0
    %1173 = vmatprep.subr.mxu0 0.0
    %1174 = vmatpush1.msra.mxu0 0.0
    %1175 = vmatprep.subr.mxu0 0.0
    %1176 = vmatpush1.msra.mxu0 0.0
    %1177 = vmatprep.subr.mxu0 0.0
    %1178 = vmatpush1.msra.mxu0 0.0
    %1179 = vmatprep.subr.mxu0 0.0
    %1180 = vmatpush1.msra.mxu0 0.0
    %1181 = vmatprep.subr.mxu0 0.0
    %1182 = vmatpush1.msra.mxu0 0.0
    %1183 = vmatprep.subr.mxu0 0.0
    %1184 = vmatpush1.msra.mxu0 0.0
    %1185 = vmatprep.subr.mxu0 0.0
    %1186 = vmatpush1.msra.mxu0 0.0
    %1187 = vmatprep.subr.mxu0 0.0
    %1188 = vmatpush1.msra.mxu0 0.0
    %1189 = vmatprep.subr.mxu0 0.0
    %1190 = vmatpush1.msra.mxu0 0.0
    %1191 = vmatprep.subr.mxu0 0.0
    %1192 = vmatpush1.msra.mxu0 0.0
    %1193 = vmatprep.subr.mxu0 0.0
    %1194 = vmatpush1.msra.mxu0 0.0
    %1195 = vmatprep.subr.mxu0 0.0
    %1196 = vmatpush1.msra.mxu0 0.0
    %1197 = vmatprep.subr.mxu0 0.0
    %1198 = vmatpush1.msra.mxu0 0.0
    %1199 = vmatprep.subr.mxu0 0.0
    %1200 = vmatpush1.msra.mxu0 0.0
    %1201 = vmatprep.subr.mxu0 0.0
    %1202 = vmatpush1.msra.mxu0 0.0
    %1203 = vmatprep.subr.mxu0 0.0
    %1204 = vmatpush1.msra.mxu0 0.0
    %1205 = vmatprep.subr.mxu0 0.0
    %1206 = vmatpush1.msra.mxu0 0.0
    %1207 = vmatprep.subr.mxu0 0.0
    %1208 = vmatpush1.msra.mxu0 0.0
    %1209 = vmatprep.subr.mxu0 0.0
    %1210 = vmatpush1.msra.mxu0 0.0
    %1211 = vmatprep.subr.mxu0 0.0
    %1212 = vmatpush1.msra.mxu0 0.0
    %1213 = vmatprep.subr.mxu0 0.0
    %1214 = vmatpush1.msra.mxu0 0.0
    %1215 = vmatprep.mubr.f32.mxu0 0.0
    %1216 = vmatmul.mubr.f32.gmra.mrb[0].mxu0 %v1149
    %v1217 = vpop.f32.mrb[0].mxu0
    %v1218 = vadd.f32 0.0, %v1217
    %v1219 = vpop.f32.mrb[0].mxu0
    %1220 = vdwg.mxu0
    %1221 = vmatprep.subr.mxu0 0.0
    %1222 = vmatpush1.msra.mxu0 %v675
    %1223 = vmatprep.subr.mxu0 0.0
    %1224 = vmatpush1.msra.mxu0 %v676
    %1225 = vmatprep.subr.mxu0 0.0
    %1226 = vmatpush1.msra.mxu0 %v677
    %1227 = vmatprep.subr.mxu0 0.0
    %1228 = vmatpush1.msra.mxu0 %v678
    %1229 = vmatprep.subr.mxu0 0.0
    %1230 = vmatpush1.msra.mxu0 0.0
    %1231 = vmatprep.subr.mxu0 0.0
    %1232 = vmatpush1.msra.mxu0 0.0
    %1233 = vmatprep.subr.mxu0 0.0
    %1234 = vmatpush1.msra.mxu0 0.0
    %1235 = vmatprep.subr.mxu0 0.0
    %1236 = vmatpush1.msra.mxu0 0.0
    %1237 = vmatprep.subr.mxu0 0.0
    %1238 = vmatpush1.msra.mxu0 0.0
    %1239 = vmatprep.subr.mxu0 0.0
    %1240 = vmatpush1.msra.mxu0 0.0
    %1241 = vmatprep.subr.mxu0 0.0
    %1242 = vmatpush1.msra.mxu0 0.0
    %1243 = vmatprep.subr.mxu0 0.0
    %1244 = vmatpush1.msra.mxu0 0.0
    %1245 = vmatprep.subr.mxu0 0.0
    %1246 = vmatpush1.msra.mxu0 0.0
    %1247 = vmatprep.subr.mxu0 0.0
    %1248 = vmatpush1.msra.mxu0 0.0
    %1249 = vmatprep.subr.mxu0 0.0
    %1250 = vmatpush1.msra.mxu0 0.0
    %1251 = vmatprep.subr.mxu0 0.0
    %1252 = vmatpush1.msra.mxu0 0.0
    %1253 = vmatprep.subr.mxu0 0.0
    %1254 = vmatpush1.msra.mxu0 0.0
    %1255 = vmatprep.subr.mxu0 0.0
    %1256 = vmatpush1.msra.mxu0 0.0
    %1257 = vmatprep.subr.mxu0 0.0
    %1258 = vmatpush1.msra.mxu0 0.0
    %1259 = vmatprep.subr.mxu0 0.0
    %1260 = vmatpush1.msra.mxu0 0.0
    %1261 = vmatprep.subr.mxu0 0.0
    %1262 = vmatpush1.msra.mxu0 0.0
    %1263 = vmatprep.subr.mxu0 0.0
    %1264 = vmatpush1.msra.mxu0 0.0
    %1265 = vmatprep.subr.mxu0 0.0
    %1266 = vmatpush1.msra.mxu0 0.0
    %1267 = vmatprep.subr.mxu0 0.0
    %1268 = vmatpush1.msra.mxu0 0.0
    %1269 = vmatprep.subr.mxu0 0.0
    %1270 = vmatpush1.msra.mxu0 0.0
    %1271 = vmatprep.subr.mxu0 0.0
    %1272 = vmatpush1.msra.mxu0 0.0
    %1273 = vmatprep.subr.mxu0 0.0
    %1274 = vmatpush1.msra.mxu0 0.0
    %1275 = vmatprep.subr.mxu0 0.0
    %1276 = vmatpush1.msra.mxu0 0.0
    %1277 = vmatprep.subr.mxu0 0.0
    %1278 = vmatpush1.msra.mxu0 0.0
    %1279 = vmatprep.subr.mxu0 0.0
    %1280 = vmatpush1.msra.mxu0 0.0
    %1281 = vmatprep.subr.mxu0 0.0
    %1282 = vmatpush1.msra.mxu0 0.0
    %1283 = vmatprep.subr.mxu0 0.0
    %1284 = vmatpush1.msra.mxu0 0.0
    %1285 = vmatprep.mubr.f32.mxu0 0.0
    %1286 = vmatmul.mubr.f32.gmra.mrb[0].mxu0 %v1149
    %v1287 = vpop.f32.mrb[0].mxu0
    %v1288 = vadd.f32 0.0, %v1287
    %v1289 = vpop.f32.mrb[0].mxu0
    %1290 = vdwg.mxu0
    %v1291 = vadd.f32 %v411, %v1218
    %v1292 = vmul.f32 %v1291, 0.5
    %v1293 = vtanh.pop %v1292
    %v1294 = vmul.f32 %v1293, 0.5
    %v1295 = vadd.f32 %v1294, 0.5
    %v1296 = vadd.f32 %v527, %v1288
    %v1297 = vmul.f32 %v1296, 0.5
    %v1298 = vtanh.pop %v1297
    %v1299 = vmul.f32 %v1298, 0.5
    %v1300 = vadd.f32 %v1299, 0.5
    %1301 = vmatprep.subr.mxu0 0.0
    %1302 = vmatpush1.msra.mxu0 %v679
    %1303 = vmatprep.subr.mxu0 0.0
    %1304 = vmatpush1.msra.mxu0 %v680
    %1305 = vmatprep.subr.mxu0 0.0
    %1306 = vmatpush1.msra.mxu0 %v681
    %1307 = vmatprep.subr.mxu0 0.0
    %1308 = vmatpush1.msra.mxu0 %v682
    %1309 = vmatprep.subr.mxu0 0.0
    %1310 = vmatpush1.msra.mxu0 0.0
    %1311 = vmatprep.subr.mxu0 0.0
    %1312 = vmatpush1.msra.mxu0 0.0
    %1313 = vmatprep.subr.mxu0 0.0
    %1314 = vmatpush1.msra.mxu0 0.0
    %1315 = vmatprep.subr.mxu0 0.0
    %1316 = vmatpush1.msra.mxu0 0.0
    %1317 = vmatprep.subr.mxu0 0.0
    %1318 = vmatpush1.msra.mxu0 0.0
    %1319 = vmatprep.subr.mxu0 0.0
    %1320 = vmatpush1.msra.mxu0 0.0
    %1321 = vmatprep.subr.mxu0 0.0
    %1322 = vmatpush1.msra.mxu0 0.0
    %1323 = vmatprep.subr.mxu0 0.0
    %1324 = vmatpush1.msra.mxu0 0.0
    %1325 = vmatprep.subr.mxu0 0.0
    %1326 = vmatpush1.msra.mxu0 0.0
    %1327 = vmatprep.subr.mxu0 0.0
    %1328 = vmatpush1.msra.mxu0 0.0
    %1329 = vmatprep.subr.mxu0 0.0
    %1330 = vmatpush1.msra.mxu0 0.0
    %1331 = vmatprep.subr.mxu0 0.0
    %1332 = vmatpush1.msra.mxu0 0.0
    %1333 = vmatprep.subr.mxu0 0.0
    %1334 = vmatpush1.msra.mxu0 0.0
    %1335 = vmatprep.subr.mxu0 0.0
    %1336 = vmatpush1.msra.mxu0 0.0
    %1337 = vmatprep.subr.mxu0 0.0
    %1338 = vmatpush1.msra.mxu0 0.0
    %1339 = vmatprep.subr.mxu0 0.0
    %1340 = vmatpush1.msra.mxu0 0.0
    %1341 = vmatprep.subr.mxu0 0.0
    %1342 = vmatpush1.msra.mxu0 0.0
    %1343 = vmatprep.subr.mxu0 0.0
    %1344 = vmatpush1.msra.mxu0 0.0
    %1345 = vmatprep.subr.mxu0 0.0
    %1346 = vmatpush1.msra.mxu0 0.0
    %1347 = vmatprep.subr.mxu0 0.0
    %1348 = vmatpush1.msra.mxu0 0.0
    %1349 = vmatprep.subr.mxu0 0.0
    %1350 = vmatpush1.msra.mxu0 0.0
    %1351 = vmatprep.subr.mxu0 0.0
    %1352 = vmatpush1.msra.mxu0 0.0
    %1353 = vmatprep.subr.mxu0 0.0
    %1354 = vmatpush1.msra.mxu0 0.0
    %1355 = vmatprep.subr.mxu0 0.0
    %1356 = vmatpush1.msra.mxu0 0.0
    %1357 = vmatprep.subr.mxu0 0.0
    %1358 = vmatpush1.msra.mxu0 0.0
    %1359 = vmatprep.subr.mxu0 0.0
    %1360 = vmatpush1.msra.mxu0 0.0
    %1361 = vmatprep.subr.mxu0 0.0
    %1362 = vmatpush1.msra.mxu0 0.0
    %1363 = vmatprep.subr.mxu0 0.0
    %1364 = vmatpush1.msra.mxu0 0.0
    %1365 = vmatprep.mubr.f32.mxu0 0.0
    %1366 = vmatmul.mubr.f32.gmra.mrb[0].mxu0 %v1149
    %v1367 = vpop.f32.mrb[0].mxu0
    %v1368 = vadd.f32 %v688, %v1367
    %v1369 = vpop.f32.mrb[0].mxu0
    %1370 = vdwg.mxu0
    %v1371 = vmul.f32 %v1295, %v1368
    %v1372 = vadd.f32 %v643, %v1371
    %v1373 = vtanh.pop %v1372
    %v1374 = vsub.f32 %v1147, %v1373
    %v1375 = vmul.f32 %v1300, %v1374
    %v1376 = vadd.f32 %v1373, %v1375
    %v1378 = vsel %vm224, %v1376, 0
    %1380 = vmatprep.subr.mxu0 0.0
    %1381 = vmatpush1.msra.mxu0 %v671
    %1382 = vmatprep.subr.mxu0 0.0
    %1383 = vmatpush1.msra.mxu0 %v672
    %1384 = vmatprep.subr.mxu0 0.0
    %1385 = vmatpush1.msra.mxu0 %v673
    %1386 = vmatprep.subr.mxu0 0.0
    %1387 = vmatpush1.msra.mxu0 %v674
    %1388 = vmatprep.subr.mxu0 0.0
    %1389 = vmatpush1.msra.mxu0 0.0
    %1390 = vmatprep.subr.mxu0 0.0
    %1391 = vmatpush1.msra.mxu0 0.0
    %1392 = vmatprep.subr.mxu0 0.0
    %1393 = vmatpush1.msra.mxu0 0.0
    %1394 = vmatprep.subr.mxu0 0.0
    %1395 = vmatpush1.msra.mxu0 0.0
    %1396 = vmatprep.subr.mxu0 0.0
    %1397 = vmatpush1.msra.mxu0 0.0
    %1398 = vmatprep.subr.mxu0 0.0
    %1399 = vmatpush1.msra.mxu0 0.0
    %1400 = vmatprep.subr.mxu0 0.0
    %1401 = vmatpush1.msra.mxu0 0.0
    %1402 = vmatprep.subr.mxu0 0.0
    %1403 = vmatpush1.msra.mxu0 0.0
    %1404 = vmatprep.subr.mxu0 0.0
    %1405 = vmatpush1.msra.mxu0 0.0
    %1406 = vmatprep.subr.mxu0 0.0
    %1407 = vmatpush1.msra.mxu0 0.0
    %1408 = vmatprep.subr.mxu0 0.0
    %1409 = vmatpush1.msra.mxu0 0.0
    %1410 = vmatprep.subr.mxu0 0.0
    %1411 = vmatpush1.msra.mxu0 0.0
    %1412 = vmatprep.subr.mxu0 0.0
    %1413 = vmatpush1.msra.mxu0 0.0
    %1414 = vmatprep.subr.mxu0 0.0
    %1415 = vmatpush1.msra.mxu0 0.0
    %1416 = vmatprep.subr.mxu0 0.0
    %1417 = vmatpush1.msra.mxu0 0.0
    %1418 = vmatprep.subr.mxu0 0.0
    %1419 = vmatpush1.msra.mxu0 0.0
    %1420 = vmatprep.subr.mxu0 0.0
    %1421 = vmatpush1.msra.mxu0 0.0
    %1422 = vmatprep.subr.mxu0 0.0
    %1423 = vmatpush1.msra.mxu0 0.0
    %1424 = vmatprep.subr.mxu0 0.0
    %1425 = vmatpush1.msra.mxu0 0.0
    %1426 = vmatprep.subr.mxu0 0.0
    %1427 = vmatpush1.msra.mxu0 0.0
    %1428 = vmatprep.subr.mxu0 0.0
    %1429 = vmatpush1.msra.mxu0 0.0
    %1430 = vmatprep.subr.mxu0 0.0
    %1431 = vmatpush1.msra.mxu0 0.0
    %1432 = vmatprep.subr.mxu0 0.0
    %1433 = vmatpush1.msra.mxu0 0.0
    %1434 = vmatprep.subr.mxu0 0.0
    %1435 = vmatpush1.msra.mxu0 0.0
    %1436 = vmatprep.subr.mxu0 0.0
    %1437 = vmatpush1.msra.mxu0 0.0
    %1438 = vmatprep.subr.mxu0 0.0
    %1439 = vmatpush1.msra.mxu0 0.0
    %1440 = vmatprep.subr.mxu0 0.0
    %1441 = vmatpush1.msra.mxu0 0.0
    %1442 = vmatprep.subr.mxu0 0.0
    %1443 = vmatpush1.msra.mxu0 0.0
    %1444 = vmatprep.mubr.f32.mxu0 0.0
    %1445 = vmatmul.mubr.f32.gmra.mrb[0].mxu0 %v1378
    %v1446 = vpop.f32.mrb[0].mxu0
    %v1447 = vadd.f32 0.0, %v1446
    %v1448 = vpop.f32.mrb[0].mxu0
    %1449 = vdwg.mxu0
    %1450 = vmatprep.subr.mxu0 0.0
    %1451 = vmatpush1.msra.mxu0 %v675
    %1452 = vmatprep.subr.mxu0 0.0
    %1453 = vmatpush1.msra.mxu0 %v676
    %1454 = vmatprep.subr.mxu0 0.0
    %1455 = vmatpush1.msra.mxu0 %v677
    %1456 = vmatprep.subr.mxu0 0.0
    %1457 = vmatpush1.msra.mxu0 %v678
    %1458 = vmatprep.subr.mxu0 0.0
    %1459 = vmatpush1.msra.mxu0 0.0
    %1460 = vmatprep.subr.mxu0 0.0
    %1461 = vmatpush1.msra.mxu0 0.0
    %1462 = vmatprep.subr.mxu0 0.0
    %1463 = vmatpush1.msra.mxu0 0.0
    %1464 = vmatprep.subr.mxu0 0.0
    %1465 = vmatpush1.msra.mxu0 0.0
    %1466 = vmatprep.subr.mxu0 0.0
    %1467 = vmatpush1.msra.mxu0 0.0
    %1468 = vmatprep.subr.mxu0 0.0
    %1469 = vmatpush1.msra.mxu0 0.0
    %1470 = vmatprep.subr.mxu0 0.0
    %1471 = vmatpush1.msra.mxu0 0.0
    %1472 = vmatprep.subr.mxu0 0.0
    %1473 = vmatpush1.msra.mxu0 0.0
    %1474 = vmatprep.subr.mxu0 0.0
    %1475 = vmatpush1.msra.mxu0 0.0
    %1476 = vmatprep.subr.mxu0 0.0
    %1477 = vmatpush1.msra.mxu0 0.0
    %1478 = vmatprep.subr.mxu0 0.0
    %1479 = vmatpush1.msra.mxu0 0.0
    %1480 = vmatprep.subr.mxu0 0.0
    %1481 = vmatpush1.msra.mxu0 0.0
    %1482 = vmatprep.subr.mxu0 0.0
    %1483 = vmatpush1.msra.mxu0 0.0
    %1484 = vmatprep.subr.mxu0 0.0
    %1485 = vmatpush1.msra.mxu0 0.0
    %1486 = vmatprep.subr.mxu0 0.0
    %1487 = vmatpush1.msra.mxu0 0.0
    %1488 = vmatprep.subr.mxu0 0.0
    %1489 = vmatpush1.msra.mxu0 0.0
    %1490 = vmatprep.subr.mxu0 0.0
    %1491 = vmatpush1.msra.mxu0 0.0
    %1492 = vmatprep.subr.mxu0 0.0
    %1493 = vmatpush1.msra.mxu0 0.0
    %1494 = vmatprep.subr.mxu0 0.0
    %1495 = vmatpush1.msra.mxu0 0.0
    %1496 = vmatprep.subr.mxu0 0.0
    %1497 = vmatpush1.msra.mxu0 0.0
    %1498 = vmatprep.subr.mxu0 0.0
    %1499 = vmatpush1.msra.mxu0 0.0
    %1500 = vmatprep.subr.mxu0 0.0
    %1501 = vmatpush1.msra.mxu0 0.0
    %1502 = vmatprep.subr.mxu0 0.0
    %1503 = vmatpush1.msra.mxu0 0.0
    %1504 = vmatprep.subr.mxu0 0.0
    %1505 = vmatpush1.msra.mxu0 0.0
    %1506 = vmatprep.subr.mxu0 0.0
    %1507 = vmatpush1.msra.mxu0 0.0
    %1508 = vmatprep.subr.mxu0 0.0
    %1509 = vmatpush1.msra.mxu0 0.0
    %1510 = vmatprep.subr.mxu0 0.0
    %1511 = vmatpush1.msra.mxu0 0.0
    %1512 = vmatprep.subr.mxu0 0.0
    %1513 = vmatpush1.msra.mxu0 0.0
    %1514 = vmatprep.mubr.f32.mxu0 0.0
    %1515 = vmatmul.mubr.f32.gmra.mrb[0].mxu0 %v1378
    %v1516 = vpop.f32.mrb[0].mxu0
    %v1517 = vadd.f32 0.0, %v1516
    %v1518 = vpop.f32.mrb[0].mxu0
    %1519 = vdwg.mxu0
    %v1520 = vadd.f32 %v416, %v1447
    %v1521 = vmul.f32 %v1520, 0.5
    %v1522 = vtanh.pop %v1521
    %v1523 = vmul.f32 %v1522, 0.5
    %v1524 = vadd.f32 %v1523, 0.5
    %v1525 = vadd.f32 %v532, %v1517
    %v1526 = vmul.f32 %v1525, 0.5
    %v1527 = vtanh.pop %v1526
    %v1528 = vmul.f32 %v1527, 0.5
    %v1529 = vadd.f32 %v1528, 0.5
    %1530 = vmatprep.subr.mxu0 0.0
    %1531 = vmatpush1.msra.mxu0 %v679
    %1532 = vmatprep.subr.mxu0 0.0
    %1533 = vmatpush1.msra.mxu0 %v680
    %1534 = vmatprep.subr.mxu0 0.0
    %1535 = vmatpush1.msra.mxu0 %v681
    %1536 = vmatprep.subr.mxu0 0.0
    %1537 = vmatpush1.msra.mxu0 %v682
    %1538 = vmatprep.subr.mxu0 0.0
    %1539 = vmatpush1.msra.mxu0 0.0
    %1540 = vmatprep.subr.mxu0 0.0
    %1541 = vmatpush1.msra.mxu0 0.0
    %1542 = vmatprep.subr.mxu0 0.0
    %1543 = vmatpush1.msra.mxu0 0.0
    %1544 = vmatprep.subr.mxu0 0.0
    %1545 = vmatpush1.msra.mxu0 0.0
    %1546 = vmatprep.subr.mxu0 0.0
    %1547 = vmatpush1.msra.mxu0 0.0
    %1548 = vmatprep.subr.mxu0 0.0
    %1549 = vmatpush1.msra.mxu0 0.0
    %1550 = vmatprep.subr.mxu0 0.0
    %1551 = vmatpush1.msra.mxu0 0.0
    %1552 = vmatprep.subr.mxu0 0.0
    %1553 = vmatpush1.msra.mxu0 0.0
    %1554 = vmatprep.subr.mxu0 0.0
    %1555 = vmatpush1.msra.mxu0 0.0
    %1556 = vmatprep.subr.mxu0 0.0
    %1557 = vmatpush1.msra.mxu0 0.0
    %1558 = vmatprep.subr.mxu0 0.0
    %1559 = vmatpush1.msra.mxu0 0.0
    %1560 = vmatprep.subr.mxu0 0.0
    %1561 = vmatpush1.msra.mxu0 0.0
    %1562 = vmatprep.subr.mxu0 0.0
    %1563 = vmatpush1.msra.mxu0 0.0
    %1564 = vmatprep.subr.mxu0 0.0
    %1565 = vmatpush1.msra.mxu0 0.0
    %1566 = vmatprep.subr.mxu0 0.0
    %1567 = vmatpush1.msra.mxu0 0.0
    %1568 = vmatprep.subr.mxu0 0.0
    %1569 = vmatpush1.msra.mxu0 0.0
    %1570 = vmatprep.subr.mxu0 0.0
    %1571 = vmatpush1.msra.mxu0 0.0
    %1572 = vmatprep.subr.mxu0 0.0
    %1573 = vmatpush1.msra.mxu0 0.0
    %1574 = vmatprep.subr.mxu0 0.0
    %1575 = vmatpush1.msra.mxu0 0.0
    %1576 = vmatprep.subr.mxu0 0.0
    %1577 = vmatpush1.msra.mxu0 0.0
    %1578 = vmatprep.subr.mxu0 0.0
    %1579 = vmatpush1.msra.mxu0 0.0
    %1580 = vmatprep.subr.mxu0 0.0
    %1581 = vmatpush1.msra.mxu0 0.0
    %1582 = vmatprep.subr.mxu0 0.0
    %1583 = vmatpush1.msra.mxu0 0.0
    %1584 = vmatprep.subr.mxu0 0.0
    %1585 = vmatpush1.msra.mxu0 0.0
    %1586 = vmatprep.subr.mxu0 0.0
    %1587 = vmatpush1.msra.mxu0 0.0
    %1588 = vmatprep.subr.mxu0 0.0
    %1589 = vmatpush1.msra.mxu0 0.0
    %1590 = vmatprep.subr.mxu0 0.0
    %1591 = vmatpush1.msra.mxu0 0.0
    %1592 = vmatprep.subr.mxu0 0.0
    %1593 = vmatpush1.msra.mxu0 0.0
    %1594 = vmatprep.mubr.f32.mxu0 0.0
    %1595 = vmatmul.mubr.f32.gmra.mrb[0].mxu0 %v1378
    %v1596 = vpop.f32.mrb[0].mxu0
    %v1597 = vadd.f32 %v688, %v1596
    %v1598 = vpop.f32.mrb[0].mxu0
    %1599 = vdwg.mxu0
    %v1600 = vmul.f32 %v1524, %v1597
    %v1601 = vadd.f32 %v648, %v1600
    %v1602 = vtanh.pop %v1601
    %v1603 = vsub.f32 %v1376, %v1602
    %v1604 = vmul.f32 %v1529, %v1603
    %v1605 = vadd.f32 %v1602, %v1604
    %v1607 = vsel %vm224, %v1605, 0
    %1609 = vmatprep.subr.mxu0 0.0
    %1610 = vmatpush1.msra.mxu0 %v671
    %1611 = vmatprep.subr.mxu0 0.0
    %1612 = vmatpush1.msra.mxu0 %v672
    %1613 = vmatprep.subr.mxu0 0.0
    %1614 = vmatpush1.msra.mxu0 %v673
    %1615 = vmatprep.subr.mxu0 0.0
    %1616 = vmatpush1.msra.mxu0 %v674
    %1617 = vmatprep.subr.mxu0 0.0
    %1618 = vmatpush1.msra.mxu0 0.0
    %1619 = vmatprep.subr.mxu0 0.0
    %1620 = vmatpush1.msra.mxu0 0.0
    %1621 = vmatprep.subr.mxu0 0.0
    %1622 = vmatpush1.msra.mxu0 0.0
    %1623 = vmatprep.subr.mxu0 0.0
    %1624 = vmatpush1.msra.mxu0 0.0
    %1625 = vmatprep.subr.mxu0 0.0
    %1626 = vmatpush1.msra.mxu0 0.0
    %1627 = vmatprep.subr.mxu0 0.0
    %1628 = vmatpush1.msra.mxu0 0.0
    %1629 = vmatprep.subr.mxu0 0.0
    %1630 = vmatpush1.msra.mxu0 0.0
    %1631 = vmatprep.subr.mxu0 0.0
    %1632 = vmatpush1.msra.mxu0 0.0
    %1633 = vmatprep.subr.mxu0 0.0
    %1634 = vmatpush1.msra.mxu0 0.0
    %1635 = vmatprep.subr.mxu0 0.0
    %1636 = vmatpush1.msra.mxu0 0.0
    %1637 = vmatprep.subr.mxu0 0.0
    %1638 = vmatpush1.msra.mxu0 0.0
    %1639 = vmatprep.subr.mxu0 0.0
    %1640 = vmatpush1.msra.mxu0 0.0
    %1641 = vmatprep.subr.mxu0 0.0
    %1642 = vmatpush1.msra.mxu0 0.0
    %1643 = vmatprep.subr.mxu0 0.0
    %1644 = vmatpush1.msra.mxu0 0.0
    %1645 = vmatprep.subr.mxu0 0.0
    %1646 = vmatpush1.msra.mxu0 0.0
    %1647 = vmatprep.subr.mxu0 0.0
    %1648 = vmatpush1.msra.mxu0 0.0
    %1649 = vmatprep.subr.mxu0 0.0
    %1650 = vmatpush1.msra.mxu0 0.0
    %1651 = vmatprep.subr.mxu0 0.0
    %1652 = vmatpush1.msra.mxu0 0.0
    %1653 = vmatprep.subr.mxu0 0.0
    %1654 = vmatpush1.msra.mxu0 0.0
    %1655 = vmatprep.subr.mxu0 0.0
    %1656 = vmatpush1.msra.mxu0 0.0
    %1657 = vmatprep.subr.mxu0 0.0
    %1658 = vmatpush1.msra.mxu0 0.0
    %1659 = vmatprep.subr.mxu0 0.0
    %1660 = vmatpush1.msra.mxu0 0.0
    %1661 = vmatprep.subr.mxu0 0.0
    %1662 = vmatpush1.msra.mxu0 0.0
    %1663 = vmatprep.subr.mxu0 0.0
    %1664 = vmatpush1.msra.mxu0 0.0
    %1665 = vmatprep.subr.mxu0 0.0
    %1666 = vmatpush1.msra.mxu0 0.0
    %1667 = vmatprep.subr.mxu0 0.0
    %1668 = vmatpush1.msra.mxu0 0.0
    %1669 = vmatprep.subr.mxu0 0.0
    %1670 = vmatpush1.msra.mxu0 0.0
    %1671 = vmatprep.subr.mxu0 0.0
    %1672 = vmatpush1.msra.mxu0 0.0
    %1673 = vmatprep.mubr.f32.mxu0 0.0
    %1674 = vmatmul.mubr.f32.gmra.mrb[0].mxu0 %v1607
    %v1675 = vpop.f32.mrb[0].mxu0
    %v1676 = vadd.f32 0.0, %v1675
    %v1677 = vpop.f32.mrb[0].mxu0
    %1678 = vdwg.mxu0
    %1679 = vmatprep.subr.mxu0 0.0
    %1680 = vmatpush1.msra.mxu0 %v675
    %1681 = vmatprep.subr.mxu0 0.0
    %1682 = vmatpush1.msra.mxu0 %v676
    %1683 = vmatprep.subr.mxu0 0.0
    %1684 = vmatpush1.msra.mxu0 %v677
    %1685 = vmatprep.subr.mxu0 0.0
    %1686 = vmatpush1.msra.mxu0 %v678
    %1687 = vmatprep.subr.mxu0 0.0
    %1688 = vmatpush1.msra.mxu0 0.0
    %1689 = vmatprep.subr.mxu0 0.0
    %1690 = vmatpush1.msra.mxu0 0.0
    %1691 = vmatprep.subr.mxu0 0.0
    %1692 = vmatpush1.msra.mxu0 0.0
    %1693 = vmatprep.subr.mxu0 0.0
    %1694 = vmatpush1.msra.mxu0 0.0
    %1695 = vmatprep.subr.mxu0 0.0
    %1696 = vmatpush1.msra.mxu0 0.0
    %1697 = vmatprep.subr.mxu0 0.0
    %1698 = vmatpush1.msra.mxu0 0.0
    %1699 = vmatprep.subr.mxu0 0.0
    %1700 = vmatpush1.msra.mxu0 0.0
    %1701 = vmatprep.subr.mxu0 0.0
    %1702 = vmatpush1.msra.mxu0 0.0
    %1703 = vmatprep.subr.mxu0 0.0
    %1704 = vmatpush1.msra.mxu0 0.0
    %1705 = vmatprep.subr.mxu0 0.0
    %1706 = vmatpush1.msra.mxu0 0.0
    %1707 = vmatprep.subr.mxu0 0.0
    %1708 = vmatpush1.msra.mxu0 0.0
    %1709 = vmatprep.subr.mxu0 0.0
    %1710 = vmatpush1.msra.mxu0 0.0
    %1711 = vmatprep.subr.mxu0 0.0
    %1712 = vmatpush1.msra.mxu0 0.0
    %1713 = vmatprep.subr.mxu0 0.0
    %1714 = vmatpush1.msra.mxu0 0.0
    %1715 = vmatprep.subr.mxu0 0.0
    %1716 = vmatpush1.msra.mxu0 0.0
    %1717 = vmatprep.subr.mxu0 0.0
    %1718 = vmatpush1.msra.mxu0 0.0
    %1719 = vmatprep.subr.mxu0 0.0
    %1720 = vmatpush1.msra.mxu0 0.0
    %1721 = vmatprep.subr.mxu0 0.0
    %1722 = vmatpush1.msra.mxu0 0.0
    %1723 = vmatprep.subr.mxu0 0.0
    %1724 = vmatpush1.msra.mxu0 0.0
    %1725 = vmatprep.subr.mxu0 0.0
    %1726 = vmatpush1.msra.mxu0 0.0
    %1727 = vmatprep.subr.mxu0 0.0
    %1728 = vmatpush1.msra.mxu0 0.0
    %1729 = vmatprep.subr.mxu0 0.0
    %1730 = vmatpush1.msra.mxu0 0.0
    %1731 = vmatprep.subr.mxu0 0.0
    %1732 = vmatpush1.msra.mxu0 0.0
    %1733 = vmatprep.subr.mxu0 0.0
    %1734 = vmatpush1.msra.mxu0 0.0
    %1735 = vmatprep.subr.mxu0 0.0
    %1736 = vmatpush1.msra.mxu0 0.0
    %1737 = vmatprep.subr.mxu0 0.0
    %1738 = vmatpush1.msra.mxu0 0.0
    %1739 = vmatprep.subr.mxu0 0.0
    %1740 = vmatpush1.msra.mxu0 0.0
    %1741 = vmatprep.subr.mxu0 0.0
    %1742 = vmatpush1.msra.mxu0 0.0
    %1743 = vmatprep.mubr.f32.mxu0 0.0
    %1744 = vmatmul.mubr.f32.gmra.mrb[0].mxu0 %v1607
    %v1745 = vpop.f32.mrb[0].mxu0
    %v1746 = vadd.f32 0.0, %v1745
    %v1747 = vpop.f32.mrb[0].mxu0
    %1748 = vdwg.mxu0
    %v1749 = vadd.f32 %v421, %v1676
    %v1750 = vmul.f32 %v1749, 0.5
    %v1751 = vtanh.pop %v1750
    %v1752 = vmul.f32 %v1751, 0.5
    %v1753 = vadd.f32 %v1752, 0.5
    %v1754 = vadd.f32 %v537, %v1746
    %v1755 = vmul.f32 %v1754, 0.5
    %v1756 = vtanh.pop %v1755
    %v1757 = vmul.f32 %v1756, 0.5
    %v1758 = vadd.f32 %v1757, 0.5
    %1759 = vmatprep.subr.mxu0 0.0
    %1760 = vmatpush1.msra.mxu0 %v679
    %1761 = vmatprep.subr.mxu0 0.0
    %1762 = vmatpush1.msra.mxu0 %v680
    %1763 = vmatprep.subr.mxu0 0.0
    %1764 = vmatpush1.msra.mxu0 %v681
    %1765 = vmatprep.subr.mxu0 0.0
    %1766 = vmatpush1.msra.mxu0 %v682
    %1767 = vmatprep.subr.mxu0 0.0
    %1768 = vmatpush1.msra.mxu0 0.0
    %1769 = vmatprep.subr.mxu0 0.0
    %1770 = vmatpush1.msra.mxu0 0.0
    %1771 = vmatprep.subr.mxu0 0.0
    %1772 = vmatpush1.msra.mxu0 0.0
    %1773 = vmatprep.subr.mxu0 0.0
    %1774 = vmatpush1.msra.mxu0 0.0
    %1775 = vmatprep.subr.mxu0 0.0
    %1776 = vmatpush1.msra.mxu0 0.0
    %1777 = vmatprep.subr.mxu0 0.0
    %1778 = vmatpush1.msra.mxu0 0.0
    %1779 = vmatprep.subr.mxu0 0.0
    %1780 = vmatpush1.msra.mxu0 0.0
    %1781 = vmatprep.subr.mxu0 0.0
    %1782 = vmatpush1.msra.mxu0 0.0
    %1783 = vmatprep.subr.mxu0 0.0
    %1784 = vmatpush1.msra.mxu0 0.0
    %1785 = vmatprep.subr.mxu0 0.0
    %1786 = vmatpush1.msra.mxu0 0.0
    %1787 = vmatprep.subr.mxu0 0.0
    %1788 = vmatpush1.msra.mxu0 0.0
    %1789 = vmatprep.subr.mxu0 0.0
    %1790 = vmatpush1.msra.mxu0 0.0
    %1791 = vmatprep.subr.mxu0 0.0
    %1792 = vmatpush1.msra.mxu0 0.0
    %1793 = vmatprep.subr.mxu0 0.0
    %1794 = vmatpush1.msra.mxu0 0.0
    %1795 = vmatprep.subr.mxu0 0.0
    %1796 = vmatpush1.msra.mxu0 0.0
    %1797 = vmatprep.subr.mxu0 0.0
    %1798 = vmatpush1.msra.mxu0 0.0
    %1799 = vmatprep.subr.mxu0 0.0
    %1800 = vmatpush1.msra.mxu0 0.0
    %1801 = vmatprep.subr.mxu0 0.0
    %1802 = vmatpush1.msra.mxu0 0.0
    %1803 = vmatprep.subr.mxu0 0.0
    %1804 = vmatpush1.msra.mxu0 0.0
    %1805 = vmatprep.subr.mxu0 0.0
    %1806 = vmatpush1.msra.mxu0 0.0
    %1807 = vmatprep.subr.mxu0 0.0
    %1808 = vmatpush1.msra.mxu0 0.0
    %1809 = vmatprep.subr.mxu0 0.0
    %1810 = vmatpush1.msra.mxu0 0.0
    %1811 = vmatprep.subr.mxu0 0.0
    %1812 = vmatpush1.msra.mxu0 0.0
    %1813 = vmatprep.subr.mxu0 0.0
    %1814 = vmatpush1.msra.mxu0 0.0
    %1815 = vmatprep.subr.mxu0 0.0
    %1816 = vmatpush1.msra.mxu0 0.0
    %1817 = vmatprep.subr.mxu0 0.0
    %1818 = vmatpush1.msra.mxu0 0.0
    %1819 = vmatprep.subr.mxu0 0.0
    %1820 = vmatpush1.msra.mxu0 0.0
    %1821 = vmatprep.subr.mxu0 0.0
    %1822 = vmatpush1.msra.mxu0 0.0
    %1823 = vmatprep.mubr.f32.mxu0 0.0
    %1824 = vmatmul.mubr.f32.gmra.mrb[0].mxu0 %v1607
    %v1825 = vpop.f32.mrb[0].mxu0
    %v1826 = vadd.f32 %v688, %v1825
    %v1827 = vpop.f32.mrb[0].mxu0
    %1828 = vdwg.mxu0
    %v1829 = vmul.f32 %v1753, %v1826
    %v1830 = vadd.f32 %v653, %v1829
    %v1831 = vtanh.pop %v1830
    %v1832 = vsub.f32 %v1605, %v1831
    %v1833 = vmul.f32 %v1758, %v1832
    %v1834 = vadd.f32 %v1831, %v1833
    %v1836 = vsel %vm224, %v1834, 0
    %1838 = vmatprep.subr.mxu0 0.0
    %1839 = vmatpush1.msra.mxu0 %v671
    %1840 = vmatprep.subr.mxu0 0.0
    %1841 = vmatpush1.msra.mxu0 %v672
    %1842 = vmatprep.subr.mxu0 0.0
    %1843 = vmatpush1.msra.mxu0 %v673
    %1844 = vmatprep.subr.mxu0 0.0
    %1845 = vmatpush1.msra.mxu0 %v674
    %1846 = vmatprep.subr.mxu0 0.0
    %1847 = vmatpush1.msra.mxu0 0.0
    %1848 = vmatprep.subr.mxu0 0.0
    %1849 = vmatpush1.msra.mxu0 0.0
    %1850 = vmatprep.subr.mxu0 0.0
    %1851 = vmatpush1.msra.mxu0 0.0
    %1852 = vmatprep.subr.mxu0 0.0
    %1853 = vmatpush1.msra.mxu0 0.0
    %1854 = vmatprep.subr.mxu0 0.0
    %1855 = vmatpush1.msra.mxu0 0.0
    %1856 = vmatprep.subr.mxu0 0.0
    %1857 = vmatpush1.msra.mxu0 0.0
    %1858 = vmatprep.subr.mxu0 0.0
    %1859 = vmatpush1.msra.mxu0 0.0
    %1860 = vmatprep.subr.mxu0 0.0
    %1861 = vmatpush1.msra.mxu0 0.0
    %1862 = vmatprep.subr.mxu0 0.0
    %1863 = vmatpush1.msra.mxu0 0.0
    %1864 = vmatprep.subr.mxu0 0.0
    %1865 = vmatpush1.msra.mxu0 0.0
    %1866 = vmatprep.subr.mxu0 0.0
    %1867 = vmatpush1.msra.mxu0 0.0
    %1868 = vmatprep.subr.mxu0 0.0
    %1869 = vmatpush1.msra.mxu0 0.0
    %1870 = vmatprep.subr.mxu0 0.0
    %1871 = vmatpush1.msra.mxu0 0.0
    %1872 = vmatprep.subr.mxu0 0.0
    %1873 = vmatpush1.msra.mxu0 0.0
    %1874 = vmatprep.subr.mxu0 0.0
    %1875 = vmatpush1.msra.mxu0 0.0
    %1876 = vmatprep.subr.mxu0 0.0
    %1877 = vmatpush1.msra.mxu0 0.0
    %1878 = vmatprep.subr.mxu0 0.0
    %1879 = vmatpush1.msra.mxu0 0.0
    %1880 = vmatprep.subr.mxu0 0.0
    %1881 = vmatpush1.msra.mxu0 0.0
    %1882 = vmatprep.subr.mxu0 0.0
    %1883 = vmatpush1.msra.mxu0 0.0
    %1884 = vmatprep.subr.mxu0 0.0
    %1885 = vmatpush1.msra.mxu0 0.0
    %1886 = vmatprep.subr.mxu0 0.0
    %1887 = vmatpush1.msra.mxu0 0.0
    %1888 = vmatprep.subr.mxu0 0.0
    %1889 = vmatpush1.msra.mxu0 0.0
    %1890 = vmatprep.subr.mxu0 0.0
    %1891 = vmatpush1.msra.mxu0 0.0
    %1892 = vmatprep.subr.mxu0 0.0
    %1893 = vmatpush1.msra.mxu0 0.0
    %1894 = vmatprep.subr.mxu0 0.0
    %1895 = vmatpush1.msra.mxu0 0.0
    %1896 = vmatprep.subr.mxu0 0.0
    %1897 = vmatpush1.msra.mxu0 0.0
    %1898 = vmatprep.subr.mxu0 0.0
    %1899 = vmatpush1.msra.mxu0 0.0
    %1900 = vmatprep.subr.mxu0 0.0
    %1901 = vmatpush1.msra.mxu0 0.0
    %1902 = vmatprep.mubr.f32.mxu0 0.0
    %1903 = vmatmul.mubr.f32.gmra.mrb[0].mxu0 %v1836
    %v1904 = vpop.f32.mrb[0].mxu0
    %v1905 = vadd.f32 0.0, %v1904
    %v1906 = vpop.f32.mrb[0].mxu0
    %1907 = vdwg.mxu0
    %1908 = vmatprep.subr.mxu0 0.0
    %1909 = vmatpush1.msra.mxu0 %v675
    %1910 = vmatprep.subr.mxu0 0.0
    %1911 = vmatpush1.msra.mxu0 %v676
    %1912 = vmatprep.subr.mxu0 0.0
    %1913 = vmatpush1.msra.mxu0 %v677
    %1914 = vmatprep.subr.mxu0 0.0
    %1915 = vmatpush1.msra.mxu0 %v678
    %1916 = vmatprep.subr.mxu0 0.0
    %1917 = vmatpush1.msra.mxu0 0.0
    %1918 = vmatprep.subr.mxu0 0.0
    %1919 = vmatpush1.msra.mxu0 0.0
    %1920 = vmatprep.subr.mxu0 0.0
    %1921 = vmatpush1.msra.mxu0 0.0
    %1922 = vmatprep.subr.mxu0 0.0
    %1923 = vmatpush1.msra.mxu0 0.0
    %1924 = vmatprep.subr.mxu0 0.0
    %1925 = vmatpush1.msra.mxu0 0.0
    %1926 = vmatprep.subr.mxu0 0.0
    %1927 = vmatpush1.msra.mxu0 0.0
    %1928 = vmatprep.subr.mxu0 0.0
    %1929 = vmatpush1.msra.mxu0 0.0
    %1930 = vmatprep.subr.mxu0 0.0
    %1931 = vmatpush1.msra.mxu0 0.0
    %1932 = vmatprep.subr.mxu0 0.0
    %1933 = vmatpush1.msra.mxu0 0.0
    %1934 = vmatprep.subr.mxu0 0.0
    %1935 = vmatpush1.msra.mxu0 0.0
    %1936 = vmatprep.subr.mxu0 0.0
    %1937 = vmatpush1.msra.mxu0 0.0
    %1938 = vmatprep.subr.mxu0 0.0
    %1939 = vmatpush1.msra.mxu0 0.0
    %1940 = vmatprep.subr.mxu0 0.0
    %1941 = vmatpush1.msra.mxu0 0.0
    %1942 = vmatprep.subr.mxu0 0.0
    %1943 = vmatpush1.msra.mxu0 0.0
    %1944 = vmatprep.subr.mxu0 0.0
    %1945 = vmatpush1.msra.mxu0 0.0
    %1946 = vmatprep.subr.mxu0 0.0
    %1947 = vmatpush1.msra.mxu0 0.0
    %1948 = vmatprep.subr.mxu0 0.0
    %1949 = vmatpush1.msra.mxu0 0.0
    %1950 = vmatprep.subr.mxu0 0.0
    %1951 = vmatpush1.msra.mxu0 0.0
    %1952 = vmatprep.subr.mxu0 0.0
    %1953 = vmatpush1.msra.mxu0 0.0
    %1954 = vmatprep.subr.mxu0 0.0
    %1955 = vmatpush1.msra.mxu0 0.0
    %1956 = vmatprep.subr.mxu0 0.0
    %1957 = vmatpush1.msra.mxu0 0.0
    %1958 = vmatprep.subr.mxu0 0.0
    %1959 = vmatpush1.msra.mxu0 0.0
    %1960 = vmatprep.subr.mxu0 0.0
    %1961 = vmatpush1.msra.mxu0 0.0
    %1962 = vmatprep.subr.mxu0 0.0
    %1963 = vmatpush1.msra.mxu0 0.0
    %1964 = vmatprep.subr.mxu0 0.0
    %1965 = vmatpush1.msra.mxu0 0.0
    %1966 = vmatprep.subr.mxu0 0.0
    %1967 = vmatpush1.msra.mxu0 0.0
    %1968 = vmatprep.subr.mxu0 0.0
    %1969 = vmatpush1.msra.mxu0 0.0
    %1970 = vmatprep.subr.mxu0 0.0
    %1971 = vmatpush1.msra.mxu0 0.0
    %1972 = vmatprep.mubr.f32.mxu0 0.0
    %1973 = vmatmul.mubr.f32.gmra.mrb[0].mxu0 %v1836
    %v1974 = vpop.f32.mrb[0].mxu0
    %v1975 = vadd.f32 0.0, %v1974
    %v1976 = vpop.f32.mrb[0].mxu0
    %1977 = vdwg.mxu0
    %v1978 = vadd.f32 %v426, %v1905
    %v1979 = vmul.f32 %v1978, 0.5
    %v1980 = vtanh.pop %v1979
    %v1981 = vmul.f32 %v1980, 0.5
    %v1982 = vadd.f32 %v1981, 0.5
    %v1983 = vadd.f32 %v542, %v1975
    %v1984 = vmul.f32 %v1983, 0.5
    %v1985 = vtanh.pop %v1984
    %v1986 = vmul.f32 %v1985, 0.5
    %v1987 = vadd.f32 %v1986, 0.5
    %1988 = vmatprep.subr.mxu0 0.0
    %1989 = vmatpush1.msra.mxu0 %v679
    %1990 = vmatprep.subr.mxu0 0.0
    %1991 = vmatpush1.msra.mxu0 %v680
    %1992 = vmatprep.subr.mxu0 0.0
    %1993 = vmatpush1.msra.mxu0 %v681
    %1994 = vmatprep.subr.mxu0 0.0
    %1995 = vmatpush1.msra.mxu0 %v682
    %1996 = vmatprep.subr.mxu0 0.0
    %1997 = vmatpush1.msra.mxu0 0.0
    %1998 = vmatprep.subr.mxu0 0.0
    %1999 = vmatpush1.msra.mxu0 0.0
    %2000 = vmatprep.subr.mxu0 0.0
    %2001 = vmatpush1.msra.mxu0 0.0
    %2002 = vmatprep.subr.mxu0 0.0
    %2003 = vmatpush1.msra.mxu0 0.0
    %2004 = vmatprep.subr.mxu0 0.0
    %2005 = vmatpush1.msra.mxu0 0.0
    %2006 = vmatprep.subr.mxu0 0.0
    %2007 = vmatpush1.msra.mxu0 0.0
    %2008 = vmatprep.subr.mxu0 0.0
    %2009 = vmatpush1.msra.mxu0 0.0
    %2010 = vmatprep.subr.mxu0 0.0
    %2011 = vmatpush1.msra.mxu0 0.0
    %2012 = vmatprep.subr.mxu0 0.0
    %2013 = vmatpush1.msra.mxu0 0.0
    %2014 = vmatprep.subr.mxu0 0.0
    %2015 = vmatpush1.msra.mxu0 0.0
    %2016 = vmatprep.subr.mxu0 0.0
    %2017 = vmatpush1.msra.mxu0 0.0
    %2018 = vmatprep.subr.mxu0 0.0
    %2019 = vmatpush1.msra.mxu0 0.0
    %2020 = vmatprep.subr.mxu0 0.0
    %2021 = vmatpush1.msra.mxu0 0.0
    %2022 = vmatprep.subr.mxu0 0.0
    %2023 = vmatpush1.msra.mxu0 0.0
    %2024 = vmatprep.subr.mxu0 0.0
    %2025 = vmatpush1.msra.mxu0 0.0
    %2026 = vmatprep.subr.mxu0 0.0
    %2027 = vmatpush1.msra.mxu0 0.0
    %2028 = vmatprep.subr.mxu0 0.0
    %2029 = vmatpush1.msra.mxu0 0.0
    %2030 = vmatprep.subr.mxu0 0.0
    %2031 = vmatpush1.msra.mxu0 0.0
    %2032 = vmatprep.subr.mxu0 0.0
    %2033 = vmatpush1.msra.mxu0 0.0
    %2034 = vmatprep.subr.mxu0 0.0
    %2035 = vmatpush1.msra.mxu0 0.0
    %2036 = vmatprep.subr.mxu0 0.0
    %2037 = vmatpush1.msra.mxu0 0.0
    %2038 = vmatprep.subr.mxu0 0.0
    %2039 = vmatpush1.msra.mxu0 0.0
    %2040 = vmatprep.subr.mxu0 0.0
    %2041 = vmatpush1.msra.mxu0 0.0
    %2042 = vmatprep.subr.mxu0 0.0
    %2043 = vmatpush1.msra.mxu0 0.0
    %2044 = vmatprep.subr.mxu0 0.0
    %2045 = vmatpush1.msra.mxu0 0.0
    %2046 = vmatprep.subr.mxu0 0.0
    %2047 = vmatpush1.msra.mxu0 0.0
    %2048 = vmatprep.subr.mxu0 0.0
    %2049 = vmatpush1.msra.mxu0 0.0
    %2050 = vmatprep.subr.mxu0 0.0
    %2051 = vmatpush1.msra.mxu0 0.0
    %2052 = vmatprep.mubr.f32.mxu0 0.0
    %2053 = vmatmul.mubr.f32.gmra.mrb[0].mxu0 %v1836
    %v2054 = vpop.f32.mrb[0].mxu0
    %v2055 = vadd.f32 %v688, %v2054
    %v2056 = vpop.f32.mrb[0].mxu0
    %2057 = vdwg.mxu0
    %v2058 = vmul.f32 %v1982, %v2055
    %v2059 = vadd.f32 %v658, %v2058
    %v2060 = vtanh.pop %v2059
    %v2061 = vsub.f32 %v1834, %v2060
    %v2062 = vmul.f32 %v1987, %v2061
    %v2063 = vadd.f32 %v2060, %v2062
    %v2065 = vsel %vm224, %v2063, 0
    %2067 = vmatprep.subr.mxu0 0.0
    %2068 = vmatpush1.msra.mxu0 %v671
    %2069 = vmatprep.subr.mxu0 0.0
    %2070 = vmatpush1.msra.mxu0 %v672
    %2071 = vmatprep.subr.mxu0 0.0
    %2072 = vmatpush1.msra.mxu0 %v673
    %2073 = vmatprep.subr.mxu0 0.0
    %2074 = vmatpush1.msra.mxu0 %v674
    %2075 = vmatprep.subr.mxu0 0.0
    %2076 = vmatpush1.msra.mxu0 0.0
    %2077 = vmatprep.subr.mxu0 0.0
    %2078 = vmatpush1.msra.mxu0 0.0
    %2079 = vmatprep.subr.mxu0 0.0
    %2080 = vmatpush1.msra.mxu0 0.0
    %2081 = vmatprep.subr.mxu0 0.0
    %2082 = vmatpush1.msra.mxu0 0.0
    %2083 = vmatprep.subr.mxu0 0.0
    %2084 = vmatpush1.msra.mxu0 0.0
    %2085 = vmatprep.subr.mxu0 0.0
    %2086 = vmatpush1.msra.mxu0 0.0
    %2087 = vmatprep.subr.mxu0 0.0
    %2088 = vmatpush1.msra.mxu0 0.0
    %2089 = vmatprep.subr.mxu0 0.0
    %2090 = vmatpush1.msra.mxu0 0.0
    %2091 = vmatprep.subr.mxu0 0.0
    %2092 = vmatpush1.msra.mxu0 0.0
    %2093 = vmatprep.subr.mxu0 0.0
    %2094 = vmatpush1.msra.mxu0 0.0
    %2095 = vmatprep.subr.mxu0 0.0
    %2096 = vmatpush1.msra.mxu0 0.0
    %2097 = vmatprep.subr.mxu0 0.0
    %2098 = vmatpush1.msra.mxu0 0.0
    %2099 = vmatprep.subr.mxu0 0.0
    %2100 = vmatpush1.msra.mxu0 0.0
    %2101 = vmatprep.subr.mxu0 0.0
    %2102 = vmatpush1.msra.mxu0 0.0
    %2103 = vmatprep.subr.mxu0 0.0
    %2104 = vmatpush1.msra.mxu0 0.0
    %2105 = vmatprep.subr.mxu0 0.0
    %2106 = vmatpush1.msra.mxu0 0.0
    %2107 = vmatprep.subr.mxu0 0.0
    %2108 = vmatpush1.msra.mxu0 0.0
    %2109 = vmatprep.subr.mxu0 0.0
    %2110 = vmatpush1.msra.mxu0 0.0
    %2111 = vmatprep.subr.mxu0 0.0
    %2112 = vmatpush1.msra.mxu0 0.0
    %2113 = vmatprep.subr.mxu0 0.0
    %2114 = vmatpush1.msra.mxu0 0.0
    %2115 = vmatprep.subr.mxu0 0.0
    %2116 = vmatpush1.msra.mxu0 0.0
    %2117 = vmatprep.subr.mxu0 0.0
    %2118 = vmatpush1.msra.mxu0 0.0
    %2119 = vmatprep.subr.mxu0 0.0
    %2120 = vmatpush1.msra.mxu0 0.0
    %2121 = vmatprep.subr.mxu0 0.0
    %2122 = vmatpush1.msra.mxu0 0.0
    %2123 = vmatprep.subr.mxu0 0.0
    %2124 = vmatpush1.msra.mxu0 0.0
    %2125 = vmatprep.subr.mxu0 0.0
    %2126 = vmatpush1.msra.mxu0 0.0
    %2127 = vmatprep.subr.mxu0 0.0
    %2128 = vmatpush1.msra.mxu0 0.0
    %2129 = vmatprep.subr.mxu0 0.0
    %2130 = vmatpush1.msra.mxu0 0.0
    %2131 = vmatprep.mubr.f32.mxu0 0.0
    %2132 = vmatmul.mubr.f32.gmra.mrb[0].mxu0 %v2065
    %v2133 = vpop.f32.mrb[0].mxu0
    %v2134 = vadd.f32 0.0, %v2133
    %v2135 = vpop.f32.mrb[0].mxu0
    %2136 = vdwg.mxu0
    %2137 = vmatprep.subr.mxu0 0.0
    %2138 = vmatpush1.msra.mxu0 %v675
    %2139 = vmatprep.subr.mxu0 0.0
    %2140 = vmatpush1.msra.mxu0 %v676
    %2141 = vmatprep.subr.mxu0 0.0
    %2142 = vmatpush1.msra.mxu0 %v677
    %2143 = vmatprep.subr.mxu0 0.0
    %2144 = vmatpush1.msra.mxu0 %v678
    %2145 = vmatprep.subr.mxu0 0.0
    %2146 = vmatpush1.msra.mxu0 0.0
    %2147 = vmatprep.subr.mxu0 0.0
    %2148 = vmatpush1.msra.mxu0 0.0
    %2149 = vmatprep.subr.mxu0 0.0
    %2150 = vmatpush1.msra.mxu0 0.0
    %2151 = vmatprep.subr.mxu0 0.0
    %2152 = vmatpush1.msra.mxu0 0.0
    %2153 = vmatprep.subr.mxu0 0.0
    %2154 = vmatpush1.msra.mxu0 0.0
    %2155 = vmatprep.subr.mxu0 0.0
    %2156 = vmatpush1.msra.mxu0 0.0
    %2157 = vmatprep.subr.mxu0 0.0
    %2158 = vmatpush1.msra.mxu0 0.0
    %2159 = vmatprep.subr.mxu0 0.0
    %2160 = vmatpush1.msra.mxu0 0.0
    %2161 = vmatprep.subr.mxu0 0.0
    %2162 = vmatpush1.msra.mxu0 0.0
    %2163 = vmatprep.subr.mxu0 0.0
    %2164 = vmatpush1.msra.mxu0 0.0
    %2165 = vmatprep.subr.mxu0 0.0
    %2166 = vmatpush1.msra.mxu0 0.0
    %2167 = vmatprep.subr.mxu0 0.0
    %2168 = vmatpush1.msra.mxu0 0.0
    %2169 = vmatprep.subr.mxu0 0.0
    %2170 = vmatpush1.msra.mxu0 0.0
    %2171 = vmatprep.subr.mxu0 0.0
    %2172 = vmatpush1.msra.mxu0 0.0
    %2173 = vmatprep.subr.mxu0 0.0
    %2174 = vmatpush1.msra.mxu0 0.0
    %2175 = vmatprep.subr.mxu0 0.0
    %2176 = vmatpush1.msra.mxu0 0.0
    %2177 = vmatprep.subr.mxu0 0.0
    %2178 = vmatpush1.msra.mxu0 0.0
    %2179 = vmatprep.subr.mxu0 0.0
    %2180 = vmatpush1.msra.mxu0 0.0
    %2181 = vmatprep.subr.mxu0 0.0
    %2182 = vmatpush1.msra.mxu0 0.0
    %2183 = vmatprep.subr.mxu0 0.0
    %2184 = vmatpush1.msra.mxu0 0.0
    %2185 = vmatprep.subr.mxu0 0.0
    %2186 = vmatpush1.msra.mxu0 0.0
    %2187 = vmatprep.subr.mxu0 0.0
    %2188 = vmatpush1.msra.mxu0 0.0
    %2189 = vmatprep.subr.mxu0 0.0
    %2190 = vmatpush1.msra.mxu0 0.0
    %2191 = vmatprep.subr.mxu0 0.0
    %2192 = vmatpush1.msra.mxu0 0.0
    %2193 = vmatprep.subr.mxu0 0.0
    %2194 = vmatpush1.msra.mxu0 0.0
    %2195 = vmatprep.subr.mxu0 0.0
    %2196 = vmatpush1.msra.mxu0 0.0
    %2197 = vmatprep.subr.mxu0 0.0
    %2198 = vmatpush1.msra.mxu0 0.0
    %2199 = vmatprep.subr.mxu0 0.0
    %2200 = vmatpush1.msra.mxu0 0.0
    %2201 = vmatprep.mubr.f32.mxu0 0.0
    %2202 = vmatmul.mubr.f32.gmra.mrb[0].mxu0 %v2065
    %v2203 = vpop.f32.mrb[0].mxu0
    %v2204 = vadd.f32 0.0, %v2203
    %v2205 = vpop.f32.mrb[0].mxu0
    %2206 = vdwg.mxu0
    %v2207 = vadd.f32 %v431, %v2134
    %v2208 = vmul.f32 %v2207, 0.5
    %v2209 = vtanh.pop %v2208
    %v2210 = vmul.f32 %v2209, 0.5
    %v2211 = vadd.f32 %v2210, 0.5
    %v2212 = vadd.f32 %v547, %v2204
    %v2213 = vmul.f32 %v2212, 0.5
    %v2214 = vtanh.pop %v2213
    %v2215 = vmul.f32 %v2214, 0.5
    %v2216 = vadd.f32 %v2215, 0.5
    %2217 = vmatprep.subr.mxu0 0.0
    %2218 = vmatpush1.msra.mxu0 %v679
    %2219 = vmatprep.subr.mxu0 0.0
    %2220 = vmatpush1.msra.mxu0 %v680
    %2221 = vmatprep.subr.mxu0 0.0
    %2222 = vmatpush1.msra.mxu0 %v681
    %2223 = vmatprep.subr.mxu0 0.0
    %2224 = vmatpush1.msra.mxu0 %v682
    %2225 = vmatprep.subr.mxu0 0.0
    %2226 = vmatpush1.msra.mxu0 0.0
    %2227 = vmatprep.subr.mxu0 0.0
    %2228 = vmatpush1.msra.mxu0 0.0
    %2229 = vmatprep.subr.mxu0 0.0
    %2230 = vmatpush1.msra.mxu0 0.0
    %2231 = vmatprep.subr.mxu0 0.0
    %2232 = vmatpush1.msra.mxu0 0.0
    %2233 = vmatprep.subr.mxu0 0.0
    %2234 = vmatpush1.msra.mxu0 0.0
    %2235 = vmatprep.subr.mxu0 0.0
    %2236 = vmatpush1.msra.mxu0 0.0
    %2237 = vmatprep.subr.mxu0 0.0
    %2238 = vmatpush1.msra.mxu0 0.0
    %2239 = vmatprep.subr.mxu0 0.0
    %2240 = vmatpush1.msra.mxu0 0.0
    %2241 = vmatprep.subr.mxu0 0.0
    %2242 = vmatpush1.msra.mxu0 0.0
    %2243 = vmatprep.subr.mxu0 0.0
    %2244 = vmatpush1.msra.mxu0 0.0
    %2245 = vmatprep.subr.mxu0 0.0
    %2246 = vmatpush1.msra.mxu0 0.0
    %2247 = vmatprep.subr.mxu0 0.0
    %2248 = vmatpush1.msra.mxu0 0.0
    %2249 = vmatprep.subr.mxu0 0.0
    %2250 = vmatpush1.msra.mxu0 0.0
    %2251 = vmatprep.subr.mxu0 0.0
    %2252 = vmatpush1.msra.mxu0 0.0
    %2253 = vmatprep.subr.mxu0 0.0
    %2254 = vmatpush1.msra.mxu0 0.0
    %2255 = vmatprep.subr.mxu0 0.0
    %2256 = vmatpush1.msra.mxu0 0.0
    %2257 = vmatprep.subr.mxu0 0.0
    %2258 = vmatpush1.msra.mxu0 0.0
    %2259 = vmatprep.subr.mxu0 0.0
    %2260 = vmatpush1.msra.mxu0 0.0
    %2261 = vmatprep.subr.mxu0 0.0
    %2262 = vmatpush1.msra.mxu0 0.0
    %2263 = vmatprep.subr.mxu0 0.0
    %2264 = vmatpush1.msra.mxu0 0.0
    %2265 = vmatprep.subr.mxu0 0.0
    %2266 = vmatpush1.msra.mxu0 0.0
    %2267 = vmatprep.subr.mxu0 0.0
    %2268 = vmatpush1.msra.mxu0 0.0
    %2269 = vmatprep.subr.mxu0 0.0
    %2270 = vmatpush1.msra.mxu0 0.0
    %2271 = vmatprep.subr.mxu0 0.0
    %2272 = vmatpush1.msra.mxu0 0.0
    %2273 = vmatprep.subr.mxu0 0.0
    %2274 = vmatpush1.msra.mxu0 0.0
    %2275 = vmatprep.subr.mxu0 0.0
    %2276 = vmatpush1.msra.mxu0 0.0
    %2277 = vmatprep.subr.mxu0 0.0
    %2278 = vmatpush1.msra.mxu0 0.0
    %2279 = vmatprep.subr.mxu0 0.0
    %2280 = vmatpush1.msra.mxu0 0.0
    %2281 = vmatprep.mubr.f32.mxu0 0.0
    %2282 = vmatmul.mubr.f32.gmra.mrb[0].mxu0 %v2065
    %v2283 = vpop.f32.mrb[0].mxu0
    %v2284 = vadd.f32 %v688, %v2283
    %v2285 = vpop.f32.mrb[0].mxu0
    %2286 = vdwg.mxu0
    %v2287 = vmul.f32 %v2211, %v2284
    %v2288 = vadd.f32 %v663, %v2287
    %v2289 = vtanh.pop %v2288
    %v2290 = vsub.f32 %v2063, %v2289
    %v2291 = vmul.f32 %v2216, %v2290
    %v2292 = vadd.f32 %v2289, %v2291
    %v2294 = vsel %vm224, %v2292, 0
    %2296 = vmatprep.subr.mxu0 0.0
    %2297 = vmatpush1.msra.mxu0 %v671
    %2298 = vmatprep.subr.mxu0 0.0
    %2299 = vmatpush1.msra.mxu0 %v672
    %2300 = vmatprep.subr.mxu0 0.0
    %2301 = vmatpush1.msra.mxu0 %v673
    %2302 = vmatprep.subr.mxu0 0.0
    %2303 = vmatpush1.msra.mxu0 %v674
    %2304 = vmatprep.subr.mxu0 0.0
    %2305 = vmatpush1.msra.mxu0 0.0
    %2306 = vmatprep.subr.mxu0 0.0
    %2307 = vmatpush1.msra.mxu0 0.0
    %2308 = vmatprep.subr.mxu0 0.0
    %2309 = vmatpush1.msra.mxu0 0.0
    %2310 = vmatprep.subr.mxu0 0.0
    %2311 = vmatpush1.msra.mxu0 0.0
    %2312 = vmatprep.subr.mxu0 0.0
    %2313 = vmatpush1.msra.mxu0 0.0
    %2314 = vmatprep.subr.mxu0 0.0
    %2315 = vmatpush1.msra.mxu0 0.0
    %2316 = vmatprep.subr.mxu0 0.0
    %2317 = vmatpush1.msra.mxu0 0.0
    %2318 = vmatprep.subr.mxu0 0.0
    %2319 = vmatpush1.msra.mxu0 0.0
    %2320 = vmatprep.subr.mxu0 0.0
    %2321 = vmatpush1.msra.mxu0 0.0
    %2322 = vmatprep.subr.mxu0 0.0
    %2323 = vmatpush1.msra.mxu0 0.0
    %2324 = vmatprep.subr.mxu0 0.0
    %2325 = vmatpush1.msra.mxu0 0.0
    %2326 = vmatprep.subr.mxu0 0.0
    %2327 = vmatpush1.msra.mxu0 0.0
    %2328 = vmatprep.subr.mxu0 0.0
    %2329 = vmatpush1.msra.mxu0 0.0
    %2330 = vmatprep.subr.mxu0 0.0
    %2331 = vmatpush1.msra.mxu0 0.0
    %2332 = vmatprep.subr.mxu0 0.0
    %2333 = vmatpush1.msra.mxu0 0.0
    %2334 = vmatprep.subr.mxu0 0.0
    %2335 = vmatpush1.msra.mxu0 0.0
    %2336 = vmatprep.subr.mxu0 0.0
    %2337 = vmatpush1.msra.mxu0 0.0
    %2338 = vmatprep.subr.mxu0 0.0
    %2339 = vmatpush1.msra.mxu0 0.0
    %2340 = vmatprep.subr.mxu0 0.0
    %2341 = vmatpush1.msra.mxu0 0.0
    %2342 = vmatprep.subr.mxu0 0.0
    %2343 = vmatpush1.msra.mxu0 0.0
    %2344 = vmatprep.subr.mxu0 0.0
    %2345 = vmatpush1.msra.mxu0 0.0
    %2346 = vmatprep.subr.mxu0 0.0
    %2347 = vmatpush1.msra.mxu0 0.0
    %2348 = vmatprep.subr.mxu0 0.0
    %2349 = vmatpush1.msra.mxu0 0.0
    %2350 = vmatprep.subr.mxu0 0.0
    %2351 = vmatpush1.msra.mxu0 0.0
    %2352 = vmatprep.subr.mxu0 0.0
    %2353 = vmatpush1.msra.mxu0 0.0
    %2354 = vmatprep.subr.mxu0 0.0
    %2355 = vmatpush1.msra.mxu0 0.0
    %2356 = vmatprep.subr.mxu0 0.0
    %2357 = vmatpush1.msra.mxu0 0.0
    %2358 = vmatprep.subr.mxu0 0.0
    %2359 = vmatpush1.msra.mxu0 0.0
    %2360 = vmatprep.mubr.f32.mxu0 0.0
    %2361 = vmatmul.mubr.f32.gmra.mrb[0].mxu0 %v2294
    %v2362 = vpop.f32.mrb[0].mxu0
    %v2363 = vadd.f32 0.0, %v2362
    %v2364 = vpop.f32.mrb[0].mxu0
    %2365 = vdwg.mxu0
    %2366 = vmatprep.subr.mxu0 0.0
    %2367 = vmatpush1.msra.mxu0 %v675
    %2368 = vmatprep.subr.mxu0 0.0
    %2369 = vmatpush1.msra.mxu0 %v676
    %2370 = vmatprep.subr.mxu0 0.0
    %2371 = vmatpush1.msra.mxu0 %v677
    %2372 = vmatprep.subr.mxu0 0.0
    %2373 = vmatpush1.msra.mxu0 %v678
    %2374 = vmatprep.subr.mxu0 0.0
    %2375 = vmatpush1.msra.mxu0 0.0
    %2376 = vmatprep.subr.mxu0 0.0
    %2377 = vmatpush1.msra.mxu0 0.0
    %2378 = vmatprep.subr.mxu0 0.0
    %2379 = vmatpush1.msra.mxu0 0.0
    %2380 = vmatprep.subr.mxu0 0.0
    %2381 = vmatpush1.msra.mxu0 0.0
    %2382 = vmatprep.subr.mxu0 0.0
    %2383 = vmatpush1.msra.mxu0 0.0
    %2384 = vmatprep.subr.mxu0 0.0
    %2385 = vmatpush1.msra.mxu0 0.0
    %2386 = vmatprep.subr.mxu0 0.0
    %2387 = vmatpush1.msra.mxu0 0.0
    %2388 = vmatprep.subr.mxu0 0.0
    %2389 = vmatpush1.msra.mxu0 0.0
    %2390 = vmatprep.subr.mxu0 0.0
    %2391 = vmatpush1.msra.mxu0 0.0
    %2392 = vmatprep.subr.mxu0 0.0
    %2393 = vmatpush1.msra.mxu0 0.0
    %2394 = vmatprep.subr.mxu0 0.0
    %2395 = vmatpush1.msra.mxu0 0.0
    %2396 = vmatprep.subr.mxu0 0.0
    %2397 = vmatpush1.msra.mxu0 0.0
    %2398 = vmatprep.subr.mxu0 0.0
    %2399 = vmatpush1.msra.mxu0 0.0
    %2400 = vmatprep.subr.mxu0 0.0
    %2401 = vmatpush1.msra.mxu0 0.0
    %2402 = vmatprep.subr.mxu0 0.0
    %2403 = vmatpush1.msra.mxu0 0.0
    %2404 = vmatprep.subr.mxu0 0.0
    %2405 = vmatpush1.msra.mxu0 0.0
    %2406 = vmatprep.subr.mxu0 0.0
    %2407 = vmatpush1.msra.mxu0 0.0
    %2408 = vmatprep.subr.mxu0 0.0
    %2409 = vmatpush1.msra.mxu0 0.0
    %2410 = vmatprep.subr.mxu0 0.0
    %2411 = vmatpush1.msra.mxu0 0.0
    %2412 = vmatprep.subr.mxu0 0.0
    %2413 = vmatpush1.msra.mxu0 0.0
    %2414 = vmatprep.subr.mxu0 0.0
    %2415 = vmatpush1.msra.mxu0 0.0
    %2416 = vmatprep.subr.mxu0 0.0
    %2417 = vmatpush1.msra.mxu0 0.0
    %2418 = vmatprep.subr.mxu0 0.0
    %2419 = vmatpush1.msra.mxu0 0.0
    %2420 = vmatprep.subr.mxu0 0.0
    %2421 = vmatpush1.msra.mxu0 0.0
    %2422 = vmatprep.subr.mxu0 0.0
    %2423 = vmatpush1.msra.mxu0 0.0
    %2424 = vmatprep.subr.mxu0 0.0
    %2425 = vmatpush1.msra.mxu0 0.0
    %2426 = vmatprep.subr.mxu0 0.0
    %2427 = vmatpush1.msra.mxu0 0.0
    %2428 = vmatprep.subr.mxu0 0.0
    %2429 = vmatpush1.msra.mxu0 0.0
    %2430 = vmatprep.mubr.f32.mxu0 0.0
    %2431 = vmatmul.mubr.f32.gmra.mrb[0].mxu0 %v2294
    %v2432 = vpop.f32.mrb[0].mxu0
    %v2433 = vadd.f32 0.0, %v2432
    %v2434 = vpop.f32.mrb[0].mxu0
    %2435 = vdwg.mxu0
    %v2436 = vadd.f32 %v436, %v2363
    %v2437 = vmul.f32 %v2436, 0.5
    %v2438 = vtanh.pop %v2437
    %v2439 = vmul.f32 %v2438, 0.5
    %v2440 = vadd.f32 %v2439, 0.5
    %v2441 = vadd.f32 %v552, %v2433
    %v2442 = vmul.f32 %v2441, 0.5
    %v2443 = vtanh.pop %v2442
    %v2444 = vmul.f32 %v2443, 0.5
    %v2445 = vadd.f32 %v2444, 0.5
    %2446 = vmatprep.subr.mxu0 0.0
    %2447 = vmatpush1.msra.mxu0 %v679
    %2448 = vmatprep.subr.mxu0 0.0
    %2449 = vmatpush1.msra.mxu0 %v680
    %2450 = vmatprep.subr.mxu0 0.0
    %2451 = vmatpush1.msra.mxu0 %v681
    %2452 = vmatprep.subr.mxu0 0.0
    %2453 = vmatpush1.msra.mxu0 %v682
    %2454 = vmatprep.subr.mxu0 0.0
    %2455 = vmatpush1.msra.mxu0 0.0
    %2456 = vmatprep.subr.mxu0 0.0
    %2457 = vmatpush1.msra.mxu0 0.0
    %2458 = vmatprep.subr.mxu0 0.0
    %2459 = vmatpush1.msra.mxu0 0.0
    %2460 = vmatprep.subr.mxu0 0.0
    %2461 = vmatpush1.msra.mxu0 0.0
    %2462 = vmatprep.subr.mxu0 0.0
    %2463 = vmatpush1.msra.mxu0 0.0
    %2464 = vmatprep.subr.mxu0 0.0
    %2465 = vmatpush1.msra.mxu0 0.0
    %2466 = vmatprep.subr.mxu0 0.0
    %2467 = vmatpush1.msra.mxu0 0.0
    %2468 = vmatprep.subr.mxu0 0.0
    %2469 = vmatpush1.msra.mxu0 0.0
    %2470 = vmatprep.subr.mxu0 0.0
    %2471 = vmatpush1.msra.mxu0 0.0
    %2472 = vmatprep.subr.mxu0 0.0
    %2473 = vmatpush1.msra.mxu0 0.0
    %2474 = vmatprep.subr.mxu0 0.0
    %2475 = vmatpush1.msra.mxu0 0.0
    %2476 = vmatprep.subr.mxu0 0.0
    %2477 = vmatpush1.msra.mxu0 0.0
    %2478 = vmatprep.subr.mxu0 0.0
    %2479 = vmatpush1.msra.mxu0 0.0
    %2480 = vmatprep.subr.mxu0 0.0
    %2481 = vmatpush1.msra.mxu0 0.0
    %2482 = vmatprep.subr.mxu0 0.0
    %2483 = vmatpush1.msra.mxu0 0.0
    %2484 = vmatprep.subr.mxu0 0.0
    %2485 = vmatpush1.msra.mxu0 0.0
    %2486 = vmatprep.subr.mxu0 0.0
    %2487 = vmatpush1.msra.mxu0 0.0
    %2488 = vmatprep.subr.mxu0 0.0
    %2489 = vmatpush1.msra.mxu0 0.0
    %2490 = vmatprep.subr.mxu0 0.0
    %2491 = vmatpush1.msra.mxu0 0.0
    %2492 = vmatprep.subr.mxu0 0.0
    %2493 = vmatpush1.msra.mxu0 0.0
    %2494 = vmatprep.subr.mxu0 0.0
    %2495 = vmatpush1.msra.mxu0 0.0
    %2496 = vmatprep.subr.mxu0 0.0
    %2497 = vmatpush1.msra.mxu0 0.0
    %2498 = vmatprep.subr.mxu0 0.0
    %2499 = vmatpush1.msra.mxu0 0.0
    %2500 = vmatprep.subr.mxu0 0.0
    %2501 = vmatpush1.msra.mxu0 0.0
    %2502 = vmatprep.subr.mxu0 0.0
    %2503 = vmatpush1.msra.mxu0 0.0
    %2504 = vmatprep.subr.mxu0 0.0
    %2505 = vmatpush1.msra.mxu0 0.0
    %2506 = vmatprep.subr.mxu0 0.0
    %2507 = vmatpush1.msra.mxu0 0.0
    %2508 = vmatprep.subr.mxu0 0.0
    %2509 = vmatpush1.msra.mxu0 0.0
    %2510 = vmatprep.mubr.f32.mxu0 0.0
    %2511 = vmatmul.mubr.f32.gmra.mrb[0].mxu0 %v2294
    %v2512 = vpop.f32.mrb[0].mxu0
    %v2513 = vadd.f32 %v688, %v2512
    %v2514 = vpop.f32.mrb[0].mxu0
    %2515 = vdwg.mxu0
    %v2516 = vmul.f32 %v2440, %v2513
    %v2517 = vadd.f32 %v668, %v2516
    %v2518 = vtanh.pop %v2517
    %v2519 = vsub.f32 %v2292, %v2518
    %v2520 = vmul.f32 %v2445, %v2519
    %v2521 = vadd.f32 %v2518, %v2520
    %v2522 = vld [vmem:[%s14] sm:$0xff]
    %v2523 = vld [vmem:[%s14 + $0x8] sm:$0xff]
    %v2524 = vld [vmem:[%s14 + $0x10] sm:$0xff]
    %v2525 = vld [vmem:[%s14 + $0x18] sm:$0xff]
    %v2526 = vld [vmem:[%s15] sm:$0x1]
    %v2528 = vlaneseq
    %v2529 = vshrl.u32 %v2528, 7
    %v2530 = vsub.s32 0, %v2529
    %v2531 = vrot.slane %v2526, %v2530
    %v2534 = vsel %vm224, %v2521, 0
    %2536 = vmatprep.subr.mxu0 0.0
    %2537 = vmatpush1.msra.mxu0 %v2522
    %2538 = vmatprep.subr.mxu0 0.0
    %2539 = vmatpush1.msra.mxu0 %v2523
    %2540 = vmatprep.subr.mxu0 0.0
    %2541 = vmatpush1.msra.mxu0 %v2524
    %2542 = vmatprep.subr.mxu0 0.0
    %2543 = vmatpush1.msra.mxu0 %v2525
    %2544 = vmatprep.subr.mxu0 0.0
    %2545 = vmatpush1.msra.mxu0 0.0
    %2546 = vmatprep.subr.mxu0 0.0
    %2547 = vmatpush1.msra.mxu0 0.0
    %2548 = vmatprep.subr.mxu0 0.0
    %2549 = vmatpush1.msra.mxu0 0.0
    %2550 = vmatprep.subr.mxu0 0.0
    %2551 = vmatpush1.msra.mxu0 0.0
    %2552 = vmatprep.subr.mxu0 0.0
    %2553 = vmatpush1.msra.mxu0 0.0
    %2554 = vmatprep.subr.mxu0 0.0
    %2555 = vmatpush1.msra.mxu0 0.0
    %2556 = vmatprep.subr.mxu0 0.0
    %2557 = vmatpush1.msra.mxu0 0.0
    %2558 = vmatprep.subr.mxu0 0.0
    %2559 = vmatpush1.msra.mxu0 0.0
    %2560 = vmatprep.subr.mxu0 0.0
    %2561 = vmatpush1.msra.mxu0 0.0
    %2562 = vmatprep.subr.mxu0 0.0
    %2563 = vmatpush1.msra.mxu0 0.0
    %2564 = vmatprep.subr.mxu0 0.0
    %2565 = vmatpush1.msra.mxu0 0.0
    %2566 = vmatprep.subr.mxu0 0.0
    %2567 = vmatpush1.msra.mxu0 0.0
    %2568 = vmatprep.subr.mxu0 0.0
    %2569 = vmatpush1.msra.mxu0 0.0
    %2570 = vmatprep.subr.mxu0 0.0
    %2571 = vmatpush1.msra.mxu0 0.0
    %2572 = vmatprep.subr.mxu0 0.0
    %2573 = vmatpush1.msra.mxu0 0.0
    %2574 = vmatprep.subr.mxu0 0.0
    %2575 = vmatpush1.msra.mxu0 0.0
    %2576 = vmatprep.subr.mxu0 0.0
    %2577 = vmatpush1.msra.mxu0 0.0
    %2578 = vmatprep.subr.mxu0 0.0
    %2579 = vmatpush1.msra.mxu0 0.0
    %2580 = vmatprep.subr.mxu0 0.0
    %2581 = vmatpush1.msra.mxu0 0.0
    %2582 = vmatprep.subr.mxu0 0.0
    %2583 = vmatpush1.msra.mxu0 0.0
    %2584 = vmatprep.subr.mxu0 0.0
    %2585 = vmatpush1.msra.mxu0 0.0
    %2586 = vmatprep.subr.mxu0 0.0
    %2587 = vmatpush1.msra.mxu0 0.0
    %2588 = vmatprep.subr.mxu0 0.0
    %2589 = vmatpush1.msra.mxu0 0.0
    %2590 = vmatprep.subr.mxu0 0.0
    %2591 = vmatpush1.msra.mxu0 0.0
    %2592 = vmatprep.subr.mxu0 0.0
    %2593 = vmatpush1.msra.mxu0 0.0
    %2594 = vmatprep.subr.mxu0 0.0
    %2595 = vmatpush1.msra.mxu0 0.0
    %2596 = vmatprep.subr.mxu0 0.0
    %2597 = vmatpush1.msra.mxu0 0.0
    %2598 = vmatprep.subr.mxu0 0.0
    %2599 = vmatpush1.msra.mxu0 0.0
    %2600 = vmatprep.mubr.f32.mxu0 0.0
    %2601 = vmatmul.mubr.f32.gmra.mrb[0].mxu0 %v2534
    %v2602 = vpop.f32.mrb[0].mxu0
    %v2603 = vadd.f32 %v2531, %v2602
    %v2604 = vpop.f32.mrb[0].mxu0
    %2605 = vdwg.mxu0
    %v2606 = vmul.f32 %v2603, %v211
    %v2607 = vadd.f32 %v2606, %v168
    %s2608 = scalar_lea.vmem %s0, 56
    %v2609 = vld [vmem:[%s2608] sm:$0xff]
    %v2610 = vld [vmem:[%s16] sm:$0xf]
    %v2611 = vld [vmem:[%s17] sm:$0xf]
    %v2613 = vsel %vm151, %v2609, 0
    %v2616 = vsel %vm330, %v2611, 0
    %2618 = vmatprep.subr.mxu0 0.0
    %2619 = vmatpush1.msra.mxu0 %v2616
    %2620 = vmatprep.subr.mxu0 0.0
    %2621 = vmatpush1.msra.mxu0 0.0
    %2622 = vmatprep.subr.mxu0 0.0
    %2623 = vmatpush1.msra.mxu0 0.0
    %2624 = vmatprep.subr.mxu0 0.0
    %2625 = vmatpush1.msra.mxu0 0.0
    %2626 = vmatprep.subr.mxu0 0.0
    %2627 = vmatpush1.msra.mxu0 0.0
    %2628 = vmatprep.subr.mxu0 0.0
    %2629 = vmatpush1.msra.mxu0 0.0
    %2630 = vmatprep.subr.mxu0 0.0
    %2631 = vmatpush1.msra.mxu0 0.0
    %2632 = vmatprep.subr.mxu0 0.0
    %2633 = vmatpush1.msra.mxu0 0.0
    %2634 = vmatprep.subr.mxu0 0.0
    %2635 = vmatpush1.msra.mxu0 0.0
    %2636 = vmatprep.subr.mxu0 0.0
    %2637 = vmatpush1.msra.mxu0 0.0
    %2638 = vmatprep.subr.mxu0 0.0
    %2639 = vmatpush1.msra.mxu0 0.0
    %2640 = vmatprep.subr.mxu0 0.0
    %2641 = vmatpush1.msra.mxu0 0.0
    %2642 = vmatprep.subr.mxu0 0.0
    %2643 = vmatpush1.msra.mxu0 0.0
    %2644 = vmatprep.subr.mxu0 0.0
    %2645 = vmatpush1.msra.mxu0 0.0
    %2646 = vmatprep.subr.mxu0 0.0
    %2647 = vmatpush1.msra.mxu0 0.0
    %2648 = vmatprep.subr.mxu0 0.0
    %2649 = vmatpush1.msra.mxu0 0.0
    %2650 = vmatprep.subr.mxu0 0.0
    %2651 = vmatpush1.msra.mxu0 0.0
    %2652 = vmatprep.subr.mxu0 0.0
    %2653 = vmatpush1.msra.mxu0 0.0
    %2654 = vmatprep.subr.mxu0 0.0
    %2655 = vmatpush1.msra.mxu0 0.0
    %2656 = vmatprep.subr.mxu0 0.0
    %2657 = vmatpush1.msra.mxu0 0.0
    %2658 = vmatprep.subr.mxu0 0.0
    %2659 = vmatpush1.msra.mxu0 0.0
    %2660 = vmatprep.subr.mxu0 0.0
    %2661 = vmatpush1.msra.mxu0 0.0
    %2662 = vmatprep.subr.mxu0 0.0
    %2663 = vmatpush1.msra.mxu0 0.0
    %2664 = vmatprep.subr.mxu0 0.0
    %2665 = vmatpush1.msra.mxu0 0.0
    %2666 = vmatprep.subr.mxu0 0.0
    %2667 = vmatpush1.msra.mxu0 0.0
    %2668 = vmatprep.subr.mxu0 0.0
    %2669 = vmatpush1.msra.mxu0 0.0
    %2670 = vmatprep.subr.mxu0 0.0
    %2671 = vmatpush1.msra.mxu0 0.0
    %2672 = vmatprep.subr.mxu0 0.0
    %2673 = vmatpush1.msra.mxu0 0.0
    %2674 = vmatprep.subr.mxu0 0.0
    %2675 = vmatpush1.msra.mxu0 0.0
    %2676 = vmatprep.subr.mxu0 0.0
    %2677 = vmatpush1.msra.mxu0 0.0
    %2678 = vmatprep.subr.mxu0 0.0
    %2679 = vmatpush1.msra.mxu0 0.0
    %2680 = vmatprep.subr.mxu0 0.0
    %2681 = vmatpush1.msra.mxu0 0.0
    %2682 = vmatprep.mubr.f32.mxu0 0.0
    %2683 = vmatmul.mubr.f32.gmra.mrb[0].mxu0 %v2613
    %v2684 = vpop.f32.mrb[0].mxu0
    %v2685 = vadd.f32 0.0, %v2684
    %v2686 = vpop.f32.mrb[0].mxu0
    %2687 = vdwg.mxu0
    %v2689 = vsel %vm151, %v2607, 0
    %v2692 = vsel %vm330, %v2610, 0
    %2694 = vmatprep.subr.mxu0 0.0
    %2695 = vmatpush1.msra.mxu0 %v2692
    %2696 = vmatprep.subr.mxu0 0.0
    %2697 = vmatpush1.msra.mxu0 0.0
    %2698 = vmatprep.subr.mxu0 0.0
    %2699 = vmatpush1.msra.mxu0 0.0
    %2700 = vmatprep.subr.mxu0 0.0
    %2701 = vmatpush1.msra.mxu0 0.0
    %2702 = vmatprep.subr.mxu0 0.0
    %2703 = vmatpush1.msra.mxu0 0.0
    %2704 = vmatprep.subr.mxu0 0.0
    %2705 = vmatpush1.msra.mxu0 0.0
    %2706 = vmatprep.subr.mxu0 0.0
    %2707 = vmatpush1.msra.mxu0 0.0
    %2708 = vmatprep.subr.mxu0 0.0
    %2709 = vmatpush1.msra.mxu0 0.0
    %2710 = vmatprep.subr.mxu0 0.0
    %2711 = vmatpush1.msra.mxu0 0.0
    %2712 = vmatprep.subr.mxu0 0.0
    %2713 = vmatpush1.msra.mxu0 0.0
    %2714 = vmatprep.subr.mxu0 0.0
    %2715 = vmatpush1.msra.mxu0 0.0
    %2716 = vmatprep.subr.mxu0 0.0
    %2717 = vmatpush1.msra.mxu0 0.0
    %2718 = vmatprep.subr.mxu0 0.0
    %2719 = vmatpush1.msra.mxu0 0.0
    %2720 = vmatprep.subr.mxu0 0.0
    %2721 = vmatpush1.msra.mxu0 0.0
    %2722 = vmatprep.subr.mxu0 0.0
    %2723 = vmatpush1.msra.mxu0 0.0
    %2724 = vmatprep.subr.mxu0 0.0
    %2725 = vmatpush1.msra.mxu0 0.0
    %2726 = vmatprep.subr.mxu0 0.0
    %2727 = vmatpush1.msra.mxu0 0.0
    %2728 = vmatprep.subr.mxu0 0.0
    %2729 = vmatpush1.msra.mxu0 0.0
    %2730 = vmatprep.subr.mxu0 0.0
    %2731 = vmatpush1.msra.mxu0 0.0
    %2732 = vmatprep.subr.mxu0 0.0
    %2733 = vmatpush1.msra.mxu0 0.0
    %2734 = vmatprep.subr.mxu0 0.0
    %2735 = vmatpush1.msra.mxu0 0.0
    %2736 = vmatprep.subr.mxu0 0.0
    %2737 = vmatpush1.msra.mxu0 0.0
    %2738 = vmatprep.subr.mxu0 0.0
    %2739 = vmatpush1.msra.mxu0 0.0
    %2740 = vmatprep.subr.mxu0 0.0
    %2741 = vmatpush1.msra.mxu0 0.0
    %2742 = vmatprep.subr.mxu0 0.0
    %2743 = vmatpush1.msra.mxu0 0.0
    %2744 = vmatprep.subr.mxu0 0.0
    %2745 = vmatpush1.msra.mxu0 0.0
    %2746 = vmatprep.subr.mxu0 0.0
    %2747 = vmatpush1.msra.mxu0 0.0
    %2748 = vmatprep.subr.mxu0 0.0
    %2749 = vmatpush1.msra.mxu0 0.0
    %2750 = vmatprep.subr.mxu0 0.0
    %2751 = vmatpush1.msra.mxu0 0.0
    %2752 = vmatprep.subr.mxu0 0.0
    %2753 = vmatpush1.msra.mxu0 0.0
    %2754 = vmatprep.subr.mxu0 0.0
    %2755 = vmatpush1.msra.mxu0 0.0
    %2756 = vmatprep.subr.mxu0 0.0
    %2757 = vmatpush1.msra.mxu0 0.0
    %2758 = vmatprep.mubr.f32.mxu0 0.0
    %2759 = vmatmul.mubr.f32.gmra.mrb[0].mxu0 %v2689
    %v2760 = vpop.f32.mrb[0].mxu0
    %v2761 = vadd.f32 %v2685, %v2760
    %v2762 = vpop.f32.mrb[0].mxu0
    %2763 = vdwg.mxu0
    %v2764 = vld [vmem:[%s18] sm:$0x1]
    %v2766 = vlaneseq
    %v2767 = vshrl.u32 %v2766, 7
    %v2768 = vsub.s32 0, %v2767
    %v2769 = vrot.slane %v2764, %v2768
    %v2771 = vadd.f32 %v2761, %v2769
    %v2772 = vadd.f32 %v2609, %v2771
    %v2773 = vsub.f32 %v2772, %v2607
    %v2774 = vmax.f32 %v2773, 0.0
    %2775 = vst.msk [vmem:[%s19] sm:$0xff] %vm151, %v2774
    // Predicated region
    $region106: #{tpu_custom_call.1} parent=1 // pred_check
      _
    $region107: #{tpu_custom_call.1} parent=1 // pred_check_branch
      %2777 = sbr.rel (0) target = $region109
    $region108: #{tpu_custom_call.1} parent=1 // pred_region
      _
    $region109: #{tpu_custom_call.1} parent=1 // pred_fallthru
      _
    // Predicated region
    $region110: #{tpu_custom_call.1} parent=1 // pred_check
      _
    $region111: #{tpu_custom_call.1} parent=1 // pred_check_branch
      %2779 = sbr.rel (0) target = $region113
    $region112: #{tpu_custom_call.1} parent=1 // pred_region
      _
    $region113: #{tpu_custom_call.1} parent=1 // pred_fallthru
      _
    %2780 = vsyncpa [#allocation3], 1
    %2781 = vsyncpa [#allocation5], 1
    %2782 = vsyncpa [#allocation8], 1
    %2783 = vsyncpa [#allocation11], 1

</llo_original>
